<compile_context>
chip_gen: v7x
topology: tpu7x:2x2x1
jax: 0.10.0
libtpu: 0.0.40
codegen_flags: <defaults>
</compile_context>

<pallas_src>
from functools import partial

import jax
import jax.numpy as jnp
import numpy as np
from jax.experimental import pallas as pl
from jax.experimental.pallas import tpu as pltpu

LANE = 128


def _round_up(x, m):
    return (x + m - 1) // m * m


def _vmem_budget_bytes():
    """Generation-aware VMEM limit (v5e/v6e: 96 MiB, v7x: ~48 MiB)."""
    try:
        cap = pltpu.get_tpu_info().vmem_capacity_bytes
    except Exception:
        cap = 64 * 1024 * 1024  # conservative fallback (v7x per-TC VMEM)
    return min(96 * 1024 * 1024, int(cap) * 3 // 4)


def _pick_row_block(H_out, W_out, Wp, Cin_pad, Cout_pad, K, stride, itemsize,
                    depthwise, budget, cap=32):
    """Largest output-row tile whose working set fits comfortably in VMEM."""
    w_bytes = K * K * Cin_pad * (1 if depthwise else Cout_pad) * itemsize * 2
    best = 1
    for rb in range(1, min(H_out, cap) + 1):
        in_rows = (rb - 1) * stride + K
        xbuf = in_rows * Wp * Cin_pad * itemsize            # halo input window
        acc = rb * W_out * Cout_pad * 4                      # f32 accumulator
        outb = 2 * rb * W_out * Cout_pad * itemsize          # double-buffered out
        # in-kernel temporaries (im2col patch / per-kh local), f32
        tmp = rb * W_out * (Cin_pad if depthwise else K * Cin_pad) * 4
        if w_bytes + xbuf + acc + outb + 2 * tmp <= budget // 2:
            best = rb
    return best


# ----------------------------------------------------------------------------
# Pallas kernel 1: dense conv (groups folded to block-diagonal dense weights).
# One (batch, row-block) tile per grid step; MXU matmul of depth K*Cin_pad.
# ----------------------------------------------------------------------------
def _conv_mxu_kernel(x_hbm, w_ref, b_ref, o_ref, xbuf, sem, acc_ref, *,
                     K, stride, rowblk, W_out, in_rows):
    # x_hbm : (N, Hp, Wp, Cin_pad) zero-padded input, resident in HBM (pl.ANY)
    # w_ref : (K, K*Cin_pad, Cout_pad) fused (conv*BN) weights, kw folded
    # b_ref : (1, Cout_pad)            fused bias (f32)
    # o_ref : (1, rowblk*W_out, Cout_pad) flat lane-dense output block
    # xbuf  : VMEM scratch (in_rows, Wp, Cin_pad) — halo input window
    # acc_ref: VMEM scratch (rowblk*W_out, Cout_pad) f32
    n = pl.program_id(0)
    r = pl.program_id(1)
    row0 = r * (rowblk * stride)
    cp = pltpu.make_async_copy(x_hbm.at[n, pl.ds(row0, in_rows)], xbuf, sem)
    cp.start()
    cp.wait()  # TODO(synk): double-buffer / prefetch the next row block.

    Cin_pad = xbuf.shape[-1]
    row_span = (rowblk - 1) * stride + 1
    col_span = (W_out - 1) * stride + 1

    for kh in range(K):                       # static K -> fully unrolled
        rows = xbuf[pl.ds(kh, row_span), :, :]          # (row_span, Wp, Cin_pad)
        if stride > 1:
            rows = jax.lax.slice(rows, (0, 0, 0), rows.shape, (stride, 1, 1))
        cols = [jax.lax.slice(rows, (0, kw, 0),
                              (rowblk, kw + col_span, Cin_pad), (1, stride, 1))
                for kw in range(K)]
        patch = jnp.concatenate(cols, axis=-1)          # (rowblk, W_out, K*Cin_pad)
        patch = patch.reshape(rowblk * W_out, K * Cin_pad)
        contrib = jnp.dot(patch, w_ref[kh],
                          preferred_element_type=jnp.float32)
        if kh == 0:
            acc_ref[...] = contrib + b_ref[...]         # bias-initialised acc
        else:
            acc_ref[...] += contrib

    o_ref[0] = acc_ref[...].astype(o_ref.dtype)


# ----------------------------------------------------------------------------
# Pallas kernel 2: depthwise conv (groups == Cin == Cout) — pure VPU MAC path.
# ----------------------------------------------------------------------------
def _conv_dw_kernel(x_hbm, w_ref, b_ref, o_ref, xbuf, sem, acc_ref, *,
                    K, stride, rowblk, W_out, in_rows):
    # x_hbm : (N, Hp, Wp, Cpad)  HBM (pl.ANY)
    # w_ref : (K, K, Cpad)       per-channel taps
    # b_ref : (1, Cpad)          fused bias (f32)
    # o_ref : (1, rowblk, W_out, Cpad)
    # xbuf  : VMEM scratch (in_rows, Wp, Cpad)
    # acc_ref: VMEM scratch (rowblk, W_out, Cpad) f32
    n = pl.program_id(0)
    r = pl.program_id(1)
    row0 = r * (rowblk * stride)
    cp = pltpu.make_async_copy(x_hbm.at[n, pl.ds(row0, in_rows)], xbuf, sem)
    cp.start()
    cp.wait()  # TODO(synk): double-buffer / prefetch the next row block.

    Cpad = xbuf.shape[-1]
    row_span = (rowblk - 1) * stride + 1
    col_span = (W_out - 1) * stride + 1
    bias = b_ref[...].reshape(1, 1, Cpad)

    for kh in range(K):                       # static K -> fully unrolled
        rows = xbuf[pl.ds(kh, row_span), :, :]          # (row_span, Wp, Cpad)
        if stride > 1:
            rows = jax.lax.slice(rows, (0, 0, 0), rows.shape, (stride, 1, 1))
        taps = w_ref[kh].astype(jnp.float32)            # (K, Cpad)
        # Accumulate the K kw-taps LOCALLY -> a single acc_ref RMW per kh
        # (cuts accumulator VMEM/store traffic by ~K x vs per-tap RMW).
        local = None
        for kw in range(K):
            cols = jax.lax.slice(rows, (0, kw, 0),
                                 (rowblk, kw + col_span, Cpad), (1, stride, 1))
            term = cols.astype(jnp.float32) * taps[kw][None, None, :]
            local = term if local is None else local + term
        if kh == 0:
            acc_ref[...] = local + bias                 # bias-initialised acc
        else:
            acc_ref[...] += local

    o_ref[0] = acc_ref[...].astype(o_ref.dtype)


# ----------------------------------------------------------------------------
# Wrapper: layout prep (lane padding, kw folding, group handling) + pallas_call
# ----------------------------------------------------------------------------
def conv2d_pallas(x_nhwc, w_oihw, bias, *, stride, groups, compute_dtype=None,
                  row_block=None):
    """Conv2d with padding = K//2. x: NHWC, w: OIHW. Returns NHWC."""
    N, H, W, Cin = x_nhwc.shape
    Cout, cin_g, K, K2 = (int(d) for d in w_oihw.shape)
    assert K == K2 and K % 2 == 1, "odd square kernels only (padding = K//2)"
    assert Cin % groups == 0 and Cout % groups == 0 and cin_g == Cin // groups

    pad = K // 2
    H_out = (H + 2 * pad - K) // stride + 1
    W_out = (W + 2 * pad - K) // stride + 1
    Wp = W + 2 * pad
    out_dtype = x_nhwc.dtype
    # Pass compute_dtype=jnp.bfloat16 for the v6e/v7x MXU path (f32 accum is
    # kept either way). Default f32 keeps the numeric check in __main__ tight.
    cdtype = jnp.dtype(compute_dtype) if compute_dtype is not None \
        else jnp.dtype(x_nhwc.dtype)
    itemsize = cdtype.itemsize

    depthwise = (groups == Cin) and (Cout == Cin)

    if depthwise:
        Cin_pad = Cout_pad = _round_up(Cin, LANE)
        w = jnp.transpose(w_oihw[:, 0, :, :], (1, 2, 0))          # (K, K, C)
        w = jnp.pad(w, ((0, 0), (0, 0), (0, Cin_pad - Cin))).astype(cdtype)
        b = jnp.pad(bias, (0, Cout_pad - Cout)).astype(jnp.float32)
        b = b.reshape(1, Cout_pad)
    else:
        if groups > 1:
            # TODO(synk): grouped conv uses an exact block-diagonal dense
            # expansion; a per-group grid axis would avoid multiplying zeros.
            cout_g = Cout // groups
            w_dense = jnp.zeros((Cout, Cin, K, K), w_oihw.dtype)
            for g in range(groups):
                w_dense = w_dense.at[g * cout_g:(g + 1) * cout_g,
                                     g * cin_g:(g + 1) * cin_g].set(
                    w_oihw[g * cout_g:(g + 1) * cout_g])
            w_oihw = w_dense
        Cin_pad = _round_up(Cin, LANE)
        Cout_pad = _round_up(Cout, LANE)
        w = jnp.transpose(w_oihw, (2, 3, 1, 0))                    # (K,K,Cin,Cout)
        w = jnp.pad(w, ((0, 0), (0, 0),
                        (0, Cin_pad - Cin), (0, Cout_pad - Cout)))
        # Fold kw into the contraction: row index = kw*Cin_pad + ci.
        w = w.reshape(K, K * Cin_pad, Cout_pad).astype(cdtype)
        b = jnp.pad(bias, (0, Cout_pad - Cout)).astype(jnp.float32)
        b = b.reshape(1, Cout_pad)

    budget = _vmem_budget_bytes()
    if row_block is None:
        row_block = _pick_row_block(H_out, W_out, Wp, Cin_pad, Cout_pad, K,
                                    stride, itemsize, depthwise, budget)
    rowblk = max(1, min(int(row_block), H_out))
    RB = -(-H_out // rowblk)            # ceil
    H_out_pad = RB * rowblk
    in_rows = (rowblk - 1) * stride + K

    # Lane-dense channel padding + spatial halo in one pad pass; bottom rows
    # get extra zeros so the last row-block's halo window stays in bounds.
    # TODO(synk): replace with an in-kernel edge-masked DMA to drop this pass.
    Hp_base = H + 2 * pad
    Hp_needed = (H_out_pad - 1) * stride + K
    extra_h = max(0, Hp_needed - Hp_base)
    xp = jnp.pad(x_nhwc, ((0, 0), (pad, pad + extra_h), (pad, pad),
                          (0, Cin_pad - Cin))).astype(cdtype)

    if depthwise:
        kernel = partial(_conv_dw_kernel, K=K, stride=stride, rowblk=rowblk,
                         W_out=W_out, in_rows=in_rows)
        w_spec = pl.BlockSpec((K, K, Cin_pad), lambda n, r: (0, 0, 0))
        out_shape = jax.ShapeDtypeStruct((N, H_out_pad, W_out, Cout_pad),
                                         out_dtype)
        out_spec = pl.BlockSpec((1, rowblk, W_out, Cout_pad),
                                lambda n, r: (n, r, 0, 0))
        acc_scratch = pltpu.VMEM((rowblk, W_out, Cout_pad), jnp.float32)
    else:
        kernel = partial(_conv_mxu_kernel, K=K, stride=stride, rowblk=rowblk,
                         W_out=W_out, in_rows=in_rows)
        w_spec = pl.BlockSpec((K, K * Cin_pad, Cout_pad),
                              lambda n, r: (0, 0, 0))
        # Flat (rows*W_out, Cout) output block: lane-dense, no in-kernel reshape.
        out_shape = jax.ShapeDtypeStruct((N, H_out_pad * W_out, Cout_pad),
                                         out_dtype)
        out_spec = pl.BlockSpec((1, rowblk * W_out, Cout_pad),
                                lambda n, r: (n, r, 0))
        acc_scratch = pltpu.VMEM((rowblk * W_out, Cout_pad), jnp.float32)

    out = pl.pallas_call(
        kernel,
        out_shape=out_shape,
        grid_spec=pltpu.PrefetchScalarGridSpec(
            num_scalar_prefetch=0,
            grid=(N, RB),
            in_specs=[
                pl.BlockSpec(memory_space=pl.ANY),   # x stays in HBM; halo DMA
                w_spec,                              # constant index -> resident
                pl.BlockSpec((1, Cout_pad), lambda n, r: (0, 0)),
            ],
            out_specs=out_spec,
            scratch_shapes=[
                pltpu.VMEM((in_rows, Wp, Cin_pad), cdtype),   # halo window
                pltpu.SemaphoreType.DMA,
                acc_scratch,
            ],
        ),
        compiler_params=pltpu.CompilerParams(
            dimension_semantics=("parallel", "arbitrary"),
            vmem_limit_bytes=budget,
        ),
    )(xp, w, b)

    if depthwise:
        return out[:, :H_out, :, :Cout]
    out = out.reshape(N, H_out_pad, W_out, Cout_pad)
    return out[:, :H_out, :, :Cout]


# ----------------------------------------------------------------------------
# Parameter glue: deterministic init + BN fusion (mirrors _fuse_bn / get_kernel_bias)
# ----------------------------------------------------------------------------
def _fuse_bn(weight_oihw, gamma, beta, mean, var, eps=1e-5):
    std = jnp.sqrt(var + eps)
    t = (gamma / std).reshape(-1, 1, 1, 1)
    return weight_oihw * t, beta - mean * gamma / std


def make_params(key, in_channels, out_channels, kernel_size, small_kernel, groups):
    cin_g = in_channels // groups
    ks = jax.random.split(key, 12)

    def bn_params(k0, k1, k2, k3, c):
        gamma = 0.5 + jax.random.uniform(k0, (c,), jnp.float32)
        beta = 0.1 * jax.random.normal(k1, (c,), jnp.float32)
        mean = 0.1 * jax.random.normal(k2, (c,), jnp.float32)
        var = 0.5 + jax.random.uniform(k3, (c,), jnp.float32)
        return gamma, beta, mean, var

    w_large = 0.1 * jax.random.normal(
        ks[0], (out_channels, cin_g, kernel_size, kernel_size), jnp.float32)
    bn_large = bn_params(ks[1], ks[2], ks[3], ks[4], out_channels)

    w_small = 0.1 * jax.random.normal(
        ks[5], (out_channels, cin_g, small_kernel, small_kernel), jnp.float32)
    bn_small = bn_params(ks[6], ks[7], ks[8], ks[9], out_channels)

    return dict(w_large=w_large, bn_large=bn_large,
                w_small=w_small, bn_small=bn_small)


def reparam_large_kernel_conv_forward(x_nchw, params, *, kernel_size,
                                      small_kernel, stride, groups,
                                      compute_dtype=None, row_block=None):
    # Fuse each conv+BN, then fuse the small branch into the large one by
    # zero-padding its kernel (exactly get_kernel_bias()).
    kL, bL = _fuse_bn(params["w_large"], *params["bn_large"])
    kS, bS = _fuse_bn(params["w_small"], *params["bn_small"])
    p = (kernel_size - small_kernel) // 2
    eq_k = kL + jnp.pad(kS, ((0, 0), (0, 0), (p, p), (p, p)))
    eq_b = bL + bS

    x_nhwc = jnp.transpose(x_nchw, (0, 2, 3, 1))
    out_nhwc = conv2d_pallas(x_nhwc, eq_k, eq_b, stride=stride, groups=groups,
                             compute_dtype=compute_dtype, row_block=row_block)
    # self.activation(out) result is discarded in the PyTorch forward -> no GELU.
    return jnp.transpose(out_nhwc, (0, 3, 1, 2))  # back to NCHW


# ----------------------------------------------------------------------------
# main
# ----------------------------------------------------------------------------
if __name__ == "__main__":
    def run_case(key, *, N, C_in, C_out, H, W, K, k_small, stride, groups,
                 compute_dtype=None, row_block=None, rtol=1e-4, atol=1e-4):
        k_x, k_p = jax.random.split(key)
        x = jax.random.normal(k_x, (N, C_in, H, W), jnp.float32)
        params = make_params(k_p, C_in, C_out, K, k_small, groups)

        out = reparam_large_kernel_conv_forward(
            x, params, kernel_size=K, small_kernel=k_small,
            stride=stride, groups=groups, compute_dtype=compute_dtype,
            row_block=row_block)
        out = jax.block_until_ready(out)

        # Pure-JAX reference (lax conv) for correctness.
        kL, bL = _fuse_bn(params["w_large"], *params["bn_large"])
        kS, bS = _fuse_bn(params["w_small"], *params["bn_small"])
        p = (K - k_small) // 2
        eq_k = kL + jnp.pad(kS, ((0, 0), (0, 0), (p, p), (p, p)))
        eq_b = bL + bS
        x_ref, k_ref = x, eq_k
        if compute_dtype is not None:           # match the bf16-rounded inputs
            x_ref = x_ref.astype(compute_dtype).astype(jnp.float32)
            k_ref = k_ref.astype(compute_dtype).astype(jnp.float32)
        ref = jax.lax.conv_general_dilated(
            x_ref, k_ref, window_strides=(stride, stride),
            padding=[(K // 2, K // 2)] * 2,
            dimension_numbers=("NCHW", "OIHW", "NCHW"),
            feature_group_count=groups) + eq_b.reshape(1, -1, 1, 1)

        H_out = (H + 2 * (K // 2) - K) // stride + 1
        W_out = (W + 2 * (K // 2) - K) // stride + 1
        assert out.shape == (N, C_out, H_out, W_out), out.shape
        np.testing.assert_allclose(np.asarray(out), np.asarray(ref),
                                   rtol=rtol, atol=atol)

    root = jax.random.PRNGKey(0)
    k1, k2, k3 = jax.random.split(root, 3)

    # Dense (groups=1) -> MXU path; row_block=4 forces 4 row blocks per image
    # so the in-kernel halo DMA path is exercised.
    run_case(k1, N=2, C_in=4, C_out=8, H=16, W=16, K=5, k_small=3,
             stride=1, groups=1, row_block=4)
    # Depthwise (groups == C, RepLKNet's dominant case) -> VPU MAC path,
    # stride=2, heuristic row-block selection.
    run_case(k2, N=2, C_in=4, C_out=4, H=16, W=16, K=5, k_small=3,
             stride=2, groups=4)
    # Dense bf16 compute (v6e/v7x MXU recommendation); H_out=18 is not a
    # multiple of the row block -> exercises the padded-rows path.
    run_case(k3, N=1, C_in=4, C_out=8, H=18, W=16, K=5, k_small=3,
             stride=1, groups=1, compute_dtype=jnp.bfloat16, row_block=8,
             rtol=2e-2, atol=2e-2)

    print("KERNEL_OK")
</pallas_src>

<mosaic_0001>
module attributes {stable_mosaic.version = 11 : i64} {
  func.func @_conv_mxu_kernel(%arg0: i32, %arg1: i32, %arg2: memref<2x20x20x128xf32, #tpu.memory_space<any>>, %arg3: memref<5x640x128xf32, #tpu.memory_space<vmem>>, %arg4: memref<1x128xf32, #tpu.memory_space<vmem>>, %arg5: memref<1x64x128xf32, #tpu.memory_space<vmem>>, %arg6: memref<8x20x128xf32, #tpu.memory_space<vmem>>, %arg7: memref<!tpu.dma_semaphore, #tpu.memory_space<semaphore_mem>>, %arg8: memref<64x128xf32, #tpu.memory_space<vmem>>) attributes {dimension_semantics = [#tpu.dimension_semantics<parallel>, #tpu.dimension_semantics<arbitrary>], iteration_bounds = array<i64: 2, 4>, scalar_prefetch = 0 : i64, scratch_operands = 3 : i64, tpu.core_type = #tpu.core_type<tc>, window_params = [{}, {pipeline_mode = #tpu.pipeline_mode<synchronous>, transform_indices = @transform_1, window_bounds = array<i64: 5, 640, 128>}, {pipeline_mode = #tpu.pipeline_mode<synchronous>, transform_indices = @transform_2, window_bounds = array<i64: 1, 128>}, {transform_indices = @transform_3, window_bounds = array<i64: 1, 64, 128>}]} {
    %c4_i32 = arith.constant 4 : i32
    %0 = arith.muli %arg1, %c4_i32 : i32
    %c0_i32 = arith.constant 0 : i32
    %c0_i32_0 = arith.constant 0 : i32
    %1 = tpu.memref_slice %arg2[%arg0, %0, %c0_i32, %c0_i32_0] : memref<2x20x20x128xf32, #tpu.memory_space<any>> -> memref<1x8x20x128xf32, #tpu.memory_space<any>>
    %2 = tpu.memref_squeeze %1 : memref<1x8x20x128xf32, #tpu.memory_space<any>> -> memref<8x20x128xf32, #tpu.memory_space<any>>
    tpu.enqueue_dma source(%2 : memref<8x20x128xf32, #tpu.memory_space<any>>) target(%arg6 : memref<8x20x128xf32, #tpu.memory_space<vmem>>) target_semaphore(%arg7 : memref<!tpu.dma_semaphore, #tpu.memory_space<semaphore_mem>>)
    %c0_i32_1 = arith.constant 0 : i32
    %c0_i32_2 = arith.constant 0 : i32
    %3 = tpu.memref_slice %arg2[%arg0, %0, %c0_i32_1, %c0_i32_2] : memref<2x20x20x128xf32, #tpu.memory_space<any>> -> memref<1x8x20x128xf32, #tpu.memory_space<any>>
    %4 = tpu.memref_squeeze %3 : memref<1x8x20x128xf32, #tpu.memory_space<any>> -> memref<8x20x128xf32, #tpu.memory_space<any>>
    tpu.wait_dma2 semaphore(%arg7 : memref<!tpu.dma_semaphore, #tpu.memory_space<semaphore_mem>>) src(%4 : memref<8x20x128xf32, #tpu.memory_space<any>>) dst(%arg6 : memref<8x20x128xf32, #tpu.memory_space<vmem>>)
    %c0 = arith.constant 0 : index
    %c0_3 = arith.constant 0 : index
    %c0_4 = arith.constant 0 : index
    %5 = vector.load %arg6[%c0, %c0_3, %c0_4] : memref<8x20x128xf32, #tpu.memory_space<vmem>>, vector<4x20x128xf32>
    %6 = vector.extract_strided_slice %5 {offsets = [0, 0, 0], sizes = [4, 16, 128], strides = [1, 1, 1]} : vector<4x20x128xf32> to vector<4x16x128xf32>
    %7 = vector.extract_strided_slice %5 {offsets = [0, 1, 0], sizes = [4, 16, 128], strides = [1, 1, 1]} : vector<4x20x128xf32> to vector<4x16x128xf32>
    %8 = vector.extract_strided_slice %5 {offsets = [0, 2, 0], sizes = [4, 16, 128], strides = [1, 1, 1]} : vector<4x20x128xf32> to vector<4x16x128xf32>
    %9 = vector.extract_strided_slice %5 {offsets = [0, 3, 0], sizes = [4, 16, 128], strides = [1, 1, 1]} : vector<4x20x128xf32> to vector<4x16x128xf32>
    %10 = vector.extract_strided_slice %5 {offsets = [0, 4, 0], sizes = [4, 16, 128], strides = [1, 1, 1]} : vector<4x20x128xf32> to vector<4x16x128xf32>
    %11 = tpu.concatenate %6, %7, %8, %9, %10 in 2 : vector<4x16x128xf32>, vector<4x16x128xf32>, vector<4x16x128xf32>, vector<4x16x128xf32>, vector<4x16x128xf32> -> vector<4x16x640xf32>
    %12 = vector.shape_cast %11 : vector<4x16x640xf32> to vector<64x640xf32>
    %c0_5 = arith.constant 0 : index
    %c0_6 = arith.constant 0 : index
    %c0_7 = arith.constant 0 : index
    %13 = vector.load %arg3[%c0_5, %c0_6, %c0_7] : memref<5x640x128xf32, #tpu.memory_space<vmem>>, vector<1x640x128xf32>
    %14 = vector.shape_cast %13 : vector<1x640x128xf32> to vector<640x128xf32>
    %cst = arith.constant dense<0.000000e+00> : vector<64x128xf32>
    %15 = tpu.matmul %12, %14, %cst {dimension_numbers = #tpu.dot_dimension_numbers<[1], [0], [0], [1], [0, 0, 1, 1], [], []>} : vector<64x640xf32>, vector<640x128xf32>, vector<64x128xf32> -> vector<64x128xf32>
    %c0_8 = arith.constant 0 : index
    %c0_9 = arith.constant 0 : index
    %16 = vector.load %arg4[%c0_8, %c0_9] : memref<1x128xf32, #tpu.memory_space<vmem>>, vector<1x128xf32>
    %17 = vector.broadcast %16 : vector<1x128xf32> to vector<64x128xf32>
    %18 = arith.addf %15, %17 : vector<64x128xf32>
    %c0_10 = arith.constant 0 : index
    %c0_11 = arith.constant 0 : index
    %19 = vector.load %arg8[%c0_10, %c0_11] : memref<64x128xf32, #tpu.memory_space<vmem>>, vector<64x128xf32>
    tpu.vector_store %arg8[%c0_10, %c0_11], %18 {strides = array<i32>} : memref<64x128xf32, #tpu.memory_space<vmem>>, vector<64x128xf32>,
    %c1 = arith.constant 1 : index
    %c0_12 = arith.constant 0 : index
    %c0_13 = arith.constant 0 : index
    %20 = vector.load %arg6[%c1, %c0_12, %c0_13] : memref<8x20x128xf32, #tpu.memory_space<vmem>>, vector<4x20x128xf32>
    %21 = vector.extract_strided_slice %20 {offsets = [0, 0, 0], sizes = [4, 16, 128], strides = [1, 1, 1]} : vector<4x20x128xf32> to vector<4x16x128xf32>
    %22 = vector.extract_strided_slice %20 {offsets = [0, 1, 0], sizes = [4, 16, 128], strides = [1, 1, 1]} : vector<4x20x128xf32> to vector<4x16x128xf32>
    %23 = vector.extract_strided_slice %20 {offsets = [0, 2, 0], sizes = [4, 16, 128], strides = [1, 1, 1]} : vector<4x20x128xf32> to vector<4x16x128xf32>
    %24 = vector.extract_strided_slice %20 {offsets = [0, 3, 0], sizes = [4, 16, 128], strides = [1, 1, 1]} : vector<4x20x128xf32> to vector<4x16x128xf32>
    %25 = vector.extract_strided_slice %20 {offsets = [0, 4, 0], sizes = [4, 16, 128], strides = [1, 1, 1]} : vector<4x20x128xf32> to vector<4x16x128xf32>
    %26 = tpu.concatenate %21, %22, %23, %24, %25 in 2 : vector<4x16x128xf32>, vector<4x16x128xf32>, vector<4x16x128xf32>, vector<4x16x128xf32>, vector<4x16x128xf32> -> vector<4x16x640xf32>
    %27 = vector.shape_cast %26 : vector<4x16x640xf32> to vector<64x640xf32>
    %c1_14 = arith.constant 1 : index
    %c0_15 = arith.constant 0 : index
    %c0_16 = arith.constant 0 : index
    %28 = vector.load %arg3[%c1_14, %c0_15, %c0_16] : memref<5x640x128xf32, #tpu.memory_space<vmem>>, vector<1x640x128xf32>
    %29 = vector.shape_cast %28 : vector<1x640x128xf32> to vector<640x128xf32>
    %cst_17 = arith.constant dense<0.000000e+00> : vector<64x128xf32>
    %30 = tpu.matmul %27, %29, %cst_17 {dimension_numbers = #tpu.dot_dimension_numbers<[1], [0], [0], [1], [0, 0, 1, 1], [], []>} : vector<64x640xf32>, vector<640x128xf32>, vector<64x128xf32> -> vector<64x128xf32>
    %c0_18 = arith.constant 0 : index
    %c0_19 = arith.constant 0 : index
    %31 = vector.load %arg8[%c0_18, %c0_19] : memref<64x128xf32, #tpu.memory_space<vmem>>, vector<64x128xf32>
    %32 = arith.addf %31, %30 : vector<64x128xf32>
    %c0_20 = arith.constant 0 : index
    %c0_21 = arith.constant 0 : index
    %33 = vector.load %arg8[%c0_20, %c0_21] : memref<64x128xf32, #tpu.memory_space<vmem>>, vector<64x128xf32>
    tpu.vector_store %arg8[%c0_20, %c0_21], %32 {strides = array<i32>} : memref<64x128xf32, #tpu.memory_space<vmem>>, vector<64x128xf32>,
    %c2 = arith.constant 2 : index
    %c0_22 = arith.constant 0 : index
    %c0_23 = arith.constant 0 : index
    %34 = vector.load %arg6[%c2, %c0_22, %c0_23] : memref<8x20x128xf32, #tpu.memory_space<vmem>>, vector<4x20x128xf32>
    %35 = vector.extract_strided_slice %34 {offsets = [0, 0, 0], sizes = [4, 16, 128], strides = [1, 1, 1]} : vector<4x20x128xf32> to vector<4x16x128xf32>
    %36 = vector.extract_strided_slice %34 {offsets = [0, 1, 0], sizes = [4, 16, 128], strides = [1, 1, 1]} : vector<4x20x128xf32> to vector<4x16x128xf32>
    %37 = vector.extract_strided_slice %34 {offsets = [0, 2, 0], sizes = [4, 16, 128], strides = [1, 1, 1]} : vector<4x20x128xf32> to vector<4x16x128xf32>
    %38 = vector.extract_strided_slice %34 {offsets = [0, 3, 0], sizes = [4, 16, 128], strides = [1, 1, 1]} : vector<4x20x128xf32> to vector<4x16x128xf32>
    %39 = vector.extract_strided_slice %34 {offsets = [0, 4, 0], sizes = [4, 16, 128], strides = [1, 1, 1]} : vector<4x20x128xf32> to vector<4x16x128xf32>
    %40 = tpu.concatenate %35, %36, %37, %38, %39 in 2 : vector<4x16x128xf32>, vector<4x16x128xf32>, vector<4x16x128xf32>, vector<4x16x128xf32>, vector<4x16x128xf32> -> vector<4x16x640xf32>
    %41 = vector.shape_cast %40 : vector<4x16x640xf32> to vector<64x640xf32>
    %c2_24 = arith.constant 2 : index
    %c0_25 = arith.constant 0 : index
    %c0_26 = arith.constant 0 : index
    %42 = vector.load %arg3[%c2_24, %c0_25, %c0_26] : memref<5x640x128xf32, #tpu.memory_space<vmem>>, vector<1x640x128xf32>
    %43 = vector.shape_cast %42 : vector<1x640x128xf32> to vector<640x128xf32>
    %cst_27 = arith.constant dense<0.000000e+00> : vector<64x128xf32>
    %44 = tpu.matmul %41, %43, %cst_27 {dimension_numbers = #tpu.dot_dimension_numbers<[1], [0], [0], [1], [0, 0, 1, 1], [], []>} : vector<64x640xf32>, vector<640x128xf32>, vector<64x128xf32> -> vector<64x128xf32>
    %c0_28 = arith.constant 0 : index
    %c0_29 = arith.constant 0 : index
    %45 = vector.load %arg8[%c0_28, %c0_29] : memref<64x128xf32, #tpu.memory_space<vmem>>, vector<64x128xf32>
    %46 = arith.addf %45, %44 : vector<64x128xf32>
    %c0_30 = arith.constant 0 : index
    %c0_31 = arith.constant 0 : index
    %47 = vector.load %arg8[%c0_30, %c0_31] : memref<64x128xf32, #tpu.memory_space<vmem>>, vector<64x128xf32>
    tpu.vector_store %arg8[%c0_30, %c0_31], %46 {strides = array<i32>} : memref<64x128xf32, #tpu.memory_space<vmem>>, vector<64x128xf32>,
    %c3 = arith.constant 3 : index
    %c0_32 = arith.constant 0 : index
    %c0_33 = arith.constant 0 : index
    %48 = vector.load %arg6[%c3, %c0_32, %c0_33] : memref<8x20x128xf32, #tpu.memory_space<vmem>>, vector<4x20x128xf32>
    %49 = vector.extract_strided_slice %48 {offsets = [0, 0, 0], sizes = [4, 16, 128], strides = [1, 1, 1]} : vector<4x20x128xf32> to vector<4x16x128xf32>
    %50 = vector.extract_strided_slice %48 {offsets = [0, 1, 0], sizes = [4, 16, 128], strides = [1, 1, 1]} : vector<4x20x128xf32> to vector<4x16x128xf32>
    %51 = vector.extract_strided_slice %48 {offsets = [0, 2, 0], sizes = [4, 16, 128], strides = [1, 1, 1]} : vector<4x20x128xf32> to vector<4x16x128xf32>
    %52 = vector.extract_strided_slice %48 {offsets = [0, 3, 0], sizes = [4, 16, 128], strides = [1, 1, 1]} : vector<4x20x128xf32> to vector<4x16x128xf32>
    %53 = vector.extract_strided_slice %48 {offsets = [0, 4, 0], sizes = [4, 16, 128], strides = [1, 1, 1]} : vector<4x20x128xf32> to vector<4x16x128xf32>
    %54 = tpu.concatenate %49, %50, %51, %52, %53 in 2 : vector<4x16x128xf32>, vector<4x16x128xf32>, vector<4x16x128xf32>, vector<4x16x128xf32>, vector<4x16x128xf32> -> vector<4x16x640xf32>
    %55 = vector.shape_cast %54 : vector<4x16x640xf32> to vector<64x640xf32>
    %c3_34 = arith.constant 3 : index
    %c0_35 = arith.constant 0 : index
    %c0_36 = arith.constant 0 : index
    %56 = vector.load %arg3[%c3_34, %c0_35, %c0_36] : memref<5x640x128xf32, #tpu.memory_space<vmem>>, vector<1x640x128xf32>
    %57 = vector.shape_cast %56 : vector<1x640x128xf32> to vector<640x128xf32>
    %cst_37 = arith.constant dense<0.000000e+00> : vector<64x128xf32>
    %58 = tpu.matmul %55, %57, %cst_37 {dimension_numbers = #tpu.dot_dimension_numbers<[1], [0], [0], [1], [0, 0, 1, 1], [], []>} : vector<64x640xf32>, vector<640x128xf32>, vector<64x128xf32> -> vector<64x128xf32>
    %c0_38 = arith.constant 0 : index
    %c0_39 = arith.constant 0 : index
    %59 = vector.load %arg8[%c0_38, %c0_39] : memref<64x128xf32, #tpu.memory_space<vmem>>, vector<64x128xf32>
    %60 = arith.addf %59, %58 : vector<64x128xf32>
    %c0_40 = arith.constant 0 : index
    %c0_41 = arith.constant 0 : index
    %61 = vector.load %arg8[%c0_40, %c0_41] : memref<64x128xf32, #tpu.memory_space<vmem>>, vector<64x128xf32>
    tpu.vector_store %arg8[%c0_40, %c0_41], %60 {strides = array<i32>} : memref<64x128xf32, #tpu.memory_space<vmem>>, vector<64x128xf32>,
    %c4 = arith.constant 4 : index
    %c0_42 = arith.constant 0 : index
    %c0_43 = arith.constant 0 : index
    %62 = vector.load %arg6[%c4, %c0_42, %c0_43] : memref<8x20x128xf32, #tpu.memory_space<vmem>>, vector<4x20x128xf32>
    %63 = vector.extract_strided_slice %62 {offsets = [0, 0, 0], sizes = [4, 16, 128], strides = [1, 1, 1]} : vector<4x20x128xf32> to vector<4x16x128xf32>
    %64 = vector.extract_strided_slice %62 {offsets = [0, 1, 0], sizes = [4, 16, 128], strides = [1, 1, 1]} : vector<4x20x128xf32> to vector<4x16x128xf32>
    %65 = vector.extract_strided_slice %62 {offsets = [0, 2, 0], sizes = [4, 16, 128], strides = [1, 1, 1]} : vector<4x20x128xf32> to vector<4x16x128xf32>
    %66 = vector.extract_strided_slice %62 {offsets = [0, 3, 0], sizes = [4, 16, 128], strides = [1, 1, 1]} : vector<4x20x128xf32> to vector<4x16x128xf32>
    %67 = vector.extract_strided_slice %62 {offsets = [0, 4, 0], sizes = [4, 16, 128], strides = [1, 1, 1]} : vector<4x20x128xf32> to vector<4x16x128xf32>
    %68 = tpu.concatenate %63, %64, %65, %66, %67 in 2 : vector<4x16x128xf32>, vector<4x16x128xf32>, vector<4x16x128xf32>, vector<4x16x128xf32>, vector<4x16x128xf32> -> vector<4x16x640xf32>
    %69 = vector.shape_cast %68 : vector<4x16x640xf32> to vector<64x640xf32>
    %c4_44 = arith.constant 4 : index
    %c0_45 = arith.constant 0 : index
    %c0_46 = arith.constant 0 : index
    %70 = vector.load %arg3[%c4_44, %c0_45, %c0_46] : memref<5x640x128xf32, #tpu.memory_space<vmem>>, vector<1x640x128xf32>
    %71 = vector.shape_cast %70 : vector<1x640x128xf32> to vector<640x128xf32>
    %cst_47 = arith.constant dense<0.000000e+00> : vector<64x128xf32>
    %72 = tpu.matmul %69, %71, %cst_47 {dimension_numbers = #tpu.dot_dimension_numbers<[1], [0], [0], [1], [0, 0, 1, 1], [], []>} : vector<64x640xf32>, vector<640x128xf32>, vector<64x128xf32> -> vector<64x128xf32>
    %c0_48 = arith.constant 0 : index
    %c0_49 = arith.constant 0 : index
    %73 = vector.load %arg8[%c0_48, %c0_49] : memref<64x128xf32, #tpu.memory_space<vmem>>, vector<64x128xf32>
    %74 = arith.addf %73, %72 : vector<64x128xf32>
    %c0_50 = arith.constant 0 : index
    %c0_51 = arith.constant 0 : index
    %75 = vector.load %arg8[%c0_50, %c0_51] : memref<64x128xf32, #tpu.memory_space<vmem>>, vector<64x128xf32>
    tpu.vector_store %arg8[%c0_50, %c0_51], %74 {strides = array<i32>} : memref<64x128xf32, #tpu.memory_space<vmem>>, vector<64x128xf32>,
    %c0_52 = arith.constant 0 : index
    %c0_53 = arith.constant 0 : index
    %76 = vector.load %arg8[%c0_52, %c0_53] : memref<64x128xf32, #tpu.memory_space<vmem>>, vector<64x128xf32>
    %c0_54 = arith.constant 0 : index
    %c0_55 = arith.constant 0 : index
    %c0_56 = arith.constant 0 : index
    %77 = vector.load %arg5[%c0_54, %c0_55, %c0_56] : memref<1x64x128xf32, #tpu.memory_space<vmem>>, vector<1x64x128xf32>
    %78 = vector.shape_cast %77 : vector<1x64x128xf32> to vector<64x128xf32>
    %79 = vector.shape_cast %76 : vector<64x128xf32> to vector<1x64x128xf32>
    tpu.vector_store %arg5[%c0_54, %c0_55, %c0_56], %79 {strides = array<i32>} : memref<1x64x128xf32, #tpu.memory_space<vmem>>, vector<1x64x128xf32>,
    return
  }
  func.func @transform_1(%arg0: i32, %arg1: i32) -> (i32, i32, i32) {
    %c0_i32 = arith.constant 0 : i32
    %c0_i32_0 = arith.constant 0 : i32
    %c0_i32_1 = arith.constant 0 : i32
    %c0_i32_2 = arith.constant 0 : i32
    return %c0_i32, %c0_i32_0, %c0_i32_1 : i32, i32, i32
  }
  func.func @transform_2(%arg0: i32, %arg1: i32) -> (i32, i32) {
    %c0_i32 = arith.constant 0 : i32
    %c0_i32_0 = arith.constant 0 : i32
    %c0_i32_1 = arith.constant 0 : i32
    return %c0_i32, %c0_i32_0 : i32, i32
  }
  func.func @transform_3(%arg0: i32, %arg1: i32) -> (i32, i32, i32) {
    %c0_i32 = arith.constant 0 : i32
    %c0_i32_0 = arith.constant 0 : i32
    return %arg0, %arg1, %c0_i32 : i32, i32, i32
  }
}

</mosaic_0001>

<llo_original>
// kernel: tpu_custom_call.1
$region0: #{tpu_custom_call.1}
  #allocation0 [shape = 'u32[]', space=smem, size = 0x4, offset = 0x4, fixed_abs, tag = 'smem constant byte address 0x4 - core index']
  #allocation1 [shape = 'u32[144,128]{1,0:T(1,128)}', space=vmem, size = 0x12000, scoped, tag = 'internal scratch']
  #allocation2 [shape = 'f32[8,20,128]{2,1,0:T(8,128)}', space=vmem, size = 0x18000, scoped, tag = 'scratch operand']
  #allocation3 [shape = 's32[1]{0}', space=sflag, size = 0x4, scoped, tag = 'scratch operand']
  #allocation4 [shape = 'f32[64,128]{1,0:T(8,128)}', space=vmem, size = 0x8000, scoped, tag = 'scratch operand']
  #allocation11 [shape = 's32[]', space=sflag, size = 0x4, offset = 0, fixed_abs, tag = 'sflag constant byte address 0x0 - dummy sync flag']
  %s0 = inlined_call_operand.vmem [shape: f32[2,20,20,128], index: 0, kind: input, shape index: {}]
  %s1 = inlined_call_operand.hbm [shape: f32[5,640,128], index: 1, kind: input, shape index: {}]
  %s2 = inlined_call_operand.hbm [shape: f32[1,128], index: 2, kind: input, shape index: {}]
  %s3 = inlined_call_operand.hbm [shape: f32[2,256,128], index: 3, kind: output, shape index: {}]
  %s4 = sld [smem:[#allocation0]]
  $region86: #{tpu_custom_call.1} parent=0
    _
  %s6 = ssub.s32 1, %s4
  %s7 = scalar_select 0, %s6, %s4
  $region1: #{tpu_custom_call.1} parent=0
    #allocation5 [shape = 'u8[1638400]{0}', space=vmem, size = 0x190000, scoped, tag = 'input window, operand 1, single buffered']
    #allocation6 [shape = 's32[2]{0}', space=sflag, size = 0x8, scoped, tag = 'scoped memory for tpu_custom_call.1']
    #allocation7 [shape = 's32[2]{0}', space=sflag, size = 0x8, scoped, tag = 'scoped memory for tpu_custom_call.1']
    #allocation8 [shape = 'u8[512]{0}', space=vmem, size = 0x400, scoped, tag = 'input window, operand 2, single buffered']
    #allocation9 [shape = 's32[1]{0}', space=sflag, size = 0x4, scoped, tag = 'scoped memory for tpu_custom_call.1']
    #allocation10 [shape = 'u8[65536]{0}', space=vmem, size = 0x10000, scoped, tag = 'output window, operand 0']
    %8 = vsyncpa [#allocation6], 0
    %9 = vsyncpa [#allocation9], 0
    %10 = vsyncpa [#allocation7], 0
    %s11 = scalar_lea.sflag [#allocation7], 1
    %12 = vsyncpa %s11, 0
    loop: start=0, step=1, limit=10
    $region2: #{tpu_custom_call.1} parent=1 // loop_pre_header
      _
    $region3: #{tpu_custom_call.1} parent=1 // loop_header
      %s14 = sphi 0, %s18
      %p15 = scmp.ge.s32.totalorder %s14, 10
      %s21 = sphi 0, %s33
      %s22 = sphi 0, %s29
      %s23 = sphi 0, %s21
      %s24 = sphi 0, %s22
      %s25 = sphi 0, %s23
      %s26 = sphi 0, %s24
      %s34 = sphi 0, %s34
      %s36 = sphi 0, %s34
      %s37 = sphi 0, %s36
      %s51 = sphi 0, %s37
      %s55 = sphi 0, %s55
      %s57 = sphi 0, %s55
      %s58 = sphi 0, %s57
      %s72 = sphi 0, %s58
      %s80 = sphi 0, %s82
      %s83 = sphi 0, %s80
      %s84 = sphi 0, %s83
      %s100 = sphi 0, %s84
    $region4: #{tpu_custom_call.1} parent=1 // loop_header_branch
      %17 = sbr.rel (%p15) target = $region8
    $region5: #{tpu_custom_call.1} parent=1 // loop_body
      %s19 = ssub.s32 %s14, 1
      %s20 = ssub.s32 %s14, 2
      %s27 = sadd.s32 1, %s22
      %p28 = scmp.ge.s32.totalorder %s27, 4
      %s29 = scalar_select %p28, 0, %s27
      %s30 = sadd.s32 1, %s21
      %s31 = scalar_select %p28, %s30, %s21
      %p32 = scmp.ge.s32.totalorder %s31, 2
      %s33 = scalar_select %p32, 0, %s31
      %s35 = sadd.s32 %s34, 1
      %p38 = scmp.eq.s32.totalorder %s14, 7
      %p39 = scmp.ne.s32.totalorder %s34, %s36
      %p40 = scmp.eq.s32.totalorder %s14, 0
      %p41 = por %p39, %p40
      %p42 = scmp.ne.s32.totalorder %s34, %s36
      %p43 = scmp.eq.s32.totalorder %s19, 7
      %p44 = por %p42, %p43
      %p45 = scmp.ne.s32.totalorder %s36, %s37
      %p46 = scmp.eq.s32.totalorder %s19, 0
      %p47 = por %p45, %p46
      %p48 = scmp.ne.s32.totalorder %s36, %s37
      %p49 = scmp.eq.s32.totalorder %s20, 7
      %p50 = por %p48, %p49
      %p52 = scmp.ne.s32.totalorder %s37, %s51
      %p53 = scmp.eq.s32.totalorder %s20, 0
      %p54 = por %p52, %p53
      %s56 = sadd.s32 %s55, 1
      %p59 = scmp.eq.s32.totalorder %s14, 7
      %p60 = scmp.ne.s32.totalorder %s55, %s57
      %p61 = scmp.eq.s32.totalorder %s14, 0
      %p62 = por %p60, %p61
      %p63 = scmp.ne.s32.totalorder %s55, %s57
      %p64 = scmp.eq.s32.totalorder %s19, 7
      %p65 = por %p63, %p64
      %p66 = scmp.ne.s32.totalorder %s57, %s58
      %p67 = scmp.eq.s32.totalorder %s19, 0
      %p68 = por %p66, %p67
      %p69 = scmp.ne.s32.totalorder %s57, %s58
      %p70 = scmp.eq.s32.totalorder %s20, 7
      %p71 = por %p69, %p70
      %p73 = scmp.ne.s32.totalorder %s58, %s72
      %p74 = scmp.eq.s32.totalorder %s20, 0
      %p75 = por %p73, %p74
      %s76 = ssub.s32 %s21, %s33
      %s77 = ssub.s32 %s22, %s29
      %s78 = sor.u32 %s76, %s77
      %p79 = scmp.eq.s32.totalorder %s78, 0
      %s81 = sadd.s32 %s80, 1
      %s82 = scalar_select %p79, %s80, %s81
      %p85 = pneg %p79
      %p86 = scmp.eq.s32.totalorder %s14, 7
      %p87 = por %p85, %p86
      %p88 = scmp.ne.s32.totalorder %s80, %s83
      %p89 = scmp.eq.s32.totalorder %s14, 0
      %p90 = por %p88, %p89
      %p91 = scmp.ne.s32.totalorder %s80, %s83
      %p92 = scmp.eq.s32.totalorder %s19, 7
      %p93 = por %p91, %p92
      %p94 = scmp.ne.s32.totalorder %s83, %s84
      %p95 = scmp.eq.s32.totalorder %s19, 0
      %p96 = por %p94, %p95
      %p97 = scmp.ne.s32.totalorder %s83, %s84
      %p98 = scmp.eq.s32.totalorder %s20, 7
      %p99 = por %p97, %p98
      %p101 = scmp.ne.s32.totalorder %s84, %s100
      %p102 = scmp.eq.s32.totalorder %s20, 0
      %p103 = por %p101, %p102
      %p104 = scmp.le.s32.totalorder 1, %s14
      %p105 = scmp.lt.s32.totalorder %s14, 9
      %p106 = pnand %p104, %p105
      %p107 = pneg %p106
      // Predicated region
      $region9: #{tpu_custom_call.1} parent=5 // pred_check
        _
      $region10: #{tpu_custom_call.1} parent=5 // pred_check_branch
        %109 = sbr.rel (%p106) target = $region12
      $region11: #{tpu_custom_call.1} parent=5 // pred_region
        %s110 = ssub.s32 %s14, 1
        // Predicated region
        $region13: #{tpu_custom_call.1} parent=11 // pred_check
          %p111 = pneg %p47
        $region14: #{tpu_custom_call.1} parent=11 // pred_check_branch
          %113 = sbr.rel (%p111) target = $region16
        $region15: #{tpu_custom_call.1} parent=11 // pred_region
          %s115 = ssub.s32 51200, 51200
          %116 = vsyncadd [#allocation6], %s115
          %s117 = sshll.u32 [#allocation5], 4
          %s118 = int_to_ptr.vmem [resolvable:$true] %s117
          %123 = dma.hbm_to_vmem [thread:$0]  %s1, 51200, %s118, [#allocation6], 128, 128, 8
        $region16: #{tpu_custom_call.1} parent=11 // pred_fallthru
          _
        // Predicated region
        $region17: #{tpu_custom_call.1} parent=11 // pred_check
          %p124 = pneg %p68
        $region18: #{tpu_custom_call.1} parent=11 // pred_check_branch
          %126 = sbr.rel (%p124) target = $region20
        $region19: #{tpu_custom_call.1} parent=11 // pred_region
          %s128 = ssub.s32 16, 16
          %129 = vsyncadd [#allocation9], %s128
          %s131 = sshll.u32 [#allocation8], 4
          %s132 = int_to_ptr.vmem [resolvable:$true] %s131
          %134 = dma.hbm_to_vmem [thread:$0]  %s2, 16, %s132, [#allocation9]
        $region20: #{tpu_custom_call.1} parent=11 // pred_fallthru
          _
      $region12: #{tpu_custom_call.1} parent=5 // pred_fallthru
        _
      %p135 = scmp.lt.s32.totalorder %s14, 8
      // Predicated region
      $region21: #{tpu_custom_call.1} parent=5 // pred_check
        %p136 = pneg %p135
      $region22: #{tpu_custom_call.1} parent=5 // pred_check_branch
        %138 = sbr.rel (%p136) target = $region24
      $region23: #{tpu_custom_call.1} parent=5 // pred_region
        _
      $region24: #{tpu_custom_call.1} parent=5 // pred_fallthru
        _
      %p139 = scmp.le.s32.totalorder 1, %s14
      %p140 = scmp.lt.s32.totalorder %s14, 9
      %p141 = pnand %p139, %p140
      %p142 = pneg %p141
      // Predicated region
      $region25: #{tpu_custom_call.1} parent=5 // pred_check
        _
      $region26: #{tpu_custom_call.1} parent=5 // pred_check_branch
        %144 = sbr.rel (%p141) target = $region28
      $region27: #{tpu_custom_call.1} parent=5 // pred_region
        %s145 = ssub.s32 %s14, 1
        // Predicated region
        $region29: #{tpu_custom_call.1} parent=27 // pred_check
          %p146 = pneg %p47
        $region30: #{tpu_custom_call.1} parent=27 // pred_check_branch
          %148 = sbr.rel (%p146) target = $region32
        $region31: #{tpu_custom_call.1} parent=27 // pred_region
          %149 = dma.done [#allocation6], 51200
        $region32: #{tpu_custom_call.1} parent=27 // pred_fallthru
          _
        // Predicated region
        $region33: #{tpu_custom_call.1} parent=27 // pred_check
          %p150 = pneg %p68
        $region34: #{tpu_custom_call.1} parent=27 // pred_check_branch
          %152 = sbr.rel (%p150) target = $region36
        $region35: #{tpu_custom_call.1} parent=27 // pred_region
          %153 = dma.done [#allocation9], 16
        $region36: #{tpu_custom_call.1} parent=27 // pred_fallthru
          _
        %p154 = pneg %p47
        %p155 = pneg %p44
        %p156 = pneg %p68
        %p157 = pneg %p65
        %p158 = pneg %p96
        %p159 = pneg %p93
        %s160 = sand.u32 %s83, 1
        %s161 = scalar_lea.sflag [#allocation7], %s160
        %s162 = sand.u32 %s83, 1
        %s163 = smul.addr %s162, 64
        %s164 = scalar_lea.vmem [#allocation10], %s163
        %s165 = smul.u32 8, %s24
        %s166 = smul.u32 %s24, 4
        %s167 = smul.u32 %s166, 24
        %s168 = smul.u32 %s23, 480
        %s169 = sadd.s32 %s167, %s168
        %s170 = scalar_lea.vmem %s0, %s169
        %p172 = scmp.lt.u32.totalorder 20, 8
        %p173 = pneg %p172
        // Predicated region
        $region37: #{tpu_custom_call.1} parent=27 // pred_check
          _
        $region38: #{tpu_custom_call.1} parent=27 // pred_check_branch
          %175 = sbr.rel (%p172) target = $region40
        $region39: #{tpu_custom_call.1} parent=27 // pred_region
          %s204 = sand.u32 20, 7
          %p205 = scmp.eq.s32.totalorder %s204, 0
          %p206 = pneg %p205
          // Predicated region
          $region52: #{tpu_custom_call.1} parent=39 // pred_check
            _
          $region53: #{tpu_custom_call.1} parent=39 // pred_check_branch
            %208 = sbr.rel (%p205) target = $region55
          $region54: #{tpu_custom_call.1} parent=39 // pred_region
            %s209 = sand.u32 20, 7
            %s210 = ssub.s32 20, %s209
            %s211 = scalar_lea.vmem %s170, %s210
            %s212 = ssub.s32 20, %s209
            %s213 = scalar_lea.vmem [#allocation2], %s212
            loop: start=0, step=1, limit=1
            $region56: #{tpu_custom_call.1} parent=54 // loop_pre_header
              _
            $region57: #{tpu_custom_call.1} parent=54 // loop_header
              %s215 = sphi 0, %s219
              %p216 = scmp.ge.s32.totalorder %s215, 1
              %s220 = sphi %s170, %s170
              %s221 = sphi [#allocation2], [#allocation2]
            $region58: #{tpu_custom_call.1} parent=54 // loop_header_branch
              %218 = sbr.rel (%p216) target = $region62
            $region59: #{tpu_custom_call.1} parent=54 // loop_body
              %v222 = vld [vmem:[%s220] sm:$0xff]
              %223 = vst [vmem:[%s221] sm:$0xff] %v222
              %v224 = vld [vmem:[%s220 + $0x8] sm:$0xff]
              %225 = vst [vmem:[%s221 + $0x8] sm:$0xff] %v224
              %v226 = vld [vmem:[%s220 + $0x18] sm:$0xff]
              %227 = vst [vmem:[%s221 + $0x18] sm:$0xff] %v226
              %v228 = vld [vmem:[%s220 + $0x20] sm:$0xff]
              %229 = vst [vmem:[%s221 + $0x20] sm:$0xff] %v228
              %v230 = vld [vmem:[%s220 + $0x30] sm:$0xff]
              %231 = vst [vmem:[%s221 + $0x30] sm:$0xff] %v230
              %v232 = vld [vmem:[%s220 + $0x38] sm:$0xff]
              %233 = vst [vmem:[%s221 + $0x38] sm:$0xff] %v232
              %v234 = vld [vmem:[%s220 + $0x48] sm:$0xff]
              %235 = vst [vmem:[%s221 + $0x48] sm:$0xff] %v234
              %v236 = vld [vmem:[%s220 + $0x50] sm:$0xff]
              %237 = vst [vmem:[%s221 + $0x50] sm:$0xff] %v236
              %v238 = vld [vmem:[%s220 + $0x60] sm:$0xff]
              %239 = vst [vmem:[%s221 + $0x60] sm:$0xff] %v238
              %v240 = vld [vmem:[%s220 + $0x68] sm:$0xff]
              %241 = vst [vmem:[%s221 + $0x68] sm:$0xff] %v240
              %v242 = vld [vmem:[%s220 + $0x78] sm:$0xff]
              %243 = vst [vmem:[%s221 + $0x78] sm:$0xff] %v242
              %v244 = vld [vmem:[%s220 + $0x80] sm:$0xff]
              %245 = vst [vmem:[%s221 + $0x80] sm:$0xff] %v244
              %v246 = vld [vmem:[%s220 + $0x90] sm:$0xff]
              %247 = vst [vmem:[%s221 + $0x90] sm:$0xff] %v246
              %v248 = vld [vmem:[%s220 + $0x98] sm:$0xff]
              %249 = vst [vmem:[%s221 + $0x98] sm:$0xff] %v248
              %v250 = vld [vmem:[%s220 + $0xa8] sm:$0xff]
              %251 = vst [vmem:[%s221 + $0xa8] sm:$0xff] %v250
              %v252 = vld [vmem:[%s220 + $0xb0] sm:$0xff]
              %253 = vst [vmem:[%s221 + $0xb0] sm:$0xff] %v252
            $region60: #{tpu_custom_call.1} parent=54 // loop_footer
              %s219 = sadd.s32 1, %s215
            $region61: #{tpu_custom_call.1} parent=54 // loop_footer_branch
              %214 = sbr.rel target = $region57
            $region62: #{tpu_custom_call.1} parent=54 // loop_exit
              _
            %s254 = sshllo.u32 0, %s209
            loop: start=0, step=1, limit=1
            $region63: #{tpu_custom_call.1} parent=54 // loop_pre_header
              _
            $region64: #{tpu_custom_call.1} parent=54 // loop_header
              %s256 = sphi 0, %s260
              %p257 = scmp.ge.s32.totalorder %s256, 1
              %s261 = sphi %s211, %s211
              %s262 = sphi %s213, %s213
            $region65: #{tpu_custom_call.1} parent=54 // loop_header_branch
              %259 = sbr.rel (%p257) target = $region69
            $region66: #{tpu_custom_call.1} parent=54 // loop_body
              %v263 = vld [vmem:[%s261] sm:%s254]
              %264 = vst [vmem:[%s262] sm:%s254] %v263
              %v265 = vld [vmem:[%s261 + $0x18] sm:%s254]
              %266 = vst [vmem:[%s262 + $0x18] sm:%s254] %v265
              %v267 = vld [vmem:[%s261 + $0x30] sm:%s254]
              %268 = vst [vmem:[%s262 + $0x30] sm:%s254] %v267
              %v269 = vld [vmem:[%s261 + $0x48] sm:%s254]
              %270 = vst [vmem:[%s262 + $0x48] sm:%s254] %v269
              %v271 = vld [vmem:[%s261 + $0x60] sm:%s254]
              %272 = vst [vmem:[%s262 + $0x60] sm:%s254] %v271
              %v273 = vld [vmem:[%s261 + $0x78] sm:%s254]
              %274 = vst [vmem:[%s262 + $0x78] sm:%s254] %v273
              %v275 = vld [vmem:[%s261 + $0x90] sm:%s254]
              %276 = vst [vmem:[%s262 + $0x90] sm:%s254] %v275
              %v277 = vld [vmem:[%s261 + $0xa8] sm:%s254]
              %278 = vst [vmem:[%s262 + $0xa8] sm:%s254] %v277
            $region67: #{tpu_custom_call.1} parent=54 // loop_footer
              %s260 = sadd.s32 1, %s256
            $region68: #{tpu_custom_call.1} parent=54 // loop_footer_branch
              %255 = sbr.rel target = $region64
            $region69: #{tpu_custom_call.1} parent=54 // loop_exit
              _
          $region55: #{tpu_custom_call.1} parent=39 // pred_fallthru
            _
        $region40: #{tpu_custom_call.1} parent=27 // pred_fallthru
          _
        // Predicated region
        $region41: #{tpu_custom_call.1} parent=27 // pred_check
          %p176 = pneg %p172
        $region42: #{tpu_custom_call.1} parent=27 // pred_check_branch
          %178 = sbr.rel (%p176) target = $region44
        $region43: #{tpu_custom_call.1} parent=27 // pred_region
          %s179 = sshllo.u32 0, 20
          loop: start=0, step=1, limit=1
          $region45: #{tpu_custom_call.1} parent=43 // loop_pre_header
            _
          $region46: #{tpu_custom_call.1} parent=43 // loop_header
            %s181 = sphi 0, %s185
            %p182 = scmp.ge.s32.totalorder %s181, 1
            %s186 = sphi %s170, %s170
            %s187 = sphi [#allocation2], [#allocation2]
          $region47: #{tpu_custom_call.1} parent=43 // loop_header_branch
            %184 = sbr.rel (%p182) target = $region51
          $region48: #{tpu_custom_call.1} parent=43 // loop_body
            %v188 = vld [vmem:[%s186] sm:%s179]
            %189 = vst [vmem:[%s187] sm:%s179] %v188
            %v190 = vld [vmem:[%s186 + $0x18] sm:%s179]
            %191 = vst [vmem:[%s187 + $0x18] sm:%s179] %v190
            %v192 = vld [vmem:[%s186 + $0x30] sm:%s179]
            %193 = vst [vmem:[%s187 + $0x30] sm:%s179] %v192
            %v194 = vld [vmem:[%s186 + $0x48] sm:%s179]
            %195 = vst [vmem:[%s187 + $0x48] sm:%s179] %v194
            %v196 = vld [vmem:[%s186 + $0x60] sm:%s179]
            %197 = vst [vmem:[%s187 + $0x60] sm:%s179] %v196
            %v198 = vld [vmem:[%s186 + $0x78] sm:%s179]
            %199 = vst [vmem:[%s187 + $0x78] sm:%s179] %v198
            %v200 = vld [vmem:[%s186 + $0x90] sm:%s179]
            %201 = vst [vmem:[%s187 + $0x90] sm:%s179] %v200
            %v202 = vld [vmem:[%s186 + $0xa8] sm:%s179]
            %203 = vst [vmem:[%s187 + $0xa8] sm:%s179] %v202
          $region49: #{tpu_custom_call.1} parent=43 // loop_footer
            %s185 = sadd.s32 1, %s181
          $region50: #{tpu_custom_call.1} parent=43 // loop_footer_branch
            %180 = sbr.rel target = $region46
          $region51: #{tpu_custom_call.1} parent=43 // loop_exit
            _
        $region44: #{tpu_custom_call.1} parent=27 // pred_fallthru
          _
        // Predicated region
        $region70: #{tpu_custom_call.1} parent=27 // pred_check
          _
        $region71: #{tpu_custom_call.1} parent=27 // pred_check_branch
          %281 = sbr.rel (0) target = $region73
        $region72: #{tpu_custom_call.1} parent=27 // pred_region
          %282 = vsyncadd [#allocation3], 2560
        $region73: #{tpu_custom_call.1} parent=27 // pred_fallthru
          _
        %s283 = smul.u32 8, 20
        %s284 = smul.u32 %s283, 1
        %s285 = sshll.u32 %s284, 4
        %286 = dma.done [#allocation3], %s285
        %v287 = vld [vmem:[#allocation2] sm:$0xff]
        %v288 = vld [vmem:[#allocation2 + $0x8] sm:$0xff]
        %v289 = vld [vmem:[#allocation2 + $0x10] sm:$0xf]
        %v290 = vld [vmem:[#allocation2 + $0x18] sm:$0xff]
        %v291 = vld [vmem:[#allocation2 + $0x20] sm:$0xff]
        %v292 = vld [vmem:[#allocation2 + $0x28] sm:$0xf]
        %v293 = vld [vmem:[#allocation2 + $0x30] sm:$0xff]
        %v294 = vld [vmem:[#allocation2 + $0x38] sm:$0xff]
        %v295 = vld [vmem:[#allocation2 + $0x40] sm:$0xf]
        %v296 = vld [vmem:[#allocation2 + $0x48] sm:$0xff]
        %v297 = vld [vmem:[#allocation2 + $0x50] sm:$0xff]
        %v298 = vld [vmem:[#allocation2 + $0x58] sm:$0xf]
        %vm311 = vcmask 1046528
        %v312 = vrot.slane %v287, 1
        %v313 = vrot.slane %v288, 1
        %v314 = vsel %vm311, %v312, %v313
        %v315 = vrot.slane %v289, 1
        %v316 = vsel %vm311, %v313, %v315
        %v317 = vrot.slane %v290, 1
        %v318 = vrot.slane %v291, 1
        %v319 = vsel %vm311, %v317, %v318
        %v320 = vrot.slane %v292, 1
        %v321 = vsel %vm311, %v318, %v320
        %v322 = vrot.slane %v293, 1
        %v323 = vrot.slane %v294, 1
        %v324 = vsel %vm311, %v322, %v323
        %v325 = vrot.slane %v295, 1
        %v326 = vsel %vm311, %v323, %v325
        %v327 = vrot.slane %v296, 1
        %v328 = vrot.slane %v297, 1
        %v329 = vsel %vm311, %v327, %v328
        %v330 = vrot.slane %v298, 1
        %v331 = vsel %vm311, %v328, %v330
        %vm340 = vcmask 1045504
        %v341 = vrot.slane %v287, 2
        %v342 = vrot.slane %v288, 2
        %v343 = vsel %vm340, %v341, %v342
        %v344 = vrot.slane %v289, 2
        %v345 = vsel %vm340, %v342, %v344
        %v346 = vrot.slane %v290, 2
        %v347 = vrot.slane %v291, 2
        %v348 = vsel %vm340, %v346, %v347
        %v349 = vrot.slane %v292, 2
        %v350 = vsel %vm340, %v347, %v349
        %v351 = vrot.slane %v293, 2
        %v352 = vrot.slane %v294, 2
        %v353 = vsel %vm340, %v351, %v352
        %v354 = vrot.slane %v295, 2
        %v355 = vsel %vm340, %v352, %v354
        %v356 = vrot.slane %v296, 2
        %v357 = vrot.slane %v297, 2
        %v358 = vsel %vm340, %v356, %v357
        %v359 = vrot.slane %v298, 2
        %v360 = vsel %vm340, %v357, %v359
        %vm369 = vcmask 1044480
        %v370 = vrot.slane %v287, 3
        %v371 = vrot.slane %v288, 3
        %v372 = vsel %vm369, %v370, %v371
        %v373 = vrot.slane %v289, 3
        %v374 = vsel %vm369, %v371, %v373
        %v375 = vrot.slane %v290, 3
        %v376 = vrot.slane %v291, 3
        %v377 = vsel %vm369, %v375, %v376
        %v378 = vrot.slane %v292, 3
        %v379 = vsel %vm369, %v376, %v378
        %v380 = vrot.slane %v293, 3
        %v381 = vrot.slane %v294, 3
        %v382 = vsel %vm369, %v380, %v381
        %v383 = vrot.slane %v295, 3
        %v384 = vsel %vm369, %v381, %v383
        %v385 = vrot.slane %v296, 3
        %v386 = vrot.slane %v297, 3
        %v387 = vsel %vm369, %v385, %v386
        %v388 = vrot.slane %v298, 3
        %v389 = vsel %vm369, %v386, %v388
        %vm398 = vcmask 1043456
        %v399 = vrot.slane %v287, 4
        %v400 = vrot.slane %v288, 4
        %v401 = vsel %vm398, %v399, %v400
        %v402 = vrot.slane %v289, 4
        %v403 = vsel %vm398, %v400, %v402
        %v404 = vrot.slane %v290, 4
        %v405 = vrot.slane %v291, 4
        %v406 = vsel %vm398, %v404, %v405
        %v407 = vrot.slane %v292, 4
        %v408 = vsel %vm398, %v405, %v407
        %v409 = vrot.slane %v293, 4
        %v410 = vrot.slane %v294, 4
        %v411 = vsel %vm398, %v409, %v410
        %v412 = vrot.slane %v295, 4
        %v413 = vsel %vm398, %v410, %v412
        %v414 = vrot.slane %v296, 4
        %v415 = vrot.slane %v297, 4
        %v416 = vsel %vm398, %v414, %v415
        %v417 = vrot.slane %v298, 4
        %v418 = vsel %vm398, %v415, %v417
        %v427 = vld [vmem:[#allocation5] sm:$0xff]
        %v428 = vld [vmem:[#allocation5 + $0x8] sm:$0xff]
        %v429 = vld [vmem:[#allocation5 + $0x10] sm:$0xff]
        %v430 = vld [vmem:[#allocation5 + $0x18] sm:$0xff]
        %v431 = vld [vmem:[#allocation5 + $0x20] sm:$0xff]
        %v432 = vld [vmem:[#allocation5 + $0x28] sm:$0xff]
        %v433 = vld [vmem:[#allocation5 + $0x30] sm:$0xff]
        %v434 = vld [vmem:[#allocation5 + $0x38] sm:$0xff]
        %v435 = vld [vmem:[#allocation5 + $0x40] sm:$0xff]
        %v436 = vld [vmem:[#allocation5 + $0x48] sm:$0xff]
        %v437 = vld [vmem:[#allocation5 + $0x50] sm:$0xff]
        %v438 = vld [vmem:[#allocation5 + $0x58] sm:$0xff]
        %v439 = vld [vmem:[#allocation5 + $0x60] sm:$0xff]
        %v440 = vld [vmem:[#allocation5 + $0x68] sm:$0xff]
        %v441 = vld [vmem:[#allocation5 + $0x70] sm:$0xff]
        %v442 = vld [vmem:[#allocation5 + $0x78] sm:$0xff]
        %v443 = vld [vmem:[#allocation5 + $0x80] sm:$0xff]
        %v444 = vld [vmem:[#allocation5 + $0x88] sm:$0xff]
        %v445 = vld [vmem:[#allocation5 + $0x90] sm:$0xff]
        %v446 = vld [vmem:[#allocation5 + $0x98] sm:$0xff]
        %v447 = vld [vmem:[#allocation5 + $0xa0] sm:$0xff]
        %v448 = vld [vmem:[#allocation5 + $0xa8] sm:$0xff]
        %v449 = vld [vmem:[#allocation5 + $0xb0] sm:$0xff]
        %v450 = vld [vmem:[#allocation5 + $0xb8] sm:$0xff]
        %v451 = vld [vmem:[#allocation5 + $0xc0] sm:$0xff]
        %v452 = vld [vmem:[#allocation5 + $0xc8] sm:$0xff]
        %v453 = vld [vmem:[#allocation5 + $0xd0] sm:$0xff]
        %v454 = vld [vmem:[#allocation5 + $0xd8] sm:$0xff]
        %v455 = vld [vmem:[#allocation5 + $0xe0] sm:$0xff]
        %v456 = vld [vmem:[#allocation5 + $0xe8] sm:$0xff]
        %v457 = vld [vmem:[#allocation5 + $0xf0] sm:$0xff]
        %v458 = vld [vmem:[#allocation5 + $0xf8] sm:$0xff]
        %v459 = vld [vmem:[#allocation5 + $0x100] sm:$0xff]
        %v460 = vld [vmem:[#allocation5 + $0x108] sm:$0xff]
        %v461 = vld [vmem:[#allocation5 + $0x110] sm:$0xff]
        %v462 = vld [vmem:[#allocation5 + $0x118] sm:$0xff]
        %v463 = vld [vmem:[#allocation5 + $0x120] sm:$0xff]
        %v464 = vld [vmem:[#allocation5 + $0x128] sm:$0xff]
        %v465 = vld [vmem:[#allocation5 + $0x130] sm:$0xff]
        %v466 = vld [vmem:[#allocation5 + $0x138] sm:$0xff]
        %v467 = vld [vmem:[#allocation5 + $0x140] sm:$0xff]
        %v468 = vld [vmem:[#allocation5 + $0x148] sm:$0xff]
        %v469 = vld [vmem:[#allocation5 + $0x150] sm:$0xff]
        %v470 = vld [vmem:[#allocation5 + $0x158] sm:$0xff]
        %v471 = vld [vmem:[#allocation5 + $0x160] sm:$0xff]
        %v472 = vld [vmem:[#allocation5 + $0x168] sm:$0xff]
        %v473 = vld [vmem:[#allocation5 + $0x170] sm:$0xff]
        %v474 = vld [vmem:[#allocation5 + $0x178] sm:$0xff]
        %v475 = vld [vmem:[#allocation5 + $0x180] sm:$0xff]
        %v476 = vld [vmem:[#allocation5 + $0x188] sm:$0xff]
        %v477 = vld [vmem:[#allocation5 + $0x190] sm:$0xff]
        %v478 = vld [vmem:[#allocation5 + $0x198] sm:$0xff]
        %v479 = vld [vmem:[#allocation5 + $0x1a0] sm:$0xff]
        %v480 = vld [vmem:[#allocation5 + $0x1a8] sm:$0xff]
        %v481 = vld [vmem:[#allocation5 + $0x1b0] sm:$0xff]
        %v482 = vld [vmem:[#allocation5 + $0x1b8] sm:$0xff]
        %v483 = vld [vmem:[#allocation5 + $0x1c0] sm:$0xff]
        %v484 = vld [vmem:[#allocation5 + $0x1c8] sm:$0xff]
        %v485 = vld [vmem:[#allocation5 + $0x1d0] sm:$0xff]
        %v486 = vld [vmem:[#allocation5 + $0x1d8] sm:$0xff]
        %v487 = vld [vmem:[#allocation5 + $0x1e0] sm:$0xff]
        %v488 = vld [vmem:[#allocation5 + $0x1e8] sm:$0xff]
        %v489 = vld [vmem:[#allocation5 + $0x1f0] sm:$0xff]
        %v490 = vld [vmem:[#allocation5 + $0x1f8] sm:$0xff]
        %v491 = vld [vmem:[#allocation5 + $0x200] sm:$0xff]
        %v492 = vld [vmem:[#allocation5 + $0x208] sm:$0xff]
        %v493 = vld [vmem:[#allocation5 + $0x210] sm:$0xff]
        %v494 = vld [vmem:[#allocation5 + $0x218] sm:$0xff]
        %v495 = vld [vmem:[#allocation5 + $0x220] sm:$0xff]
        %v496 = vld [vmem:[#allocation5 + $0x228] sm:$0xff]
        %v497 = vld [vmem:[#allocation5 + $0x230] sm:$0xff]
        %v498 = vld [vmem:[#allocation5 + $0x238] sm:$0xff]
        %v499 = vld [vmem:[#allocation5 + $0x240] sm:$0xff]
        %v500 = vld [vmem:[#allocation5 + $0x248] sm:$0xff]
        %v501 = vld [vmem:[#allocation5 + $0x250] sm:$0xff]
        %v502 = vld [vmem:[#allocation5 + $0x258] sm:$0xff]
        %v503 = vld [vmem:[#allocation5 + $0x260] sm:$0xff]
        %v504 = vld [vmem:[#allocation5 + $0x268] sm:$0xff]
        %v505 = vld [vmem:[#allocation5 + $0x270] sm:$0xff]
        %v506 = vld [vmem:[#allocation5 + $0x278] sm:$0xff]
        %v507 = vld [vmem:[#allocation8] sm:$0x1]
        %v509 = vlaneseq
        %v510 = vshrl.u32 %v509, 7
        %v511 = vsub.s32 0, %v510
        %v512 = vrot.slane %v507, %v511
        %514 = vmatprep.subr.mxu0 0.0
        %515 = vmatpush1.msra.mxu0 %v427
        %516 = vmatprep.subr.mxu0 0.0
        %517 = vmatpush1.msra.mxu0 %v428
        %518 = vmatprep.subr.mxu0 0.0
        %519 = vmatpush1.msra.mxu0 %v429
        %520 = vmatprep.subr.mxu0 0.0
        %521 = vmatpush1.msra.mxu0 %v430
        %522 = vmatprep.subr.mxu0 0.0
        %523 = vmatpush1.msra.mxu0 %v431
        %524 = vmatprep.subr.mxu0 0.0
        %525 = vmatpush1.msra.mxu0 %v432
        %526 = vmatprep.subr.mxu0 0.0
        %527 = vmatpush1.msra.mxu0 %v433
        %528 = vmatprep.subr.mxu0 0.0
        %529 = vmatpush1.msra.mxu0 %v434
        %530 = vmatprep.subr.mxu0 0.0
        %531 = vmatpush1.msra.mxu0 %v435
        %532 = vmatprep.subr.mxu0 0.0
        %533 = vmatpush1.msra.mxu0 %v436
        %534 = vmatprep.subr.mxu0 0.0
        %535 = vmatpush1.msra.mxu0 %v437
        %536 = vmatprep.subr.mxu0 0.0
        %537 = vmatpush1.msra.mxu0 %v438
        %538 = vmatprep.subr.mxu0 0.0
        %539 = vmatpush1.msra.mxu0 %v439
        %540 = vmatprep.subr.mxu0 0.0
        %541 = vmatpush1.msra.mxu0 %v440
        %542 = vmatprep.subr.mxu0 0.0
        %543 = vmatpush1.msra.mxu0 %v441
        %544 = vmatprep.subr.mxu0 0.0
        %545 = vmatpush1.msra.mxu0 %v442
        %546 = vmatprep.subr.mxu0 0.0
        %547 = vmatpush1.msra.mxu0 %v443
        %548 = vmatprep.subr.mxu0 0.0
        %549 = vmatpush1.msra.mxu0 %v444
        %550 = vmatprep.subr.mxu0 0.0
        %551 = vmatpush1.msra.mxu0 %v445
        %552 = vmatprep.subr.mxu0 0.0
        %553 = vmatpush1.msra.mxu0 %v446
        %554 = vmatprep.subr.mxu0 0.0
        %555 = vmatpush1.msra.mxu0 %v447
        %556 = vmatprep.subr.mxu0 0.0
        %557 = vmatpush1.msra.mxu0 %v448
        %558 = vmatprep.subr.mxu0 0.0
        %559 = vmatpush1.msra.mxu0 %v449
        %560 = vmatprep.subr.mxu0 0.0
        %561 = vmatpush1.msra.mxu0 %v450
        %562 = vmatprep.subr.mxu0 0.0
        %563 = vmatpush1.msra.mxu0 %v451
        %564 = vmatprep.subr.mxu0 0.0
        %565 = vmatpush1.msra.mxu0 %v452
        %566 = vmatprep.subr.mxu0 0.0
        %567 = vmatpush1.msra.mxu0 %v453
        %568 = vmatprep.subr.mxu0 0.0
        %569 = vmatpush1.msra.mxu0 %v454
        %570 = vmatprep.subr.mxu0 0.0
        %571 = vmatpush1.msra.mxu0 %v455
        %572 = vmatprep.subr.mxu0 0.0
        %573 = vmatpush1.msra.mxu0 %v456
        %574 = vmatprep.subr.mxu0 0.0
        %575 = vmatpush1.msra.mxu0 %v457
        %576 = vmatprep.subr.mxu0 0.0
        %577 = vmatpush1.msra.mxu0 %v458
        %578 = vmatprep.mubr.f32.mxu0 %v314
        %579 = vmatmul.mubr.f32.gmra.mrb[0].mxu0 %v287
        %v580 = vpop.f32.mrb[0].mxu0
        %v581 = vadd.f32 %v512, %v580
        %v582 = vpop.f32.mrb[0].mxu0
        %583 = vmatprep.mubr.f32.mxu0 %v316
        %584 = vmatmul.mubr.f32.gmra.mrb[0].mxu0 %v288
        %v585 = vpop.f32.mrb[0].mxu0
        %v586 = vadd.f32 %v512, %v585
        %v587 = vpop.f32.mrb[0].mxu0
        %588 = vmatprep.mubr.f32.mxu0 %v319
        %589 = vmatmul.mubr.f32.gmra.mrb[0].mxu0 %v290
        %v590 = vpop.f32.mrb[0].mxu0
        %v591 = vadd.f32 %v512, %v590
        %v592 = vpop.f32.mrb[0].mxu0
        %593 = vmatprep.mubr.f32.mxu0 %v321
        %594 = vmatmul.mubr.f32.gmra.mrb[0].mxu0 %v291
        %v595 = vpop.f32.mrb[0].mxu0
        %v596 = vadd.f32 %v512, %v595
        %v597 = vpop.f32.mrb[0].mxu0
        %598 = vmatprep.mubr.f32.mxu0 %v324
        %599 = vmatmul.mubr.f32.gmra.mrb[0].mxu0 %v293
        %v600 = vpop.f32.mrb[0].mxu0
        %v601 = vadd.f32 %v512, %v600
        %v602 = vpop.f32.mrb[0].mxu0
        %603 = vmatprep.mubr.f32.mxu0 %v326
        %604 = vmatmul.mubr.f32.gmra.mrb[0].mxu0 %v294
        %v605 = vpop.f32.mrb[0].mxu0
        %v606 = vadd.f32 %v512, %v605
        %v607 = vpop.f32.mrb[0].mxu0
        %608 = vmatprep.mubr.f32.mxu0 %v329
        %609 = vmatmul.mubr.f32.gmra.mrb[0].mxu0 %v296
        %v610 = vpop.f32.mrb[0].mxu0
        %v611 = vadd.f32 %v512, %v610
        %v612 = vpop.f32.mrb[0].mxu0
        %613 = vmatprep.mubr.f32.mxu0 %v331
        %614 = vmatmul.mubr.f32.gmra.mrb[0].mxu0 %v297
        %v615 = vpop.f32.mrb[0].mxu0
        %v616 = vadd.f32 %v512, %v615
        %v617 = vpop.f32.mrb[0].mxu0
        %618 = vdwg.mxu0
        %619 = vmatprep.subr.mxu0 0.0
        %620 = vmatpush1.msra.mxu0 %v459
        %621 = vmatprep.subr.mxu0 0.0
        %622 = vmatpush1.msra.mxu0 %v460
        %623 = vmatprep.subr.mxu0 0.0
        %624 = vmatpush1.msra.mxu0 %v461
        %625 = vmatprep.subr.mxu0 0.0
        %626 = vmatpush1.msra.mxu0 %v462
        %627 = vmatprep.subr.mxu0 0.0
        %628 = vmatpush1.msra.mxu0 %v463
        %629 = vmatprep.subr.mxu0 0.0
        %630 = vmatpush1.msra.mxu0 %v464
        %631 = vmatprep.subr.mxu0 0.0
        %632 = vmatpush1.msra.mxu0 %v465
        %633 = vmatprep.subr.mxu0 0.0
        %634 = vmatpush1.msra.mxu0 %v466
        %635 = vmatprep.subr.mxu0 0.0
        %636 = vmatpush1.msra.mxu0 %v467
        %637 = vmatprep.subr.mxu0 0.0
        %638 = vmatpush1.msra.mxu0 %v468
        %639 = vmatprep.subr.mxu0 0.0
        %640 = vmatpush1.msra.mxu0 %v469
        %641 = vmatprep.subr.mxu0 0.0
        %642 = vmatpush1.msra.mxu0 %v470
        %643 = vmatprep.subr.mxu0 0.0
        %644 = vmatpush1.msra.mxu0 %v471
        %645 = vmatprep.subr.mxu0 0.0
        %646 = vmatpush1.msra.mxu0 %v472
        %647 = vmatprep.subr.mxu0 0.0
        %648 = vmatpush1.msra.mxu0 %v473
        %649 = vmatprep.subr.mxu0 0.0
        %650 = vmatpush1.msra.mxu0 %v474
        %651 = vmatprep.subr.mxu0 0.0
        %652 = vmatpush1.msra.mxu0 %v475
        %653 = vmatprep.subr.mxu0 0.0
        %654 = vmatpush1.msra.mxu0 %v476
        %655 = vmatprep.subr.mxu0 0.0
        %656 = vmatpush1.msra.mxu0 %v477
        %657 = vmatprep.subr.mxu0 0.0
        %658 = vmatpush1.msra.mxu0 %v478
        %659 = vmatprep.subr.mxu0 0.0
        %660 = vmatpush1.msra.mxu0 %v479
        %661 = vmatprep.subr.mxu0 0.0
        %662 = vmatpush1.msra.mxu0 %v480
        %663 = vmatprep.subr.mxu0 0.0
        %664 = vmatpush1.msra.mxu0 %v481
        %665 = vmatprep.subr.mxu0 0.0
        %666 = vmatpush1.msra.mxu0 %v482
        %667 = vmatprep.subr.mxu0 0.0
        %668 = vmatpush1.msra.mxu0 %v483
        %669 = vmatprep.subr.mxu0 0.0
        %670 = vmatpush1.msra.mxu0 %v484
        %671 = vmatprep.subr.mxu0 0.0
        %672 = vmatpush1.msra.mxu0 %v485
        %673 = vmatprep.subr.mxu0 0.0
        %674 = vmatpush1.msra.mxu0 %v486
        %675 = vmatprep.subr.mxu0 0.0
        %676 = vmatpush1.msra.mxu0 %v487
        %677 = vmatprep.subr.mxu0 0.0
        %678 = vmatpush1.msra.mxu0 %v488
        %679 = vmatprep.subr.mxu0 0.0
        %680 = vmatpush1.msra.mxu0 %v489
        %681 = vmatprep.subr.mxu0 0.0
        %682 = vmatpush1.msra.mxu0 %v490
        %683 = vmatprep.mubr.f32.mxu0 %v372
        %684 = vmatmul.mubr.f32.gmra.mrb[0].mxu0 %v343
        %v685 = vpop.f32.mrb[0].mxu0
        %v686 = vadd.f32 %v581, %v685
        %v687 = vpop.f32.mrb[0].mxu0
        %688 = vmatprep.mubr.f32.mxu0 %v374
        %689 = vmatmul.mubr.f32.gmra.mrb[0].mxu0 %v345
        %v690 = vpop.f32.mrb[0].mxu0
        %v691 = vadd.f32 %v586, %v690
        %v692 = vpop.f32.mrb[0].mxu0
        %693 = vmatprep.mubr.f32.mxu0 %v377
        %694 = vmatmul.mubr.f32.gmra.mrb[0].mxu0 %v348
        %v695 = vpop.f32.mrb[0].mxu0
        %v696 = vadd.f32 %v591, %v695
        %v697 = vpop.f32.mrb[0].mxu0
        %698 = vmatprep.mubr.f32.mxu0 %v379
        %699 = vmatmul.mubr.f32.gmra.mrb[0].mxu0 %v350
        %v700 = vpop.f32.mrb[0].mxu0
        %v701 = vadd.f32 %v596, %v700
        %v702 = vpop.f32.mrb[0].mxu0
        %703 = vmatprep.mubr.f32.mxu0 %v382
        %704 = vmatmul.mubr.f32.gmra.mrb[0].mxu0 %v353
        %v705 = vpop.f32.mrb[0].mxu0
        %v706 = vadd.f32 %v601, %v705
        %v707 = vpop.f32.mrb[0].mxu0
        %708 = vmatprep.mubr.f32.mxu0 %v384
        %709 = vmatmul.mubr.f32.gmra.mrb[0].mxu0 %v355
        %v710 = vpop.f32.mrb[0].mxu0
        %v711 = vadd.f32 %v606, %v710
        %v712 = vpop.f32.mrb[0].mxu0
        %713 = vmatprep.mubr.f32.mxu0 %v387
        %714 = vmatmul.mubr.f32.gmra.mrb[0].mxu0 %v358
        %v715 = vpop.f32.mrb[0].mxu0
        %v716 = vadd.f32 %v611, %v715
        %v717 = vpop.f32.mrb[0].mxu0
        %718 = vmatprep.mubr.f32.mxu0 %v389
        %719 = vmatmul.mubr.f32.gmra.mrb[0].mxu0 %v360
        %v720 = vpop.f32.mrb[0].mxu0
        %v721 = vadd.f32 %v616, %v720
        %v722 = vpop.f32.mrb[0].mxu0
        %723 = vdwg.mxu0
        %724 = vmatprep.subr.mxu0 0.0
        %725 = vmatpush1.msra.mxu0 %v491
        %726 = vmatprep.subr.mxu0 0.0
        %727 = vmatpush1.msra.mxu0 %v492
        %728 = vmatprep.subr.mxu0 0.0
        %729 = vmatpush1.msra.mxu0 %v493
        %730 = vmatprep.subr.mxu0 0.0
        %731 = vmatpush1.msra.mxu0 %v494
        %732 = vmatprep.subr.mxu0 0.0
        %733 = vmatpush1.msra.mxu0 %v495
        %734 = vmatprep.subr.mxu0 0.0
        %735 = vmatpush1.msra.mxu0 %v496
        %736 = vmatprep.subr.mxu0 0.0
        %737 = vmatpush1.msra.mxu0 %v497
        %738 = vmatprep.subr.mxu0 0.0
        %739 = vmatpush1.msra.mxu0 %v498
        %740 = vmatprep.subr.mxu0 0.0
        %741 = vmatpush1.msra.mxu0 %v499
        %742 = vmatprep.subr.mxu0 0.0
        %743 = vmatpush1.msra.mxu0 %v500
        %744 = vmatprep.subr.mxu0 0.0
        %745 = vmatpush1.msra.mxu0 %v501
        %746 = vmatprep.subr.mxu0 0.0
        %747 = vmatpush1.msra.mxu0 %v502
        %748 = vmatprep.subr.mxu0 0.0
        %749 = vmatpush1.msra.mxu0 %v503
        %750 = vmatprep.subr.mxu0 0.0
        %751 = vmatpush1.msra.mxu0 %v504
        %752 = vmatprep.subr.mxu0 0.0
        %753 = vmatpush1.msra.mxu0 %v505
        %754 = vmatprep.subr.mxu0 0.0
        %755 = vmatpush1.msra.mxu0 %v506
        %756 = vmatprep.subr.mxu0 0.0
        %757 = vmatpush1.msra.mxu0 0.0
        %758 = vmatprep.subr.mxu0 0.0
        %759 = vmatpush1.msra.mxu0 0.0
        %760 = vmatprep.subr.mxu0 0.0
        %761 = vmatpush1.msra.mxu0 0.0
        %762 = vmatprep.subr.mxu0 0.0
        %763 = vmatpush1.msra.mxu0 0.0
        %764 = vmatprep.subr.mxu0 0.0
        %765 = vmatpush1.msra.mxu0 0.0
        %766 = vmatprep.subr.mxu0 0.0
        %767 = vmatpush1.msra.mxu0 0.0
        %768 = vmatprep.subr.mxu0 0.0
        %769 = vmatpush1.msra.mxu0 0.0
        %770 = vmatprep.subr.mxu0 0.0
        %771 = vmatpush1.msra.mxu0 0.0
        %772 = vmatprep.subr.mxu0 0.0
        %773 = vmatpush1.msra.mxu0 0.0
        %774 = vmatprep.subr.mxu0 0.0
        %775 = vmatpush1.msra.mxu0 0.0
        %776 = vmatprep.subr.mxu0 0.0
        %777 = vmatpush1.msra.mxu0 0.0
        %778 = vmatprep.subr.mxu0 0.0
        %779 = vmatpush1.msra.mxu0 0.0
        %780 = vmatprep.subr.mxu0 0.0
        %781 = vmatpush1.msra.mxu0 0.0
        %782 = vmatprep.subr.mxu0 0.0
        %783 = vmatpush1.msra.mxu0 0.0
        %784 = vmatprep.subr.mxu0 0.0
        %785 = vmatpush1.msra.mxu0 0.0
        %786 = vmatprep.subr.mxu0 0.0
        %787 = vmatpush1.msra.mxu0 0.0
        %788 = vmatprep.mubr.f32.mxu0 0.0
        %789 = vmatmul.mubr.f32.gmra.mrb[0].mxu0 %v401
        %v790 = vpop.f32.mrb[0].mxu0
        %v791 = vadd.f32 %v686, %v790
        %v792 = vpop.f32.mrb[0].mxu0
        %793 = vmatprep.mubr.f32.mxu0 0.0
        %794 = vmatmul.mubr.f32.gmra.mrb[0].mxu0 %v403
        %v795 = vpop.f32.mrb[0].mxu0
        %v796 = vadd.f32 %v691, %v795
        %v797 = vpop.f32.mrb[0].mxu0
        %798 = vmatprep.mubr.f32.mxu0 0.0
        %799 = vmatmul.mubr.f32.gmra.mrb[0].mxu0 %v406
        %v800 = vpop.f32.mrb[0].mxu0
        %v801 = vadd.f32 %v696, %v800
        %v802 = vpop.f32.mrb[0].mxu0
        %803 = vmatprep.mubr.f32.mxu0 0.0
        %804 = vmatmul.mubr.f32.gmra.mrb[0].mxu0 %v408
        %v805 = vpop.f32.mrb[0].mxu0
        %v806 = vadd.f32 %v701, %v805
        %v807 = vpop.f32.mrb[0].mxu0
        %808 = vmatprep.mubr.f32.mxu0 0.0
        %809 = vmatmul.mubr.f32.gmra.mrb[0].mxu0 %v411
        %v810 = vpop.f32.mrb[0].mxu0
        %v811 = vadd.f32 %v706, %v810
        %v812 = vpop.f32.mrb[0].mxu0
        %813 = vmatprep.mubr.f32.mxu0 0.0
        %814 = vmatmul.mubr.f32.gmra.mrb[0].mxu0 %v413
        %v815 = vpop.f32.mrb[0].mxu0
        %v816 = vadd.f32 %v711, %v815
        %v817 = vpop.f32.mrb[0].mxu0
        %818 = vmatprep.mubr.f32.mxu0 0.0
        %819 = vmatmul.mubr.f32.gmra.mrb[0].mxu0 %v416
        %v820 = vpop.f32.mrb[0].mxu0
        %v821 = vadd.f32 %v716, %v820
        %v822 = vpop.f32.mrb[0].mxu0
        %823 = vmatprep.mubr.f32.mxu0 0.0
        %824 = vmatmul.mubr.f32.gmra.mrb[0].mxu0 %v418
        %v825 = vpop.f32.mrb[0].mxu0
        %v826 = vadd.f32 %v721, %v825
        %v827 = vpop.f32.mrb[0].mxu0
        %828 = vdwg.mxu0
        %829 = vst [vmem:[#allocation4] sm:$0xff] %v791
        %830 = vst [vmem:[#allocation4 + $0x8] sm:$0xff] %v796
        %831 = vst [vmem:[#allocation4 + $0x10] sm:$0xff] %v801
        %832 = vst [vmem:[#allocation4 + $0x18] sm:$0xff] %v806
        %833 = vst [vmem:[#allocation4 + $0x20] sm:$0xff] %v811
        %834 = vst [vmem:[#allocation4 + $0x28] sm:$0xff] %v816
        %835 = vst [vmem:[#allocation4 + $0x30] sm:$0xff] %v821
        %836 = vst [vmem:[#allocation4 + $0x38] sm:$0xff] %v826
        %s837 = scalar_lea.vmem [#allocation2], 24
        %v838 = vld [vmem:[%s837] sm:$0xff]
        %v839 = vld [vmem:[%s837 + $0x8] sm:$0xff]
        %v840 = vld [vmem:[%s837 + $0x10] sm:$0xf]
        %v841 = vld [vmem:[%s837 + $0x18] sm:$0xff]
        %v842 = vld [vmem:[%s837 + $0x20] sm:$0xff]
        %v843 = vld [vmem:[%s837 + $0x28] sm:$0xf]
        %v844 = vld [vmem:[%s837 + $0x30] sm:$0xff]
        %v845 = vld [vmem:[%s837 + $0x38] sm:$0xff]
        %v846 = vld [vmem:[%s837 + $0x40] sm:$0xf]
        %v847 = vld [vmem:[%s837 + $0x48] sm:$0xff]
        %v848 = vld [vmem:[%s837 + $0x50] sm:$0xff]
        %v849 = vld [vmem:[%s837 + $0x58] sm:$0xf]
        %v862 = vrot.slane %v838, 1
        %v863 = vrot.slane %v839, 1
        %v864 = vsel %vm311, %v862, %v863
        %v865 = vrot.slane %v840, 1
        %v866 = vsel %vm311, %v863, %v865
        %v867 = vrot.slane %v841, 1
        %v868 = vrot.slane %v842, 1
        %v869 = vsel %vm311, %v867, %v868
        %v870 = vrot.slane %v843, 1
        %v871 = vsel %vm311, %v868, %v870
        %v872 = vrot.slane %v844, 1
        %v873 = vrot.slane %v845, 1
        %v874 = vsel %vm311, %v872, %v873
        %v875 = vrot.slane %v846, 1
        %v876 = vsel %vm311, %v873, %v875
        %v877 = vrot.slane %v847, 1
        %v878 = vrot.slane %v848, 1
        %v879 = vsel %vm311, %v877, %v878
        %v880 = vrot.slane %v849, 1
        %v881 = vsel %vm311, %v878, %v880
        %v890 = vrot.slane %v838, 2
        %v891 = vrot.slane %v839, 2
        %v892 = vsel %vm340, %v890, %v891
        %v893 = vrot.slane %v840, 2
        %v894 = vsel %vm340, %v891, %v893
        %v895 = vrot.slane %v841, 2
        %v896 = vrot.slane %v842, 2
        %v897 = vsel %vm340, %v895, %v896
        %v898 = vrot.slane %v843, 2
        %v899 = vsel %vm340, %v896, %v898
        %v900 = vrot.slane %v844, 2
        %v901 = vrot.slane %v845, 2
        %v902 = vsel %vm340, %v900, %v901
        %v903 = vrot.slane %v846, 2
        %v904 = vsel %vm340, %v901, %v903
        %v905 = vrot.slane %v847, 2
        %v906 = vrot.slane %v848, 2
        %v907 = vsel %vm340, %v905, %v906
        %v908 = vrot.slane %v849, 2
        %v909 = vsel %vm340, %v906, %v908
        %v918 = vrot.slane %v838, 3
        %v919 = vrot.slane %v839, 3
        %v920 = vsel %vm369, %v918, %v919
        %v921 = vrot.slane %v840, 3
        %v922 = vsel %vm369, %v919, %v921
        %v923 = vrot.slane %v841, 3
        %v924 = vrot.slane %v842, 3
        %v925 = vsel %vm369, %v923, %v924
        %v926 = vrot.slane %v843, 3
        %v927 = vsel %vm369, %v924, %v926
        %v928 = vrot.slane %v844, 3
        %v929 = vrot.slane %v845, 3
        %v930 = vsel %vm369, %v928, %v929
        %v931 = vrot.slane %v846, 3
        %v932 = vsel %vm369, %v929, %v931
        %v933 = vrot.slane %v847, 3
        %v934 = vrot.slane %v848, 3
        %v935 = vsel %vm369, %v933, %v934
        %v936 = vrot.slane %v849, 3
        %v937 = vsel %vm369, %v934, %v936
        %v946 = vrot.slane %v838, 4
        %v947 = vrot.slane %v839, 4
        %v948 = vsel %vm398, %v946, %v947
        %v949 = vrot.slane %v840, 4
        %v950 = vsel %vm398, %v947, %v949
        %v951 = vrot.slane %v841, 4
        %v952 = vrot.slane %v842, 4
        %v953 = vsel %vm398, %v951, %v952
        %v954 = vrot.slane %v843, 4
        %v955 = vsel %vm398, %v952, %v954
        %v956 = vrot.slane %v844, 4
        %v957 = vrot.slane %v845, 4
        %v958 = vsel %vm398, %v956, %v957
        %v959 = vrot.slane %v846, 4
        %v960 = vsel %vm398, %v957, %v959
        %v961 = vrot.slane %v847, 4
        %v962 = vrot.slane %v848, 4
        %v963 = vsel %vm398, %v961, %v962
        %v964 = vrot.slane %v849, 4
        %v965 = vsel %vm398, %v962, %v964
        %s974 = scalar_lea.vmem [#allocation5], 640
        %v975 = vld [vmem:[%s974] sm:$0xff]
        %v976 = vld [vmem:[%s974 + $0x8] sm:$0xff]
        %v977 = vld [vmem:[%s974 + $0x10] sm:$0xff]
        %v978 = vld [vmem:[%s974 + $0x18] sm:$0xff]
        %v979 = vld [vmem:[%s974 + $0x20] sm:$0xff]
        %v980 = vld [vmem:[%s974 + $0x28] sm:$0xff]
        %v981 = vld [vmem:[%s974 + $0x30] sm:$0xff]
        %v982 = vld [vmem:[%s974 + $0x38] sm:$0xff]
        %v983 = vld [vmem:[%s974 + $0x40] sm:$0xff]
        %v984 = vld [vmem:[%s974 + $0x48] sm:$0xff]
        %v985 = vld [vmem:[%s974 + $0x50] sm:$0xff]
        %v986 = vld [vmem:[%s974 + $0x58] sm:$0xff]
        %v987 = vld [vmem:[%s974 + $0x60] sm:$0xff]
        %v988 = vld [vmem:[%s974 + $0x68] sm:$0xff]
        %v989 = vld [vmem:[%s974 + $0x70] sm:$0xff]
        %v990 = vld [vmem:[%s974 + $0x78] sm:$0xff]
        %v991 = vld [vmem:[%s974 + $0x80] sm:$0xff]
        %v992 = vld [vmem:[%s974 + $0x88] sm:$0xff]
        %v993 = vld [vmem:[%s974 + $0x90] sm:$0xff]
        %v994 = vld [vmem:[%s974 + $0x98] sm:$0xff]
        %v995 = vld [vmem:[%s974 + $0xa0] sm:$0xff]
        %v996 = vld [vmem:[%s974 + $0xa8] sm:$0xff]
        %v997 = vld [vmem:[%s974 + $0xb0] sm:$0xff]
        %v998 = vld [vmem:[%s974 + $0xb8] sm:$0xff]
        %v999 = vld [vmem:[%s974 + $0xc0] sm:$0xff]
        %v1000 = vld [vmem:[%s974 + $0xc8] sm:$0xff]
        %v1001 = vld [vmem:[%s974 + $0xd0] sm:$0xff]
        %v1002 = vld [vmem:[%s974 + $0xd8] sm:$0xff]
        %v1003 = vld [vmem:[%s974 + $0xe0] sm:$0xff]
        %v1004 = vld [vmem:[%s974 + $0xe8] sm:$0xff]
        %v1005 = vld [vmem:[%s974 + $0xf0] sm:$0xff]
        %v1006 = vld [vmem:[%s974 + $0xf8] sm:$0xff]
        %v1007 = vld [vmem:[%s974 + $0x100] sm:$0xff]
        %v1008 = vld [vmem:[%s974 + $0x108] sm:$0xff]
        %v1009 = vld [vmem:[%s974 + $0x110] sm:$0xff]
        %v1010 = vld [vmem:[%s974 + $0x118] sm:$0xff]
        %v1011 = vld [vmem:[%s974 + $0x120] sm:$0xff]
        %v1012 = vld [vmem:[%s974 + $0x128] sm:$0xff]
        %v1013 = vld [vmem:[%s974 + $0x130] sm:$0xff]
        %v1014 = vld [vmem:[%s974 + $0x138] sm:$0xff]
        %v1015 = vld [vmem:[%s974 + $0x140] sm:$0xff]
        %v1016 = vld [vmem:[%s974 + $0x148] sm:$0xff]
        %v1017 = vld [vmem:[%s974 + $0x150] sm:$0xff]
        %v1018 = vld [vmem:[%s974 + $0x158] sm:$0xff]
        %v1019 = vld [vmem:[%s974 + $0x160] sm:$0xff]
        %v1020 = vld [vmem:[%s974 + $0x168] sm:$0xff]
        %v1021 = vld [vmem:[%s974 + $0x170] sm:$0xff]
        %v1022 = vld [vmem:[%s974 + $0x178] sm:$0xff]
        %v1023 = vld [vmem:[%s974 + $0x180] sm:$0xff]
        %v1024 = vld [vmem:[%s974 + $0x188] sm:$0xff]
        %v1025 = vld [vmem:[%s974 + $0x190] sm:$0xff]
        %v1026 = vld [vmem:[%s974 + $0x198] sm:$0xff]
        %v1027 = vld [vmem:[%s974 + $0x1a0] sm:$0xff]
        %v1028 = vld [vmem:[%s974 + $0x1a8] sm:$0xff]
        %v1029 = vld [vmem:[%s974 + $0x1b0] sm:$0xff]
        %v1030 = vld [vmem:[%s974 + $0x1b8] sm:$0xff]
        %v1031 = vld [vmem:[%s974 + $0x1c0] sm:$0xff]
        %v1032 = vld [vmem:[%s974 + $0x1c8] sm:$0xff]
        %v1033 = vld [vmem:[%s974 + $0x1d0] sm:$0xff]
        %v1034 = vld [vmem:[%s974 + $0x1d8] sm:$0xff]
        %v1035 = vld [vmem:[%s974 + $0x1e0] sm:$0xff]
        %v1036 = vld [vmem:[%s974 + $0x1e8] sm:$0xff]
        %v1037 = vld [vmem:[%s974 + $0x1f0] sm:$0xff]
        %v1038 = vld [vmem:[%s974 + $0x1f8] sm:$0xff]
        %v1039 = vld [vmem:[%s974 + $0x200] sm:$0xff]
        %v1040 = vld [vmem:[%s974 + $0x208] sm:$0xff]
        %v1041 = vld [vmem:[%s974 + $0x210] sm:$0xff]
        %v1042 = vld [vmem:[%s974 + $0x218] sm:$0xff]
        %v1043 = vld [vmem:[%s974 + $0x220] sm:$0xff]
        %v1044 = vld [vmem:[%s974 + $0x228] sm:$0xff]
        %v1045 = vld [vmem:[%s974 + $0x230] sm:$0xff]
        %v1046 = vld [vmem:[%s974 + $0x238] sm:$0xff]
        %v1047 = vld [vmem:[%s974 + $0x240] sm:$0xff]
        %v1048 = vld [vmem:[%s974 + $0x248] sm:$0xff]
        %v1049 = vld [vmem:[%s974 + $0x250] sm:$0xff]
        %v1050 = vld [vmem:[%s974 + $0x258] sm:$0xff]
        %v1051 = vld [vmem:[%s974 + $0x260] sm:$0xff]
        %v1052 = vld [vmem:[%s974 + $0x268] sm:$0xff]
        %v1053 = vld [vmem:[%s974 + $0x270] sm:$0xff]
        %v1054 = vld [vmem:[%s974 + $0x278] sm:$0xff]
        %1055 = vmatprep.subr.mxu0 0.0
        %1056 = vmatpush1.msra.mxu0 %v975
        %1057 = vmatprep.subr.mxu0 0.0
        %1058 = vmatpush1.msra.mxu0 %v976
        %1059 = vmatprep.subr.mxu0 0.0
        %1060 = vmatpush1.msra.mxu0 %v977
        %1061 = vmatprep.subr.mxu0 0.0
        %1062 = vmatpush1.msra.mxu0 %v978
        %1063 = vmatprep.subr.mxu0 0.0
        %1064 = vmatpush1.msra.mxu0 %v979
        %1065 = vmatprep.subr.mxu0 0.0
        %1066 = vmatpush1.msra.mxu0 %v980
        %1067 = vmatprep.subr.mxu0 0.0
        %1068 = vmatpush1.msra.mxu0 %v981
        %1069 = vmatprep.subr.mxu0 0.0
        %1070 = vmatpush1.msra.mxu0 %v982
        %1071 = vmatprep.subr.mxu0 0.0
        %1072 = vmatpush1.msra.mxu0 %v983
        %1073 = vmatprep.subr.mxu0 0.0
        %1074 = vmatpush1.msra.mxu0 %v984
        %1075 = vmatprep.subr.mxu0 0.0
        %1076 = vmatpush1.msra.mxu0 %v985
        %1077 = vmatprep.subr.mxu0 0.0
        %1078 = vmatpush1.msra.mxu0 %v986
        %1079 = vmatprep.subr.mxu0 0.0
        %1080 = vmatpush1.msra.mxu0 %v987
        %1081 = vmatprep.subr.mxu0 0.0
        %1082 = vmatpush1.msra.mxu0 %v988
        %1083 = vmatprep.subr.mxu0 0.0
        %1084 = vmatpush1.msra.mxu0 %v989
        %1085 = vmatprep.subr.mxu0 0.0
        %1086 = vmatpush1.msra.mxu0 %v990
        %1087 = vmatprep.subr.mxu0 0.0
        %1088 = vmatpush1.msra.mxu0 %v991
        %1089 = vmatprep.subr.mxu0 0.0
        %1090 = vmatpush1.msra.mxu0 %v992
        %1091 = vmatprep.subr.mxu0 0.0
        %1092 = vmatpush1.msra.mxu0 %v993
        %1093 = vmatprep.subr.mxu0 0.0
        %1094 = vmatpush1.msra.mxu0 %v994
        %1095 = vmatprep.subr.mxu0 0.0
        %1096 = vmatpush1.msra.mxu0 %v995
        %1097 = vmatprep.subr.mxu0 0.0
        %1098 = vmatpush1.msra.mxu0 %v996
        %1099 = vmatprep.subr.mxu0 0.0
        %1100 = vmatpush1.msra.mxu0 %v997
        %1101 = vmatprep.subr.mxu0 0.0
        %1102 = vmatpush1.msra.mxu0 %v998
        %1103 = vmatprep.subr.mxu0 0.0
        %1104 = vmatpush1.msra.mxu0 %v999
        %1105 = vmatprep.subr.mxu0 0.0
        %1106 = vmatpush1.msra.mxu0 %v1000
        %1107 = vmatprep.subr.mxu0 0.0
        %1108 = vmatpush1.msra.mxu0 %v1001
        %1109 = vmatprep.subr.mxu0 0.0
        %1110 = vmatpush1.msra.mxu0 %v1002
        %1111 = vmatprep.subr.mxu0 0.0
        %1112 = vmatpush1.msra.mxu0 %v1003
        %1113 = vmatprep.subr.mxu0 0.0
        %1114 = vmatpush1.msra.mxu0 %v1004
        %1115 = vmatprep.subr.mxu0 0.0
        %1116 = vmatpush1.msra.mxu0 %v1005
        %1117 = vmatprep.subr.mxu0 0.0
        %1118 = vmatpush1.msra.mxu0 %v1006
        %1119 = vmatprep.mubr.f32.mxu0 %v864
        %1120 = vmatmul.mubr.f32.gmra.mrb[0].mxu0 %v838
        %v1121 = vpop.f32.mrb[0].mxu0
        %v1122 = vadd.f32 0.0, %v1121
        %v1123 = vpop.f32.mrb[0].mxu0
        %1124 = vmatprep.mubr.f32.mxu0 %v866
        %1125 = vmatmul.mubr.f32.gmra.mrb[0].mxu0 %v839
        %v1126 = vpop.f32.mrb[0].mxu0
        %v1127 = vadd.f32 0.0, %v1126
        %v1128 = vpop.f32.mrb[0].mxu0
        %1129 = vmatprep.mubr.f32.mxu0 %v869
        %1130 = vmatmul.mubr.f32.gmra.mrb[0].mxu0 %v841
        %v1131 = vpop.f32.mrb[0].mxu0
        %v1132 = vadd.f32 0.0, %v1131
        %v1133 = vpop.f32.mrb[0].mxu0
        %1134 = vmatprep.mubr.f32.mxu0 %v871
        %1135 = vmatmul.mubr.f32.gmra.mrb[0].mxu0 %v842
        %v1136 = vpop.f32.mrb[0].mxu0
        %v1137 = vadd.f32 0.0, %v1136
        %v1138 = vpop.f32.mrb[0].mxu0
        %1139 = vmatprep.mubr.f32.mxu0 %v874
        %1140 = vmatmul.mubr.f32.gmra.mrb[0].mxu0 %v844
        %v1141 = vpop.f32.mrb[0].mxu0
        %v1142 = vadd.f32 0.0, %v1141
        %v1143 = vpop.f32.mrb[0].mxu0
        %1144 = vmatprep.mubr.f32.mxu0 %v876
        %1145 = vmatmul.mubr.f32.gmra.mrb[0].mxu0 %v845
        %v1146 = vpop.f32.mrb[0].mxu0
        %v1147 = vadd.f32 0.0, %v1146
        %v1148 = vpop.f32.mrb[0].mxu0
        %1149 = vmatprep.mubr.f32.mxu0 %v879
        %1150 = vmatmul.mubr.f32.gmra.mrb[0].mxu0 %v847
        %v1151 = vpop.f32.mrb[0].mxu0
        %v1152 = vadd.f32 0.0, %v1151
        %v1153 = vpop.f32.mrb[0].mxu0
        %1154 = vmatprep.mubr.f32.mxu0 %v881
        %1155 = vmatmul.mubr.f32.gmra.mrb[0].mxu0 %v848
        %v1156 = vpop.f32.mrb[0].mxu0
        %v1157 = vadd.f32 0.0, %v1156
        %v1158 = vpop.f32.mrb[0].mxu0
        %1159 = vdwg.mxu0
        %1160 = vmatprep.subr.mxu0 0.0
        %1161 = vmatpush1.msra.mxu0 %v1007
        %1162 = vmatprep.subr.mxu0 0.0
        %1163 = vmatpush1.msra.mxu0 %v1008
        %1164 = vmatprep.subr.mxu0 0.0
        %1165 = vmatpush1.msra.mxu0 %v1009
        %1166 = vmatprep.subr.mxu0 0.0
        %1167 = vmatpush1.msra.mxu0 %v1010
        %1168 = vmatprep.subr.mxu0 0.0
        %1169 = vmatpush1.msra.mxu0 %v1011
        %1170 = vmatprep.subr.mxu0 0.0
        %1171 = vmatpush1.msra.mxu0 %v1012
        %1172 = vmatprep.subr.mxu0 0.0
        %1173 = vmatpush1.msra.mxu0 %v1013
        %1174 = vmatprep.subr.mxu0 0.0
        %1175 = vmatpush1.msra.mxu0 %v1014
        %1176 = vmatprep.subr.mxu0 0.0
        %1177 = vmatpush1.msra.mxu0 %v1015
        %1178 = vmatprep.subr.mxu0 0.0
        %1179 = vmatpush1.msra.mxu0 %v1016
        %1180 = vmatprep.subr.mxu0 0.0
        %1181 = vmatpush1.msra.mxu0 %v1017
        %1182 = vmatprep.subr.mxu0 0.0
        %1183 = vmatpush1.msra.mxu0 %v1018
        %1184 = vmatprep.subr.mxu0 0.0
        %1185 = vmatpush1.msra.mxu0 %v1019
        %1186 = vmatprep.subr.mxu0 0.0
        %1187 = vmatpush1.msra.mxu0 %v1020
        %1188 = vmatprep.subr.mxu0 0.0
        %1189 = vmatpush1.msra.mxu0 %v1021
        %1190 = vmatprep.subr.mxu0 0.0
        %1191 = vmatpush1.msra.mxu0 %v1022
        %1192 = vmatprep.subr.mxu0 0.0
        %1193 = vmatpush1.msra.mxu0 %v1023
        %1194 = vmatprep.subr.mxu0 0.0
        %1195 = vmatpush1.msra.mxu0 %v1024
        %1196 = vmatprep.subr.mxu0 0.0
        %1197 = vmatpush1.msra.mxu0 %v1025
        %1198 = vmatprep.subr.mxu0 0.0
        %1199 = vmatpush1.msra.mxu0 %v1026
        %1200 = vmatprep.subr.mxu0 0.0
        %1201 = vmatpush1.msra.mxu0 %v1027
        %1202 = vmatprep.subr.mxu0 0.0
        %1203 = vmatpush1.msra.mxu0 %v1028
        %1204 = vmatprep.subr.mxu0 0.0
        %1205 = vmatpush1.msra.mxu0 %v1029
        %1206 = vmatprep.subr.mxu0 0.0
        %1207 = vmatpush1.msra.mxu0 %v1030
        %1208 = vmatprep.subr.mxu0 0.0
        %1209 = vmatpush1.msra.mxu0 %v1031
        %1210 = vmatprep.subr.mxu0 0.0
        %1211 = vmatpush1.msra.mxu0 %v1032
        %1212 = vmatprep.subr.mxu0 0.0
        %1213 = vmatpush1.msra.mxu0 %v1033
        %1214 = vmatprep.subr.mxu0 0.0
        %1215 = vmatpush1.msra.mxu0 %v1034
        %1216 = vmatprep.subr.mxu0 0.0
        %1217 = vmatpush1.msra.mxu0 %v1035
        %1218 = vmatprep.subr.mxu0 0.0
        %1219 = vmatpush1.msra.mxu0 %v1036
        %1220 = vmatprep.subr.mxu0 0.0
        %1221 = vmatpush1.msra.mxu0 %v1037
        %1222 = vmatprep.subr.mxu0 0.0
        %1223 = vmatpush1.msra.mxu0 %v1038
        %1224 = vmatprep.mubr.f32.mxu0 %v920
        %1225 = vmatmul.mubr.f32.gmra.mrb[0].mxu0 %v892
        %v1226 = vpop.f32.mrb[0].mxu0
        %v1227 = vadd.f32 %v1122, %v1226
        %v1228 = vpop.f32.mrb[0].mxu0
        %1229 = vmatprep.mubr.f32.mxu0 %v922
        %1230 = vmatmul.mubr.f32.gmra.mrb[0].mxu0 %v894
        %v1231 = vpop.f32.mrb[0].mxu0
        %v1232 = vadd.f32 %v1127, %v1231
        %v1233 = vpop.f32.mrb[0].mxu0
        %1234 = vmatprep.mubr.f32.mxu0 %v925
        %1235 = vmatmul.mubr.f32.gmra.mrb[0].mxu0 %v897
        %v1236 = vpop.f32.mrb[0].mxu0
        %v1237 = vadd.f32 %v1132, %v1236
        %v1238 = vpop.f32.mrb[0].mxu0
        %1239 = vmatprep.mubr.f32.mxu0 %v927
        %1240 = vmatmul.mubr.f32.gmra.mrb[0].mxu0 %v899
        %v1241 = vpop.f32.mrb[0].mxu0
        %v1242 = vadd.f32 %v1137, %v1241
        %v1243 = vpop.f32.mrb[0].mxu0
        %1244 = vmatprep.mubr.f32.mxu0 %v930
        %1245 = vmatmul.mubr.f32.gmra.mrb[0].mxu0 %v902
        %v1246 = vpop.f32.mrb[0].mxu0
        %v1247 = vadd.f32 %v1142, %v1246
        %v1248 = vpop.f32.mrb[0].mxu0
        %1249 = vmatprep.mubr.f32.mxu0 %v932
        %1250 = vmatmul.mubr.f32.gmra.mrb[0].mxu0 %v904
        %v1251 = vpop.f32.mrb[0].mxu0
        %v1252 = vadd.f32 %v1147, %v1251
        %v1253 = vpop.f32.mrb[0].mxu0
        %1254 = vmatprep.mubr.f32.mxu0 %v935
        %1255 = vmatmul.mubr.f32.gmra.mrb[0].mxu0 %v907
        %v1256 = vpop.f32.mrb[0].mxu0
        %v1257 = vadd.f32 %v1152, %v1256
        %v1258 = vpop.f32.mrb[0].mxu0
        %1259 = vmatprep.mubr.f32.mxu0 %v937
        %1260 = vmatmul.mubr.f32.gmra.mrb[0].mxu0 %v909
        %v1261 = vpop.f32.mrb[0].mxu0
        %v1262 = vadd.f32 %v1157, %v1261
        %v1263 = vpop.f32.mrb[0].mxu0
        %1264 = vdwg.mxu0
        %1265 = vmatprep.subr.mxu0 0.0
        %1266 = vmatpush1.msra.mxu0 %v1039
        %1267 = vmatprep.subr.mxu0 0.0
        %1268 = vmatpush1.msra.mxu0 %v1040
        %1269 = vmatprep.subr.mxu0 0.0
        %1270 = vmatpush1.msra.mxu0 %v1041
        %1271 = vmatprep.subr.mxu0 0.0
        %1272 = vmatpush1.msra.mxu0 %v1042
        %1273 = vmatprep.subr.mxu0 0.0
        %1274 = vmatpush1.msra.mxu0 %v1043
        %1275 = vmatprep.subr.mxu0 0.0
        %1276 = vmatpush1.msra.mxu0 %v1044
        %1277 = vmatprep.subr.mxu0 0.0
        %1278 = vmatpush1.msra.mxu0 %v1045
        %1279 = vmatprep.subr.mxu0 0.0
        %1280 = vmatpush1.msra.mxu0 %v1046
        %1281 = vmatprep.subr.mxu0 0.0
        %1282 = vmatpush1.msra.mxu0 %v1047
        %1283 = vmatprep.subr.mxu0 0.0
        %1284 = vmatpush1.msra.mxu0 %v1048
        %1285 = vmatprep.subr.mxu0 0.0
        %1286 = vmatpush1.msra.mxu0 %v1049
        %1287 = vmatprep.subr.mxu0 0.0
        %1288 = vmatpush1.msra.mxu0 %v1050
        %1289 = vmatprep.subr.mxu0 0.0
        %1290 = vmatpush1.msra.mxu0 %v1051
        %1291 = vmatprep.subr.mxu0 0.0
        %1292 = vmatpush1.msra.mxu0 %v1052
        %1293 = vmatprep.subr.mxu0 0.0
        %1294 = vmatpush1.msra.mxu0 %v1053
        %1295 = vmatprep.subr.mxu0 0.0
        %1296 = vmatpush1.msra.mxu0 %v1054
        %1297 = vmatprep.subr.mxu0 0.0
        %1298 = vmatpush1.msra.mxu0 0.0
        %1299 = vmatprep.subr.mxu0 0.0
        %1300 = vmatpush1.msra.mxu0 0.0
        %1301 = vmatprep.subr.mxu0 0.0
        %1302 = vmatpush1.msra.mxu0 0.0
        %1303 = vmatprep.subr.mxu0 0.0
        %1304 = vmatpush1.msra.mxu0 0.0
        %1305 = vmatprep.subr.mxu0 0.0
        %1306 = vmatpush1.msra.mxu0 0.0
        %1307 = vmatprep.subr.mxu0 0.0
        %1308 = vmatpush1.msra.mxu0 0.0
        %1309 = vmatprep.subr.mxu0 0.0
        %1310 = vmatpush1.msra.mxu0 0.0
        %1311 = vmatprep.subr.mxu0 0.0
        %1312 = vmatpush1.msra.mxu0 0.0
        %1313 = vmatprep.subr.mxu0 0.0
        %1314 = vmatpush1.msra.mxu0 0.0
        %1315 = vmatprep.subr.mxu0 0.0
        %1316 = vmatpush1.msra.mxu0 0.0
        %1317 = vmatprep.subr.mxu0 0.0
        %1318 = vmatpush1.msra.mxu0 0.0
        %1319 = vmatprep.subr.mxu0 0.0
        %1320 = vmatpush1.msra.mxu0 0.0
        %1321 = vmatprep.subr.mxu0 0.0
        %1322 = vmatpush1.msra.mxu0 0.0
        %1323 = vmatprep.subr.mxu0 0.0
        %1324 = vmatpush1.msra.mxu0 0.0
        %1325 = vmatprep.subr.mxu0 0.0
        %1326 = vmatpush1.msra.mxu0 0.0
        %1327 = vmatprep.subr.mxu0 0.0
        %1328 = vmatpush1.msra.mxu0 0.0
        %1329 = vmatprep.mubr.f32.mxu0 0.0
        %1330 = vmatmul.mubr.f32.gmra.mrb[0].mxu0 %v948
        %v1331 = vpop.f32.mrb[0].mxu0
        %v1332 = vadd.f32 %v1227, %v1331
        %v1333 = vpop.f32.mrb[0].mxu0
        %1334 = vmatprep.mubr.f32.mxu0 0.0
        %1335 = vmatmul.mubr.f32.gmra.mrb[0].mxu0 %v950
        %v1336 = vpop.f32.mrb[0].mxu0
        %v1337 = vadd.f32 %v1232, %v1336
        %v1338 = vpop.f32.mrb[0].mxu0
        %1339 = vmatprep.mubr.f32.mxu0 0.0
        %1340 = vmatmul.mubr.f32.gmra.mrb[0].mxu0 %v953
        %v1341 = vpop.f32.mrb[0].mxu0
        %v1342 = vadd.f32 %v1237, %v1341
        %v1343 = vpop.f32.mrb[0].mxu0
        %1344 = vmatprep.mubr.f32.mxu0 0.0
        %1345 = vmatmul.mubr.f32.gmra.mrb[0].mxu0 %v955
        %v1346 = vpop.f32.mrb[0].mxu0
        %v1347 = vadd.f32 %v1242, %v1346
        %v1348 = vpop.f32.mrb[0].mxu0
        %1349 = vmatprep.mubr.f32.mxu0 0.0
        %1350 = vmatmul.mubr.f32.gmra.mrb[0].mxu0 %v958
        %v1351 = vpop.f32.mrb[0].mxu0
        %v1352 = vadd.f32 %v1247, %v1351
        %v1353 = vpop.f32.mrb[0].mxu0
        %1354 = vmatprep.mubr.f32.mxu0 0.0
        %1355 = vmatmul.mubr.f32.gmra.mrb[0].mxu0 %v960
        %v1356 = vpop.f32.mrb[0].mxu0
        %v1357 = vadd.f32 %v1252, %v1356
        %v1358 = vpop.f32.mrb[0].mxu0
        %1359 = vmatprep.mubr.f32.mxu0 0.0
        %1360 = vmatmul.mubr.f32.gmra.mrb[0].mxu0 %v963
        %v1361 = vpop.f32.mrb[0].mxu0
        %v1362 = vadd.f32 %v1257, %v1361
        %v1363 = vpop.f32.mrb[0].mxu0
        %1364 = vmatprep.mubr.f32.mxu0 0.0
        %1365 = vmatmul.mubr.f32.gmra.mrb[0].mxu0 %v965
        %v1366 = vpop.f32.mrb[0].mxu0
        %v1367 = vadd.f32 %v1262, %v1366
        %v1368 = vpop.f32.mrb[0].mxu0
        %1369 = vdwg.mxu0
        %v1370 = vld [vmem:[#allocation4] sm:$0xff]
        %v1371 = vld [vmem:[#allocation4 + $0x8] sm:$0xff]
        %v1372 = vld [vmem:[#allocation4 + $0x10] sm:$0xff]
        %v1373 = vld [vmem:[#allocation4 + $0x18] sm:$0xff]
        %v1374 = vld [vmem:[#allocation4 + $0x20] sm:$0xff]
        %v1375 = vld [vmem:[#allocation4 + $0x28] sm:$0xff]
        %v1376 = vld [vmem:[#allocation4 + $0x30] sm:$0xff]
        %v1377 = vld [vmem:[#allocation4 + $0x38] sm:$0xff]
        %v1378 = vadd.f32 %v1370, %v1332
        %v1379 = vadd.f32 %v1371, %v1337
        %v1380 = vadd.f32 %v1372, %v1342
        %v1381 = vadd.f32 %v1373, %v1347
        %v1382 = vadd.f32 %v1374, %v1352
        %v1383 = vadd.f32 %v1375, %v1357
        %v1384 = vadd.f32 %v1376, %v1362
        %v1385 = vadd.f32 %v1377, %v1367
        %1386 = vst [vmem:[#allocation4] sm:$0xff] %v1378
        %1387 = vst [vmem:[#allocation4 + $0x8] sm:$0xff] %v1379
        %1388 = vst [vmem:[#allocation4 + $0x10] sm:$0xff] %v1380
        %1389 = vst [vmem:[#allocation4 + $0x18] sm:$0xff] %v1381
        %1390 = vst [vmem:[#allocation4 + $0x20] sm:$0xff] %v1382
        %1391 = vst [vmem:[#allocation4 + $0x28] sm:$0xff] %v1383
        %1392 = vst [vmem:[#allocation4 + $0x30] sm:$0xff] %v1384
        %1393 = vst [vmem:[#allocation4 + $0x38] sm:$0xff] %v1385
        %s1394 = scalar_lea.vmem [#allocation2], 48
        %v1395 = vld [vmem:[%s1394] sm:$0xff]
        %v1396 = vld [vmem:[%s1394 + $0x8] sm:$0xff]
        %v1397 = vld [vmem:[%s1394 + $0x10] sm:$0xf]
        %v1398 = vld [vmem:[%s1394 + $0x18] sm:$0xff]
        %v1399 = vld [vmem:[%s1394 + $0x20] sm:$0xff]
        %v1400 = vld [vmem:[%s1394 + $0x28] sm:$0xf]
        %v1401 = vld [vmem:[%s1394 + $0x30] sm:$0xff]
        %v1402 = vld [vmem:[%s1394 + $0x38] sm:$0xff]
        %v1403 = vld [vmem:[%s1394 + $0x40] sm:$0xf]
        %v1404 = vld [vmem:[%s1394 + $0x48] sm:$0xff]
        %v1405 = vld [vmem:[%s1394 + $0x50] sm:$0xff]
        %v1406 = vld [vmem:[%s1394 + $0x58] sm:$0xf]
        %v1419 = vrot.slane %v1395, 1
        %v1420 = vrot.slane %v1396, 1
        %v1421 = vsel %vm311, %v1419, %v1420
        %v1422 = vrot.slane %v1397, 1
        %v1423 = vsel %vm311, %v1420, %v1422
        %v1424 = vrot.slane %v1398, 1
        %v1425 = vrot.slane %v1399, 1
        %v1426 = vsel %vm311, %v1424, %v1425
        %v1427 = vrot.slane %v1400, 1
        %v1428 = vsel %vm311, %v1425, %v1427
        %v1429 = vrot.slane %v1401, 1
        %v1430 = vrot.slane %v1402, 1
        %v1431 = vsel %vm311, %v1429, %v1430
        %v1432 = vrot.slane %v1403, 1
        %v1433 = vsel %vm311, %v1430, %v1432
        %v1434 = vrot.slane %v1404, 1
        %v1435 = vrot.slane %v1405, 1
        %v1436 = vsel %vm311, %v1434, %v1435
        %v1437 = vrot.slane %v1406, 1
        %v1438 = vsel %vm311, %v1435, %v1437
        %v1447 = vrot.slane %v1395, 2
        %v1448 = vrot.slane %v1396, 2
        %v1449 = vsel %vm340, %v1447, %v1448
        %v1450 = vrot.slane %v1397, 2
        %v1451 = vsel %vm340, %v1448, %v1450
        %v1452 = vrot.slane %v1398, 2
        %v1453 = vrot.slane %v1399, 2
        %v1454 = vsel %vm340, %v1452, %v1453
        %v1455 = vrot.slane %v1400, 2
        %v1456 = vsel %vm340, %v1453, %v1455
        %v1457 = vrot.slane %v1401, 2
        %v1458 = vrot.slane %v1402, 2
        %v1459 = vsel %vm340, %v1457, %v1458
        %v1460 = vrot.slane %v1403, 2
        %v1461 = vsel %vm340, %v1458, %v1460
        %v1462 = vrot.slane %v1404, 2
        %v1463 = vrot.slane %v1405, 2
        %v1464 = vsel %vm340, %v1462, %v1463
        %v1465 = vrot.slane %v1406, 2
        %v1466 = vsel %vm340, %v1463, %v1465
        %v1475 = vrot.slane %v1395, 3
        %v1476 = vrot.slane %v1396, 3
        %v1477 = vsel %vm369, %v1475, %v1476
        %v1478 = vrot.slane %v1397, 3
        %v1479 = vsel %vm369, %v1476, %v1478
        %v1480 = vrot.slane %v1398, 3
        %v1481 = vrot.slane %v1399, 3
        %v1482 = vsel %vm369, %v1480, %v1481
        %v1483 = vrot.slane %v1400, 3
        %v1484 = vsel %vm369, %v1481, %v1483
        %v1485 = vrot.slane %v1401, 3
        %v1486 = vrot.slane %v1402, 3
        %v1487 = vsel %vm369, %v1485, %v1486
        %v1488 = vrot.slane %v1403, 3
        %v1489 = vsel %vm369, %v1486, %v1488
        %v1490 = vrot.slane %v1404, 3
        %v1491 = vrot.slane %v1405, 3
        %v1492 = vsel %vm369, %v1490, %v1491
        %v1493 = vrot.slane %v1406, 3
        %v1494 = vsel %vm369, %v1491, %v1493
        %v1503 = vrot.slane %v1395, 4
        %v1504 = vrot.slane %v1396, 4
        %v1505 = vsel %vm398, %v1503, %v1504
        %v1506 = vrot.slane %v1397, 4
        %v1507 = vsel %vm398, %v1504, %v1506
        %v1508 = vrot.slane %v1398, 4
        %v1509 = vrot.slane %v1399, 4
        %v1510 = vsel %vm398, %v1508, %v1509
        %v1511 = vrot.slane %v1400, 4
        %v1512 = vsel %vm398, %v1509, %v1511
        %v1513 = vrot.slane %v1401, 4
        %v1514 = vrot.slane %v1402, 4
        %v1515 = vsel %vm398, %v1513, %v1514
        %v1516 = vrot.slane %v1403, 4
        %v1517 = vsel %vm398, %v1514, %v1516
        %v1518 = vrot.slane %v1404, 4
        %v1519 = vrot.slane %v1405, 4
        %v1520 = vsel %vm398, %v1518, %v1519
        %v1521 = vrot.slane %v1406, 4
        %v1522 = vsel %vm398, %v1519, %v1521
        %s1531 = scalar_lea.vmem [#allocation5], 1280
        %v1532 = vld [vmem:[%s1531] sm:$0xff]
        %v1533 = vld [vmem:[%s1531 + $0x8] sm:$0xff]
        %v1534 = vld [vmem:[%s1531 + $0x10] sm:$0xff]
        %v1535 = vld [vmem:[%s1531 + $0x18] sm:$0xff]
        %v1536 = vld [vmem:[%s1531 + $0x20] sm:$0xff]
        %v1537 = vld [vmem:[%s1531 + $0x28] sm:$0xff]
        %v1538 = vld [vmem:[%s1531 + $0x30] sm:$0xff]
        %v1539 = vld [vmem:[%s1531 + $0x38] sm:$0xff]
        %v1540 = vld [vmem:[%s1531 + $0x40] sm:$0xff]
        %v1541 = vld [vmem:[%s1531 + $0x48] sm:$0xff]
        %v1542 = vld [vmem:[%s1531 + $0x50] sm:$0xff]
        %v1543 = vld [vmem:[%s1531 + $0x58] sm:$0xff]
        %v1544 = vld [vmem:[%s1531 + $0x60] sm:$0xff]
        %v1545 = vld [vmem:[%s1531 + $0x68] sm:$0xff]
        %v1546 = vld [vmem:[%s1531 + $0x70] sm:$0xff]
        %v1547 = vld [vmem:[%s1531 + $0x78] sm:$0xff]
        %v1548 = vld [vmem:[%s1531 + $0x80] sm:$0xff]
        %v1549 = vld [vmem:[%s1531 + $0x88] sm:$0xff]
        %v1550 = vld [vmem:[%s1531 + $0x90] sm:$0xff]
        %v1551 = vld [vmem:[%s1531 + $0x98] sm:$0xff]
        %v1552 = vld [vmem:[%s1531 + $0xa0] sm:$0xff]
        %v1553 = vld [vmem:[%s1531 + $0xa8] sm:$0xff]
        %v1554 = vld [vmem:[%s1531 + $0xb0] sm:$0xff]
        %v1555 = vld [vmem:[%s1531 + $0xb8] sm:$0xff]
        %v1556 = vld [vmem:[%s1531 + $0xc0] sm:$0xff]
        %v1557 = vld [vmem:[%s1531 + $0xc8] sm:$0xff]
        %v1558 = vld [vmem:[%s1531 + $0xd0] sm:$0xff]
        %v1559 = vld [vmem:[%s1531 + $0xd8] sm:$0xff]
        %v1560 = vld [vmem:[%s1531 + $0xe0] sm:$0xff]
        %v1561 = vld [vmem:[%s1531 + $0xe8] sm:$0xff]
        %v1562 = vld [vmem:[%s1531 + $0xf0] sm:$0xff]
        %v1563 = vld [vmem:[%s1531 + $0xf8] sm:$0xff]
        %v1564 = vld [vmem:[%s1531 + $0x100] sm:$0xff]
        %v1565 = vld [vmem:[%s1531 + $0x108] sm:$0xff]
        %v1566 = vld [vmem:[%s1531 + $0x110] sm:$0xff]
        %v1567 = vld [vmem:[%s1531 + $0x118] sm:$0xff]
        %v1568 = vld [vmem:[%s1531 + $0x120] sm:$0xff]
        %v1569 = vld [vmem:[%s1531 + $0x128] sm:$0xff]
        %v1570 = vld [vmem:[%s1531 + $0x130] sm:$0xff]
        %v1571 = vld [vmem:[%s1531 + $0x138] sm:$0xff]
        %v1572 = vld [vmem:[%s1531 + $0x140] sm:$0xff]
        %v1573 = vld [vmem:[%s1531 + $0x148] sm:$0xff]
        %v1574 = vld [vmem:[%s1531 + $0x150] sm:$0xff]
        %v1575 = vld [vmem:[%s1531 + $0x158] sm:$0xff]
        %v1576 = vld [vmem:[%s1531 + $0x160] sm:$0xff]
        %v1577 = vld [vmem:[%s1531 + $0x168] sm:$0xff]
        %v1578 = vld [vmem:[%s1531 + $0x170] sm:$0xff]
        %v1579 = vld [vmem:[%s1531 + $0x178] sm:$0xff]
        %v1580 = vld [vmem:[%s1531 + $0x180] sm:$0xff]
        %v1581 = vld [vmem:[%s1531 + $0x188] sm:$0xff]
        %v1582 = vld [vmem:[%s1531 + $0x190] sm:$0xff]
        %v1583 = vld [vmem:[%s1531 + $0x198] sm:$0xff]
        %v1584 = vld [vmem:[%s1531 + $0x1a0] sm:$0xff]
        %v1585 = vld [vmem:[%s1531 + $0x1a8] sm:$0xff]
        %v1586 = vld [vmem:[%s1531 + $0x1b0] sm:$0xff]
        %v1587 = vld [vmem:[%s1531 + $0x1b8] sm:$0xff]
        %v1588 = vld [vmem:[%s1531 + $0x1c0] sm:$0xff]
        %v1589 = vld [vmem:[%s1531 + $0x1c8] sm:$0xff]
        %v1590 = vld [vmem:[%s1531 + $0x1d0] sm:$0xff]
        %v1591 = vld [vmem:[%s1531 + $0x1d8] sm:$0xff]
        %v1592 = vld [vmem:[%s1531 + $0x1e0] sm:$0xff]
        %v1593 = vld [vmem:[%s1531 + $0x1e8] sm:$0xff]
        %v1594 = vld [vmem:[%s1531 + $0x1f0] sm:$0xff]
        %v1595 = vld [vmem:[%s1531 + $0x1f8] sm:$0xff]
        %v1596 = vld [vmem:[%s1531 + $0x200] sm:$0xff]
        %v1597 = vld [vmem:[%s1531 + $0x208] sm:$0xff]
        %v1598 = vld [vmem:[%s1531 + $0x210] sm:$0xff]
        %v1599 = vld [vmem:[%s1531 + $0x218] sm:$0xff]
        %v1600 = vld [vmem:[%s1531 + $0x220] sm:$0xff]
        %v1601 = vld [vmem:[%s1531 + $0x228] sm:$0xff]
        %v1602 = vld [vmem:[%s1531 + $0x230] sm:$0xff]
        %v1603 = vld [vmem:[%s1531 + $0x238] sm:$0xff]
        %v1604 = vld [vmem:[%s1531 + $0x240] sm:$0xff]
        %v1605 = vld [vmem:[%s1531 + $0x248] sm:$0xff]
        %v1606 = vld [vmem:[%s1531 + $0x250] sm:$0xff]
        %v1607 = vld [vmem:[%s1531 + $0x258] sm:$0xff]
        %v1608 = vld [vmem:[%s1531 + $0x260] sm:$0xff]
        %v1609 = vld [vmem:[%s1531 + $0x268] sm:$0xff]
        %v1610 = vld [vmem:[%s1531 + $0x270] sm:$0xff]
        %v1611 = vld [vmem:[%s1531 + $0x278] sm:$0xff]
        %1612 = vmatprep.subr.mxu0 0.0
        %1613 = vmatpush1.msra.mxu0 %v1532
        %1614 = vmatprep.subr.mxu0 0.0
        %1615 = vmatpush1.msra.mxu0 %v1533
        %1616 = vmatprep.subr.mxu0 0.0
        %1617 = vmatpush1.msra.mxu0 %v1534
        %1618 = vmatprep.subr.mxu0 0.0
        %1619 = vmatpush1.msra.mxu0 %v1535
        %1620 = vmatprep.subr.mxu0 0.0
        %1621 = vmatpush1.msra.mxu0 %v1536
        %1622 = vmatprep.subr.mxu0 0.0
        %1623 = vmatpush1.msra.mxu0 %v1537
        %1624 = vmatprep.subr.mxu0 0.0
        %1625 = vmatpush1.msra.mxu0 %v1538
        %1626 = vmatprep.subr.mxu0 0.0
        %1627 = vmatpush1.msra.mxu0 %v1539
        %1628 = vmatprep.subr.mxu0 0.0
        %1629 = vmatpush1.msra.mxu0 %v1540
        %1630 = vmatprep.subr.mxu0 0.0
        %1631 = vmatpush1.msra.mxu0 %v1541
        %1632 = vmatprep.subr.mxu0 0.0
        %1633 = vmatpush1.msra.mxu0 %v1542
        %1634 = vmatprep.subr.mxu0 0.0
        %1635 = vmatpush1.msra.mxu0 %v1543
        %1636 = vmatprep.subr.mxu0 0.0
        %1637 = vmatpush1.msra.mxu0 %v1544
        %1638 = vmatprep.subr.mxu0 0.0
        %1639 = vmatpush1.msra.mxu0 %v1545
        %1640 = vmatprep.subr.mxu0 0.0
        %1641 = vmatpush1.msra.mxu0 %v1546
        %1642 = vmatprep.subr.mxu0 0.0
        %1643 = vmatpush1.msra.mxu0 %v1547
        %1644 = vmatprep.subr.mxu0 0.0
        %1645 = vmatpush1.msra.mxu0 %v1548
        %1646 = vmatprep.subr.mxu0 0.0
        %1647 = vmatpush1.msra.mxu0 %v1549
        %1648 = vmatprep.subr.mxu0 0.0
        %1649 = vmatpush1.msra.mxu0 %v1550
        %1650 = vmatprep.subr.mxu0 0.0
        %1651 = vmatpush1.msra.mxu0 %v1551
        %1652 = vmatprep.subr.mxu0 0.0
        %1653 = vmatpush1.msra.mxu0 %v1552
        %1654 = vmatprep.subr.mxu0 0.0
        %1655 = vmatpush1.msra.mxu0 %v1553
        %1656 = vmatprep.subr.mxu0 0.0
        %1657 = vmatpush1.msra.mxu0 %v1554
        %1658 = vmatprep.subr.mxu0 0.0
        %1659 = vmatpush1.msra.mxu0 %v1555
        %1660 = vmatprep.subr.mxu0 0.0
        %1661 = vmatpush1.msra.mxu0 %v1556
        %1662 = vmatprep.subr.mxu0 0.0
        %1663 = vmatpush1.msra.mxu0 %v1557
        %1664 = vmatprep.subr.mxu0 0.0
        %1665 = vmatpush1.msra.mxu0 %v1558
        %1666 = vmatprep.subr.mxu0 0.0
        %1667 = vmatpush1.msra.mxu0 %v1559
        %1668 = vmatprep.subr.mxu0 0.0
        %1669 = vmatpush1.msra.mxu0 %v1560
        %1670 = vmatprep.subr.mxu0 0.0
        %1671 = vmatpush1.msra.mxu0 %v1561
        %1672 = vmatprep.subr.mxu0 0.0
        %1673 = vmatpush1.msra.mxu0 %v1562
        %1674 = vmatprep.subr.mxu0 0.0
        %1675 = vmatpush1.msra.mxu0 %v1563
        %1676 = vmatprep.mubr.f32.mxu0 %v1421
        %1677 = vmatmul.mubr.f32.gmra.mrb[0].mxu0 %v1395
        %v1678 = vpop.f32.mrb[0].mxu0
        %v1679 = vadd.f32 0.0, %v1678
        %v1680 = vpop.f32.mrb[0].mxu0
        %1681 = vmatprep.mubr.f32.mxu0 %v1423
        %1682 = vmatmul.mubr.f32.gmra.mrb[0].mxu0 %v1396
        %v1683 = vpop.f32.mrb[0].mxu0
        %v1684 = vadd.f32 0.0, %v1683
        %v1685 = vpop.f32.mrb[0].mxu0
        %1686 = vmatprep.mubr.f32.mxu0 %v1426
        %1687 = vmatmul.mubr.f32.gmra.mrb[0].mxu0 %v1398
        %v1688 = vpop.f32.mrb[0].mxu0
        %v1689 = vadd.f32 0.0, %v1688
        %v1690 = vpop.f32.mrb[0].mxu0
        %1691 = vmatprep.mubr.f32.mxu0 %v1428
        %1692 = vmatmul.mubr.f32.gmra.mrb[0].mxu0 %v1399
        %v1693 = vpop.f32.mrb[0].mxu0
        %v1694 = vadd.f32 0.0, %v1693
        %v1695 = vpop.f32.mrb[0].mxu0
        %1696 = vmatprep.mubr.f32.mxu0 %v1431
        %1697 = vmatmul.mubr.f32.gmra.mrb[0].mxu0 %v1401
        %v1698 = vpop.f32.mrb[0].mxu0
        %v1699 = vadd.f32 0.0, %v1698
        %v1700 = vpop.f32.mrb[0].mxu0
        %1701 = vmatprep.mubr.f32.mxu0 %v1433
        %1702 = vmatmul.mubr.f32.gmra.mrb[0].mxu0 %v1402
        %v1703 = vpop.f32.mrb[0].mxu0
        %v1704 = vadd.f32 0.0, %v1703
        %v1705 = vpop.f32.mrb[0].mxu0
        %1706 = vmatprep.mubr.f32.mxu0 %v1436
        %1707 = vmatmul.mubr.f32.gmra.mrb[0].mxu0 %v1404
        %v1708 = vpop.f32.mrb[0].mxu0
        %v1709 = vadd.f32 0.0, %v1708
        %v1710 = vpop.f32.mrb[0].mxu0
        %1711 = vmatprep.mubr.f32.mxu0 %v1438
        %1712 = vmatmul.mubr.f32.gmra.mrb[0].mxu0 %v1405
        %v1713 = vpop.f32.mrb[0].mxu0
        %v1714 = vadd.f32 0.0, %v1713
        %v1715 = vpop.f32.mrb[0].mxu0
        %1716 = vdwg.mxu0
        %1717 = vmatprep.subr.mxu0 0.0
        %1718 = vmatpush1.msra.mxu0 %v1564
        %1719 = vmatprep.subr.mxu0 0.0
        %1720 = vmatpush1.msra.mxu0 %v1565
        %1721 = vmatprep.subr.mxu0 0.0
        %1722 = vmatpush1.msra.mxu0 %v1566
        %1723 = vmatprep.subr.mxu0 0.0
        %1724 = vmatpush1.msra.mxu0 %v1567
        %1725 = vmatprep.subr.mxu0 0.0
        %1726 = vmatpush1.msra.mxu0 %v1568
        %1727 = vmatprep.subr.mxu0 0.0
        %1728 = vmatpush1.msra.mxu0 %v1569
        %1729 = vmatprep.subr.mxu0 0.0
        %1730 = vmatpush1.msra.mxu0 %v1570
        %1731 = vmatprep.subr.mxu0 0.0
        %1732 = vmatpush1.msra.mxu0 %v1571
        %1733 = vmatprep.subr.mxu0 0.0
        %1734 = vmatpush1.msra.mxu0 %v1572
        %1735 = vmatprep.subr.mxu0 0.0
        %1736 = vmatpush1.msra.mxu0 %v1573
        %1737 = vmatprep.subr.mxu0 0.0
        %1738 = vmatpush1.msra.mxu0 %v1574
        %1739 = vmatprep.subr.mxu0 0.0
        %1740 = vmatpush1.msra.mxu0 %v1575
        %1741 = vmatprep.subr.mxu0 0.0
        %1742 = vmatpush1.msra.mxu0 %v1576
        %1743 = vmatprep.subr.mxu0 0.0
        %1744 = vmatpush1.msra.mxu0 %v1577
        %1745 = vmatprep.subr.mxu0 0.0
        %1746 = vmatpush1.msra.mxu0 %v1578
        %1747 = vmatprep.subr.mxu0 0.0
        %1748 = vmatpush1.msra.mxu0 %v1579
        %1749 = vmatprep.subr.mxu0 0.0
        %1750 = vmatpush1.msra.mxu0 %v1580
        %1751 = vmatprep.subr.mxu0 0.0
        %1752 = vmatpush1.msra.mxu0 %v1581
        %1753 = vmatprep.subr.mxu0 0.0
        %1754 = vmatpush1.msra.mxu0 %v1582
        %1755 = vmatprep.subr.mxu0 0.0
        %1756 = vmatpush1.msra.mxu0 %v1583
        %1757 = vmatprep.subr.mxu0 0.0
        %1758 = vmatpush1.msra.mxu0 %v1584
        %1759 = vmatprep.subr.mxu0 0.0
        %1760 = vmatpush1.msra.mxu0 %v1585
        %1761 = vmatprep.subr.mxu0 0.0
        %1762 = vmatpush1.msra.mxu0 %v1586
        %1763 = vmatprep.subr.mxu0 0.0
        %1764 = vmatpush1.msra.mxu0 %v1587
        %1765 = vmatprep.subr.mxu0 0.0
        %1766 = vmatpush1.msra.mxu0 %v1588
        %1767 = vmatprep.subr.mxu0 0.0
        %1768 = vmatpush1.msra.mxu0 %v1589
        %1769 = vmatprep.subr.mxu0 0.0
        %1770 = vmatpush1.msra.mxu0 %v1590
        %1771 = vmatprep.subr.mxu0 0.0
        %1772 = vmatpush1.msra.mxu0 %v1591
        %1773 = vmatprep.subr.mxu0 0.0
        %1774 = vmatpush1.msra.mxu0 %v1592
        %1775 = vmatprep.subr.mxu0 0.0
        %1776 = vmatpush1.msra.mxu0 %v1593
        %1777 = vmatprep.subr.mxu0 0.0
        %1778 = vmatpush1.msra.mxu0 %v1594
        %1779 = vmatprep.subr.mxu0 0.0
        %1780 = vmatpush1.msra.mxu0 %v1595
        %1781 = vmatprep.mubr.f32.mxu0 %v1477
        %1782 = vmatmul.mubr.f32.gmra.mrb[0].mxu0 %v1449
        %v1783 = vpop.f32.mrb[0].mxu0
        %v1784 = vadd.f32 %v1679, %v1783
        %v1785 = vpop.f32.mrb[0].mxu0
        %1786 = vmatprep.mubr.f32.mxu0 %v1479
        %1787 = vmatmul.mubr.f32.gmra.mrb[0].mxu0 %v1451
        %v1788 = vpop.f32.mrb[0].mxu0
        %v1789 = vadd.f32 %v1684, %v1788
        %v1790 = vpop.f32.mrb[0].mxu0
        %1791 = vmatprep.mubr.f32.mxu0 %v1482
        %1792 = vmatmul.mubr.f32.gmra.mrb[0].mxu0 %v1454
        %v1793 = vpop.f32.mrb[0].mxu0
        %v1794 = vadd.f32 %v1689, %v1793
        %v1795 = vpop.f32.mrb[0].mxu0
        %1796 = vmatprep.mubr.f32.mxu0 %v1484
        %1797 = vmatmul.mubr.f32.gmra.mrb[0].mxu0 %v1456
        %v1798 = vpop.f32.mrb[0].mxu0
        %v1799 = vadd.f32 %v1694, %v1798
        %v1800 = vpop.f32.mrb[0].mxu0
        %1801 = vmatprep.mubr.f32.mxu0 %v1487
        %1802 = vmatmul.mubr.f32.gmra.mrb[0].mxu0 %v1459
        %v1803 = vpop.f32.mrb[0].mxu0
        %v1804 = vadd.f32 %v1699, %v1803
        %v1805 = vpop.f32.mrb[0].mxu0
        %1806 = vmatprep.mubr.f32.mxu0 %v1489
        %1807 = vmatmul.mubr.f32.gmra.mrb[0].mxu0 %v1461
        %v1808 = vpop.f32.mrb[0].mxu0
        %v1809 = vadd.f32 %v1704, %v1808
        %v1810 = vpop.f32.mrb[0].mxu0
        %1811 = vmatprep.mubr.f32.mxu0 %v1492
        %1812 = vmatmul.mubr.f32.gmra.mrb[0].mxu0 %v1464
        %v1813 = vpop.f32.mrb[0].mxu0
        %v1814 = vadd.f32 %v1709, %v1813
        %v1815 = vpop.f32.mrb[0].mxu0
        %1816 = vmatprep.mubr.f32.mxu0 %v1494
        %1817 = vmatmul.mubr.f32.gmra.mrb[0].mxu0 %v1466
        %v1818 = vpop.f32.mrb[0].mxu0
        %v1819 = vadd.f32 %v1714, %v1818
        %v1820 = vpop.f32.mrb[0].mxu0
        %1821 = vdwg.mxu0
        %1822 = vmatprep.subr.mxu0 0.0
        %1823 = vmatpush1.msra.mxu0 %v1596
        %1824 = vmatprep.subr.mxu0 0.0
        %1825 = vmatpush1.msra.mxu0 %v1597
        %1826 = vmatprep.subr.mxu0 0.0
        %1827 = vmatpush1.msra.mxu0 %v1598
        %1828 = vmatprep.subr.mxu0 0.0
        %1829 = vmatpush1.msra.mxu0 %v1599
        %1830 = vmatprep.subr.mxu0 0.0
        %1831 = vmatpush1.msra.mxu0 %v1600
        %1832 = vmatprep.subr.mxu0 0.0
        %1833 = vmatpush1.msra.mxu0 %v1601
        %1834 = vmatprep.subr.mxu0 0.0
        %1835 = vmatpush1.msra.mxu0 %v1602
        %1836 = vmatprep.subr.mxu0 0.0
        %1837 = vmatpush1.msra.mxu0 %v1603
        %1838 = vmatprep.subr.mxu0 0.0
        %1839 = vmatpush1.msra.mxu0 %v1604
        %1840 = vmatprep.subr.mxu0 0.0
        %1841 = vmatpush1.msra.mxu0 %v1605
        %1842 = vmatprep.subr.mxu0 0.0
        %1843 = vmatpush1.msra.mxu0 %v1606
        %1844 = vmatprep.subr.mxu0 0.0
        %1845 = vmatpush1.msra.mxu0 %v1607
        %1846 = vmatprep.subr.mxu0 0.0
        %1847 = vmatpush1.msra.mxu0 %v1608
        %1848 = vmatprep.subr.mxu0 0.0
        %1849 = vmatpush1.msra.mxu0 %v1609
        %1850 = vmatprep.subr.mxu0 0.0
        %1851 = vmatpush1.msra.mxu0 %v1610
        %1852 = vmatprep.subr.mxu0 0.0
        %1853 = vmatpush1.msra.mxu0 %v1611
        %1854 = vmatprep.subr.mxu0 0.0
        %1855 = vmatpush1.msra.mxu0 0.0
        %1856 = vmatprep.subr.mxu0 0.0
        %1857 = vmatpush1.msra.mxu0 0.0
        %1858 = vmatprep.subr.mxu0 0.0
        %1859 = vmatpush1.msra.mxu0 0.0
        %1860 = vmatprep.subr.mxu0 0.0
        %1861 = vmatpush1.msra.mxu0 0.0
        %1862 = vmatprep.subr.mxu0 0.0
        %1863 = vmatpush1.msra.mxu0 0.0
        %1864 = vmatprep.subr.mxu0 0.0
        %1865 = vmatpush1.msra.mxu0 0.0
        %1866 = vmatprep.subr.mxu0 0.0
        %1867 = vmatpush1.msra.mxu0 0.0
        %1868 = vmatprep.subr.mxu0 0.0
        %1869 = vmatpush1.msra.mxu0 0.0
        %1870 = vmatprep.subr.mxu0 0.0
        %1871 = vmatpush1.msra.mxu0 0.0
        %1872 = vmatprep.subr.mxu0 0.0
        %1873 = vmatpush1.msra.mxu0 0.0
        %1874 = vmatprep.subr.mxu0 0.0
        %1875 = vmatpush1.msra.mxu0 0.0
        %1876 = vmatprep.subr.mxu0 0.0
        %1877 = vmatpush1.msra.mxu0 0.0
        %1878 = vmatprep.subr.mxu0 0.0
        %1879 = vmatpush1.msra.mxu0 0.0
        %1880 = vmatprep.subr.mxu0 0.0
        %1881 = vmatpush1.msra.mxu0 0.0
        %1882 = vmatprep.subr.mxu0 0.0
        %1883 = vmatpush1.msra.mxu0 0.0
        %1884 = vmatprep.subr.mxu0 0.0
        %1885 = vmatpush1.msra.mxu0 0.0
        %1886 = vmatprep.mubr.f32.mxu0 0.0
        %1887 = vmatmul.mubr.f32.gmra.mrb[0].mxu0 %v1505
        %v1888 = vpop.f32.mrb[0].mxu0
        %v1889 = vadd.f32 %v1784, %v1888
        %v1890 = vpop.f32.mrb[0].mxu0
        %1891 = vmatprep.mubr.f32.mxu0 0.0
        %1892 = vmatmul.mubr.f32.gmra.mrb[0].mxu0 %v1507
        %v1893 = vpop.f32.mrb[0].mxu0
        %v1894 = vadd.f32 %v1789, %v1893
        %v1895 = vpop.f32.mrb[0].mxu0
        %1896 = vmatprep.mubr.f32.mxu0 0.0
        %1897 = vmatmul.mubr.f32.gmra.mrb[0].mxu0 %v1510
        %v1898 = vpop.f32.mrb[0].mxu0
        %v1899 = vadd.f32 %v1794, %v1898
        %v1900 = vpop.f32.mrb[0].mxu0
        %1901 = vmatprep.mubr.f32.mxu0 0.0
        %1902 = vmatmul.mubr.f32.gmra.mrb[0].mxu0 %v1512
        %v1903 = vpop.f32.mrb[0].mxu0
        %v1904 = vadd.f32 %v1799, %v1903
        %v1905 = vpop.f32.mrb[0].mxu0
        %1906 = vmatprep.mubr.f32.mxu0 0.0
        %1907 = vmatmul.mubr.f32.gmra.mrb[0].mxu0 %v1515
        %v1908 = vpop.f32.mrb[0].mxu0
        %v1909 = vadd.f32 %v1804, %v1908
        %v1910 = vpop.f32.mrb[0].mxu0
        %1911 = vmatprep.mubr.f32.mxu0 0.0
        %1912 = vmatmul.mubr.f32.gmra.mrb[0].mxu0 %v1517
        %v1913 = vpop.f32.mrb[0].mxu0
        %v1914 = vadd.f32 %v1809, %v1913
        %v1915 = vpop.f32.mrb[0].mxu0
        %1916 = vmatprep.mubr.f32.mxu0 0.0
        %1917 = vmatmul.mubr.f32.gmra.mrb[0].mxu0 %v1520
        %v1918 = vpop.f32.mrb[0].mxu0
        %v1919 = vadd.f32 %v1814, %v1918
        %v1920 = vpop.f32.mrb[0].mxu0
        %1921 = vmatprep.mubr.f32.mxu0 0.0
        %1922 = vmatmul.mubr.f32.gmra.mrb[0].mxu0 %v1522
        %v1923 = vpop.f32.mrb[0].mxu0
        %v1924 = vadd.f32 %v1819, %v1923
        %v1925 = vpop.f32.mrb[0].mxu0
        %1926 = vdwg.mxu0
        %v1927 = vld [vmem:[#allocation4] sm:$0xff]
        %v1928 = vld [vmem:[#allocation4 + $0x8] sm:$0xff]
        %v1929 = vld [vmem:[#allocation4 + $0x10] sm:$0xff]
        %v1930 = vld [vmem:[#allocation4 + $0x18] sm:$0xff]
        %v1931 = vld [vmem:[#allocation4 + $0x20] sm:$0xff]
        %v1932 = vld [vmem:[#allocation4 + $0x28] sm:$0xff]
        %v1933 = vld [vmem:[#allocation4 + $0x30] sm:$0xff]
        %v1934 = vld [vmem:[#allocation4 + $0x38] sm:$0xff]
        %v1935 = vadd.f32 %v1927, %v1889
        %v1936 = vadd.f32 %v1928, %v1894
        %v1937 = vadd.f32 %v1929, %v1899
        %v1938 = vadd.f32 %v1930, %v1904
        %v1939 = vadd.f32 %v1931, %v1909
        %v1940 = vadd.f32 %v1932, %v1914
        %v1941 = vadd.f32 %v1933, %v1919
        %v1942 = vadd.f32 %v1934, %v1924
        %1943 = vst [vmem:[#allocation4] sm:$0xff] %v1935
        %1944 = vst [vmem:[#allocation4 + $0x8] sm:$0xff] %v1936
        %1945 = vst [vmem:[#allocation4 + $0x10] sm:$0xff] %v1937
        %1946 = vst [vmem:[#allocation4 + $0x18] sm:$0xff] %v1938
        %1947 = vst [vmem:[#allocation4 + $0x20] sm:$0xff] %v1939
        %1948 = vst [vmem:[#allocation4 + $0x28] sm:$0xff] %v1940
        %1949 = vst [vmem:[#allocation4 + $0x30] sm:$0xff] %v1941
        %1950 = vst [vmem:[#allocation4 + $0x38] sm:$0xff] %v1942
        %s1951 = scalar_lea.vmem [#allocation2], 72
        %v1952 = vld [vmem:[%s1951] sm:$0xff]
        %v1953 = vld [vmem:[%s1951 + $0x8] sm:$0xff]
        %v1954 = vld [vmem:[%s1951 + $0x10] sm:$0xf]
        %v1955 = vld [vmem:[%s1951 + $0x18] sm:$0xff]
        %v1956 = vld [vmem:[%s1951 + $0x20] sm:$0xff]
        %v1957 = vld [vmem:[%s1951 + $0x28] sm:$0xf]
        %v1958 = vld [vmem:[%s1951 + $0x30] sm:$0xff]
        %v1959 = vld [vmem:[%s1951 + $0x38] sm:$0xff]
        %v1960 = vld [vmem:[%s1951 + $0x40] sm:$0xf]
        %v1961 = vld [vmem:[%s1951 + $0x48] sm:$0xff]
        %v1962 = vld [vmem:[%s1951 + $0x50] sm:$0xff]
        %v1963 = vld [vmem:[%s1951 + $0x58] sm:$0xf]
        %v1976 = vrot.slane %v1952, 1
        %v1977 = vrot.slane %v1953, 1
        %v1978 = vsel %vm311, %v1976, %v1977
        %v1979 = vrot.slane %v1954, 1
        %v1980 = vsel %vm311, %v1977, %v1979
        %v1981 = vrot.slane %v1955, 1
        %v1982 = vrot.slane %v1956, 1
        %v1983 = vsel %vm311, %v1981, %v1982
        %v1984 = vrot.slane %v1957, 1
        %v1985 = vsel %vm311, %v1982, %v1984
        %v1986 = vrot.slane %v1958, 1
        %v1987 = vrot.slane %v1959, 1
        %v1988 = vsel %vm311, %v1986, %v1987
        %v1989 = vrot.slane %v1960, 1
        %v1990 = vsel %vm311, %v1987, %v1989
        %v1991 = vrot.slane %v1961, 1
        %v1992 = vrot.slane %v1962, 1
        %v1993 = vsel %vm311, %v1991, %v1992
        %v1994 = vrot.slane %v1963, 1
        %v1995 = vsel %vm311, %v1992, %v1994
        %v2004 = vrot.slane %v1952, 2
        %v2005 = vrot.slane %v1953, 2
        %v2006 = vsel %vm340, %v2004, %v2005
        %v2007 = vrot.slane %v1954, 2
        %v2008 = vsel %vm340, %v2005, %v2007
        %v2009 = vrot.slane %v1955, 2
        %v2010 = vrot.slane %v1956, 2
        %v2011 = vsel %vm340, %v2009, %v2010
        %v2012 = vrot.slane %v1957, 2
        %v2013 = vsel %vm340, %v2010, %v2012
        %v2014 = vrot.slane %v1958, 2
        %v2015 = vrot.slane %v1959, 2
        %v2016 = vsel %vm340, %v2014, %v2015
        %v2017 = vrot.slane %v1960, 2
        %v2018 = vsel %vm340, %v2015, %v2017
        %v2019 = vrot.slane %v1961, 2
        %v2020 = vrot.slane %v1962, 2
        %v2021 = vsel %vm340, %v2019, %v2020
        %v2022 = vrot.slane %v1963, 2
        %v2023 = vsel %vm340, %v2020, %v2022
        %v2032 = vrot.slane %v1952, 3
        %v2033 = vrot.slane %v1953, 3
        %v2034 = vsel %vm369, %v2032, %v2033
        %v2035 = vrot.slane %v1954, 3
        %v2036 = vsel %vm369, %v2033, %v2035
        %v2037 = vrot.slane %v1955, 3
        %v2038 = vrot.slane %v1956, 3
        %v2039 = vsel %vm369, %v2037, %v2038
        %v2040 = vrot.slane %v1957, 3
        %v2041 = vsel %vm369, %v2038, %v2040
        %v2042 = vrot.slane %v1958, 3
        %v2043 = vrot.slane %v1959, 3
        %v2044 = vsel %vm369, %v2042, %v2043
        %v2045 = vrot.slane %v1960, 3
        %v2046 = vsel %vm369, %v2043, %v2045
        %v2047 = vrot.slane %v1961, 3
        %v2048 = vrot.slane %v1962, 3
        %v2049 = vsel %vm369, %v2047, %v2048
        %v2050 = vrot.slane %v1963, 3
        %v2051 = vsel %vm369, %v2048, %v2050
        %v2060 = vrot.slane %v1952, 4
        %v2061 = vrot.slane %v1953, 4
        %v2062 = vsel %vm398, %v2060, %v2061
        %v2063 = vrot.slane %v1954, 4
        %v2064 = vsel %vm398, %v2061, %v2063
        %v2065 = vrot.slane %v1955, 4
        %v2066 = vrot.slane %v1956, 4
        %v2067 = vsel %vm398, %v2065, %v2066
        %v2068 = vrot.slane %v1957, 4
        %v2069 = vsel %vm398, %v2066, %v2068
        %v2070 = vrot.slane %v1958, 4
        %v2071 = vrot.slane %v1959, 4
        %v2072 = vsel %vm398, %v2070, %v2071
        %v2073 = vrot.slane %v1960, 4
        %v2074 = vsel %vm398, %v2071, %v2073
        %v2075 = vrot.slane %v1961, 4
        %v2076 = vrot.slane %v1962, 4
        %v2077 = vsel %vm398, %v2075, %v2076
        %v2078 = vrot.slane %v1963, 4
        %v2079 = vsel %vm398, %v2076, %v2078
        %s2088 = scalar_lea.vmem [#allocation5], 1920
        %v2089 = vld [vmem:[%s2088] sm:$0xff]
        %v2090 = vld [vmem:[%s2088 + $0x8] sm:$0xff]
        %v2091 = vld [vmem:[%s2088 + $0x10] sm:$0xff]
        %v2092 = vld [vmem:[%s2088 + $0x18] sm:$0xff]
        %v2093 = vld [vmem:[%s2088 + $0x20] sm:$0xff]
        %v2094 = vld [vmem:[%s2088 + $0x28] sm:$0xff]
        %v2095 = vld [vmem:[%s2088 + $0x30] sm:$0xff]
        %v2096 = vld [vmem:[%s2088 + $0x38] sm:$0xff]
        %v2097 = vld [vmem:[%s2088 + $0x40] sm:$0xff]
        %v2098 = vld [vmem:[%s2088 + $0x48] sm:$0xff]
        %v2099 = vld [vmem:[%s2088 + $0x50] sm:$0xff]
        %v2100 = vld [vmem:[%s2088 + $0x58] sm:$0xff]
        %v2101 = vld [vmem:[%s2088 + $0x60] sm:$0xff]
        %v2102 = vld [vmem:[%s2088 + $0x68] sm:$0xff]
        %v2103 = vld [vmem:[%s2088 + $0x70] sm:$0xff]
        %v2104 = vld [vmem:[%s2088 + $0x78] sm:$0xff]
        %v2105 = vld [vmem:[%s2088 + $0x80] sm:$0xff]
        %v2106 = vld [vmem:[%s2088 + $0x88] sm:$0xff]
        %v2107 = vld [vmem:[%s2088 + $0x90] sm:$0xff]
        %v2108 = vld [vmem:[%s2088 + $0x98] sm:$0xff]
        %v2109 = vld [vmem:[%s2088 + $0xa0] sm:$0xff]
        %v2110 = vld [vmem:[%s2088 + $0xa8] sm:$0xff]
        %v2111 = vld [vmem:[%s2088 + $0xb0] sm:$0xff]
        %v2112 = vld [vmem:[%s2088 + $0xb8] sm:$0xff]
        %v2113 = vld [vmem:[%s2088 + $0xc0] sm:$0xff]
        %v2114 = vld [vmem:[%s2088 + $0xc8] sm:$0xff]
        %v2115 = vld [vmem:[%s2088 + $0xd0] sm:$0xff]
        %v2116 = vld [vmem:[%s2088 + $0xd8] sm:$0xff]
        %v2117 = vld [vmem:[%s2088 + $0xe0] sm:$0xff]
        %v2118 = vld [vmem:[%s2088 + $0xe8] sm:$0xff]
        %v2119 = vld [vmem:[%s2088 + $0xf0] sm:$0xff]
        %v2120 = vld [vmem:[%s2088 + $0xf8] sm:$0xff]
        %v2121 = vld [vmem:[%s2088 + $0x100] sm:$0xff]
        %v2122 = vld [vmem:[%s2088 + $0x108] sm:$0xff]
        %v2123 = vld [vmem:[%s2088 + $0x110] sm:$0xff]
        %v2124 = vld [vmem:[%s2088 + $0x118] sm:$0xff]
        %v2125 = vld [vmem:[%s2088 + $0x120] sm:$0xff]
        %v2126 = vld [vmem:[%s2088 + $0x128] sm:$0xff]
        %v2127 = vld [vmem:[%s2088 + $0x130] sm:$0xff]
        %v2128 = vld [vmem:[%s2088 + $0x138] sm:$0xff]
        %v2129 = vld [vmem:[%s2088 + $0x140] sm:$0xff]
        %v2130 = vld [vmem:[%s2088 + $0x148] sm:$0xff]
        %v2131 = vld [vmem:[%s2088 + $0x150] sm:$0xff]
        %v2132 = vld [vmem:[%s2088 + $0x158] sm:$0xff]
        %v2133 = vld [vmem:[%s2088 + $0x160] sm:$0xff]
        %v2134 = vld [vmem:[%s2088 + $0x168] sm:$0xff]
        %v2135 = vld [vmem:[%s2088 + $0x170] sm:$0xff]
        %v2136 = vld [vmem:[%s2088 + $0x178] sm:$0xff]
        %v2137 = vld [vmem:[%s2088 + $0x180] sm:$0xff]
        %v2138 = vld [vmem:[%s2088 + $0x188] sm:$0xff]
        %v2139 = vld [vmem:[%s2088 + $0x190] sm:$0xff]
        %v2140 = vld [vmem:[%s2088 + $0x198] sm:$0xff]
        %v2141 = vld [vmem:[%s2088 + $0x1a0] sm:$0xff]
        %v2142 = vld [vmem:[%s2088 + $0x1a8] sm:$0xff]
        %v2143 = vld [vmem:[%s2088 + $0x1b0] sm:$0xff]
        %v2144 = vld [vmem:[%s2088 + $0x1b8] sm:$0xff]
        %v2145 = vld [vmem:[%s2088 + $0x1c0] sm:$0xff]
        %v2146 = vld [vmem:[%s2088 + $0x1c8] sm:$0xff]
        %v2147 = vld [vmem:[%s2088 + $0x1d0] sm:$0xff]
        %v2148 = vld [vmem:[%s2088 + $0x1d8] sm:$0xff]
        %v2149 = vld [vmem:[%s2088 + $0x1e0] sm:$0xff]
        %v2150 = vld [vmem:[%s2088 + $0x1e8] sm:$0xff]
        %v2151 = vld [vmem:[%s2088 + $0x1f0] sm:$0xff]
        %v2152 = vld [vmem:[%s2088 + $0x1f8] sm:$0xff]
        %v2153 = vld [vmem:[%s2088 + $0x200] sm:$0xff]
        %v2154 = vld [vmem:[%s2088 + $0x208] sm:$0xff]
        %v2155 = vld [vmem:[%s2088 + $0x210] sm:$0xff]
        %v2156 = vld [vmem:[%s2088 + $0x218] sm:$0xff]
        %v2157 = vld [vmem:[%s2088 + $0x220] sm:$0xff]
        %v2158 = vld [vmem:[%s2088 + $0x228] sm:$0xff]
        %v2159 = vld [vmem:[%s2088 + $0x230] sm:$0xff]
        %v2160 = vld [vmem:[%s2088 + $0x238] sm:$0xff]
        %v2161 = vld [vmem:[%s2088 + $0x240] sm:$0xff]
        %v2162 = vld [vmem:[%s2088 + $0x248] sm:$0xff]
        %v2163 = vld [vmem:[%s2088 + $0x250] sm:$0xff]
        %v2164 = vld [vmem:[%s2088 + $0x258] sm:$0xff]
        %v2165 = vld [vmem:[%s2088 + $0x260] sm:$0xff]
        %v2166 = vld [vmem:[%s2088 + $0x268] sm:$0xff]
        %v2167 = vld [vmem:[%s2088 + $0x270] sm:$0xff]
        %v2168 = vld [vmem:[%s2088 + $0x278] sm:$0xff]
        %2169 = vmatprep.subr.mxu0 0.0
        %2170 = vmatpush1.msra.mxu0 %v2089
        %2171 = vmatprep.subr.mxu0 0.0
        %2172 = vmatpush1.msra.mxu0 %v2090
        %2173 = vmatprep.subr.mxu0 0.0
        %2174 = vmatpush1.msra.mxu0 %v2091
        %2175 = vmatprep.subr.mxu0 0.0
        %2176 = vmatpush1.msra.mxu0 %v2092
        %2177 = vmatprep.subr.mxu0 0.0
        %2178 = vmatpush1.msra.mxu0 %v2093
        %2179 = vmatprep.subr.mxu0 0.0
        %2180 = vmatpush1.msra.mxu0 %v2094
        %2181 = vmatprep.subr.mxu0 0.0
        %2182 = vmatpush1.msra.mxu0 %v2095
        %2183 = vmatprep.subr.mxu0 0.0
        %2184 = vmatpush1.msra.mxu0 %v2096
        %2185 = vmatprep.subr.mxu0 0.0
        %2186 = vmatpush1.msra.mxu0 %v2097
        %2187 = vmatprep.subr.mxu0 0.0
        %2188 = vmatpush1.msra.mxu0 %v2098
        %2189 = vmatprep.subr.mxu0 0.0
        %2190 = vmatpush1.msra.mxu0 %v2099
        %2191 = vmatprep.subr.mxu0 0.0
        %2192 = vmatpush1.msra.mxu0 %v2100
        %2193 = vmatprep.subr.mxu0 0.0
        %2194 = vmatpush1.msra.mxu0 %v2101
        %2195 = vmatprep.subr.mxu0 0.0
        %2196 = vmatpush1.msra.mxu0 %v2102
        %2197 = vmatprep.subr.mxu0 0.0
        %2198 = vmatpush1.msra.mxu0 %v2103
        %2199 = vmatprep.subr.mxu0 0.0
        %2200 = vmatpush1.msra.mxu0 %v2104
        %2201 = vmatprep.subr.mxu0 0.0
        %2202 = vmatpush1.msra.mxu0 %v2105
        %2203 = vmatprep.subr.mxu0 0.0
        %2204 = vmatpush1.msra.mxu0 %v2106
        %2205 = vmatprep.subr.mxu0 0.0
        %2206 = vmatpush1.msra.mxu0 %v2107
        %2207 = vmatprep.subr.mxu0 0.0
        %2208 = vmatpush1.msra.mxu0 %v2108
        %2209 = vmatprep.subr.mxu0 0.0
        %2210 = vmatpush1.msra.mxu0 %v2109
        %2211 = vmatprep.subr.mxu0 0.0
        %2212 = vmatpush1.msra.mxu0 %v2110
        %2213 = vmatprep.subr.mxu0 0.0
        %2214 = vmatpush1.msra.mxu0 %v2111
        %2215 = vmatprep.subr.mxu0 0.0
        %2216 = vmatpush1.msra.mxu0 %v2112
        %2217 = vmatprep.subr.mxu0 0.0
        %2218 = vmatpush1.msra.mxu0 %v2113
        %2219 = vmatprep.subr.mxu0 0.0
        %2220 = vmatpush1.msra.mxu0 %v2114
        %2221 = vmatprep.subr.mxu0 0.0
        %2222 = vmatpush1.msra.mxu0 %v2115
        %2223 = vmatprep.subr.mxu0 0.0
        %2224 = vmatpush1.msra.mxu0 %v2116
        %2225 = vmatprep.subr.mxu0 0.0
        %2226 = vmatpush1.msra.mxu0 %v2117
        %2227 = vmatprep.subr.mxu0 0.0
        %2228 = vmatpush1.msra.mxu0 %v2118
        %2229 = vmatprep.subr.mxu0 0.0
        %2230 = vmatpush1.msra.mxu0 %v2119
        %2231 = vmatprep.subr.mxu0 0.0
        %2232 = vmatpush1.msra.mxu0 %v2120
        %2233 = vmatprep.mubr.f32.mxu0 %v1978
        %2234 = vmatmul.mubr.f32.gmra.mrb[0].mxu0 %v1952
        %v2235 = vpop.f32.mrb[0].mxu0
        %v2236 = vadd.f32 0.0, %v2235
        %v2237 = vpop.f32.mrb[0].mxu0
        %2238 = vmatprep.mubr.f32.mxu0 %v1980
        %2239 = vmatmul.mubr.f32.gmra.mrb[0].mxu0 %v1953
        %v2240 = vpop.f32.mrb[0].mxu0
        %v2241 = vadd.f32 0.0, %v2240
        %v2242 = vpop.f32.mrb[0].mxu0
        %2243 = vmatprep.mubr.f32.mxu0 %v1983
        %2244 = vmatmul.mubr.f32.gmra.mrb[0].mxu0 %v1955
        %v2245 = vpop.f32.mrb[0].mxu0
        %v2246 = vadd.f32 0.0, %v2245
        %v2247 = vpop.f32.mrb[0].mxu0
        %2248 = vmatprep.mubr.f32.mxu0 %v1985
        %2249 = vmatmul.mubr.f32.gmra.mrb[0].mxu0 %v1956
        %v2250 = vpop.f32.mrb[0].mxu0
        %v2251 = vadd.f32 0.0, %v2250
        %v2252 = vpop.f32.mrb[0].mxu0
        %2253 = vmatprep.mubr.f32.mxu0 %v1988
        %2254 = vmatmul.mubr.f32.gmra.mrb[0].mxu0 %v1958
        %v2255 = vpop.f32.mrb[0].mxu0
        %v2256 = vadd.f32 0.0, %v2255
        %v2257 = vpop.f32.mrb[0].mxu0
        %2258 = vmatprep.mubr.f32.mxu0 %v1990
        %2259 = vmatmul.mubr.f32.gmra.mrb[0].mxu0 %v1959
        %v2260 = vpop.f32.mrb[0].mxu0
        %v2261 = vadd.f32 0.0, %v2260
        %v2262 = vpop.f32.mrb[0].mxu0
        %2263 = vmatprep.mubr.f32.mxu0 %v1993
        %2264 = vmatmul.mubr.f32.gmra.mrb[0].mxu0 %v1961
        %v2265 = vpop.f32.mrb[0].mxu0
        %v2266 = vadd.f32 0.0, %v2265
        %v2267 = vpop.f32.mrb[0].mxu0
        %2268 = vmatprep.mubr.f32.mxu0 %v1995
        %2269 = vmatmul.mubr.f32.gmra.mrb[0].mxu0 %v1962
        %v2270 = vpop.f32.mrb[0].mxu0
        %v2271 = vadd.f32 0.0, %v2270
        %v2272 = vpop.f32.mrb[0].mxu0
        %2273 = vdwg.mxu0
        %2274 = vmatprep.subr.mxu0 0.0
        %2275 = vmatpush1.msra.mxu0 %v2121
        %2276 = vmatprep.subr.mxu0 0.0
        %2277 = vmatpush1.msra.mxu0 %v2122
        %2278 = vmatprep.subr.mxu0 0.0
        %2279 = vmatpush1.msra.mxu0 %v2123
        %2280 = vmatprep.subr.mxu0 0.0
        %2281 = vmatpush1.msra.mxu0 %v2124
        %2282 = vmatprep.subr.mxu0 0.0
        %2283 = vmatpush1.msra.mxu0 %v2125
        %2284 = vmatprep.subr.mxu0 0.0
        %2285 = vmatpush1.msra.mxu0 %v2126
        %2286 = vmatprep.subr.mxu0 0.0
        %2287 = vmatpush1.msra.mxu0 %v2127
        %2288 = vmatprep.subr.mxu0 0.0
        %2289 = vmatpush1.msra.mxu0 %v2128
        %2290 = vmatprep.subr.mxu0 0.0
        %2291 = vmatpush1.msra.mxu0 %v2129
        %2292 = vmatprep.subr.mxu0 0.0
        %2293 = vmatpush1.msra.mxu0 %v2130
        %2294 = vmatprep.subr.mxu0 0.0
        %2295 = vmatpush1.msra.mxu0 %v2131
        %2296 = vmatprep.subr.mxu0 0.0
        %2297 = vmatpush1.msra.mxu0 %v2132
        %2298 = vmatprep.subr.mxu0 0.0
        %2299 = vmatpush1.msra.mxu0 %v2133
        %2300 = vmatprep.subr.mxu0 0.0
        %2301 = vmatpush1.msra.mxu0 %v2134
        %2302 = vmatprep.subr.mxu0 0.0
        %2303 = vmatpush1.msra.mxu0 %v2135
        %2304 = vmatprep.subr.mxu0 0.0
        %2305 = vmatpush1.msra.mxu0 %v2136
        %2306 = vmatprep.subr.mxu0 0.0
        %2307 = vmatpush1.msra.mxu0 %v2137
        %2308 = vmatprep.subr.mxu0 0.0
        %2309 = vmatpush1.msra.mxu0 %v2138
        %2310 = vmatprep.subr.mxu0 0.0
        %2311 = vmatpush1.msra.mxu0 %v2139
        %2312 = vmatprep.subr.mxu0 0.0
        %2313 = vmatpush1.msra.mxu0 %v2140
        %2314 = vmatprep.subr.mxu0 0.0
        %2315 = vmatpush1.msra.mxu0 %v2141
        %2316 = vmatprep.subr.mxu0 0.0
        %2317 = vmatpush1.msra.mxu0 %v2142
        %2318 = vmatprep.subr.mxu0 0.0
        %2319 = vmatpush1.msra.mxu0 %v2143
        %2320 = vmatprep.subr.mxu0 0.0
        %2321 = vmatpush1.msra.mxu0 %v2144
        %2322 = vmatprep.subr.mxu0 0.0
        %2323 = vmatpush1.msra.mxu0 %v2145
        %2324 = vmatprep.subr.mxu0 0.0
        %2325 = vmatpush1.msra.mxu0 %v2146
        %2326 = vmatprep.subr.mxu0 0.0
        %2327 = vmatpush1.msra.mxu0 %v2147
        %2328 = vmatprep.subr.mxu0 0.0
        %2329 = vmatpush1.msra.mxu0 %v2148
        %2330 = vmatprep.subr.mxu0 0.0
        %2331 = vmatpush1.msra.mxu0 %v2149
        %2332 = vmatprep.subr.mxu0 0.0
        %2333 = vmatpush1.msra.mxu0 %v2150
        %2334 = vmatprep.subr.mxu0 0.0
        %2335 = vmatpush1.msra.mxu0 %v2151
        %2336 = vmatprep.subr.mxu0 0.0
        %2337 = vmatpush1.msra.mxu0 %v2152
        %2338 = vmatprep.mubr.f32.mxu0 %v2034
        %2339 = vmatmul.mubr.f32.gmra.mrb[0].mxu0 %v2006
        %v2340 = vpop.f32.mrb[0].mxu0
        %v2341 = vadd.f32 %v2236, %v2340
        %v2342 = vpop.f32.mrb[0].mxu0
        %2343 = vmatprep.mubr.f32.mxu0 %v2036
        %2344 = vmatmul.mubr.f32.gmra.mrb[0].mxu0 %v2008
        %v2345 = vpop.f32.mrb[0].mxu0
        %v2346 = vadd.f32 %v2241, %v2345
        %v2347 = vpop.f32.mrb[0].mxu0
        %2348 = vmatprep.mubr.f32.mxu0 %v2039
        %2349 = vmatmul.mubr.f32.gmra.mrb[0].mxu0 %v2011
        %v2350 = vpop.f32.mrb[0].mxu0
        %v2351 = vadd.f32 %v2246, %v2350
        %v2352 = vpop.f32.mrb[0].mxu0
        %2353 = vmatprep.mubr.f32.mxu0 %v2041
        %2354 = vmatmul.mubr.f32.gmra.mrb[0].mxu0 %v2013
        %v2355 = vpop.f32.mrb[0].mxu0
        %v2356 = vadd.f32 %v2251, %v2355
        %v2357 = vpop.f32.mrb[0].mxu0
        %2358 = vmatprep.mubr.f32.mxu0 %v2044
        %2359 = vmatmul.mubr.f32.gmra.mrb[0].mxu0 %v2016
        %v2360 = vpop.f32.mrb[0].mxu0
        %v2361 = vadd.f32 %v2256, %v2360
        %v2362 = vpop.f32.mrb[0].mxu0
        %2363 = vmatprep.mubr.f32.mxu0 %v2046
        %2364 = vmatmul.mubr.f32.gmra.mrb[0].mxu0 %v2018
        %v2365 = vpop.f32.mrb[0].mxu0
        %v2366 = vadd.f32 %v2261, %v2365
        %v2367 = vpop.f32.mrb[0].mxu0
        %2368 = vmatprep.mubr.f32.mxu0 %v2049
        %2369 = vmatmul.mubr.f32.gmra.mrb[0].mxu0 %v2021
        %v2370 = vpop.f32.mrb[0].mxu0
        %v2371 = vadd.f32 %v2266, %v2370
        %v2372 = vpop.f32.mrb[0].mxu0
        %2373 = vmatprep.mubr.f32.mxu0 %v2051
        %2374 = vmatmul.mubr.f32.gmra.mrb[0].mxu0 %v2023
        %v2375 = vpop.f32.mrb[0].mxu0
        %v2376 = vadd.f32 %v2271, %v2375
        %v2377 = vpop.f32.mrb[0].mxu0
        %2378 = vdwg.mxu0
        %2379 = vmatprep.subr.mxu0 0.0
        %2380 = vmatpush1.msra.mxu0 %v2153
        %2381 = vmatprep.subr.mxu0 0.0
        %2382 = vmatpush1.msra.mxu0 %v2154
        %2383 = vmatprep.subr.mxu0 0.0
        %2384 = vmatpush1.msra.mxu0 %v2155
        %2385 = vmatprep.subr.mxu0 0.0
        %2386 = vmatpush1.msra.mxu0 %v2156
        %2387 = vmatprep.subr.mxu0 0.0
        %2388 = vmatpush1.msra.mxu0 %v2157
        %2389 = vmatprep.subr.mxu0 0.0
        %2390 = vmatpush1.msra.mxu0 %v2158
        %2391 = vmatprep.subr.mxu0 0.0
        %2392 = vmatpush1.msra.mxu0 %v2159
        %2393 = vmatprep.subr.mxu0 0.0
        %2394 = vmatpush1.msra.mxu0 %v2160
        %2395 = vmatprep.subr.mxu0 0.0
        %2396 = vmatpush1.msra.mxu0 %v2161
        %2397 = vmatprep.subr.mxu0 0.0
        %2398 = vmatpush1.msra.mxu0 %v2162
        %2399 = vmatprep.subr.mxu0 0.0
        %2400 = vmatpush1.msra.mxu0 %v2163
        %2401 = vmatprep.subr.mxu0 0.0
        %2402 = vmatpush1.msra.mxu0 %v2164
        %2403 = vmatprep.subr.mxu0 0.0
        %2404 = vmatpush1.msra.mxu0 %v2165
        %2405 = vmatprep.subr.mxu0 0.0
        %2406 = vmatpush1.msra.mxu0 %v2166
        %2407 = vmatprep.subr.mxu0 0.0
        %2408 = vmatpush1.msra.mxu0 %v2167
        %2409 = vmatprep.subr.mxu0 0.0
        %2410 = vmatpush1.msra.mxu0 %v2168
        %2411 = vmatprep.subr.mxu0 0.0
        %2412 = vmatpush1.msra.mxu0 0.0
        %2413 = vmatprep.subr.mxu0 0.0
        %2414 = vmatpush1.msra.mxu0 0.0
        %2415 = vmatprep.subr.mxu0 0.0
        %2416 = vmatpush1.msra.mxu0 0.0
        %2417 = vmatprep.subr.mxu0 0.0
        %2418 = vmatpush1.msra.mxu0 0.0
        %2419 = vmatprep.subr.mxu0 0.0
        %2420 = vmatpush1.msra.mxu0 0.0
        %2421 = vmatprep.subr.mxu0 0.0
        %2422 = vmatpush1.msra.mxu0 0.0
        %2423 = vmatprep.subr.mxu0 0.0
        %2424 = vmatpush1.msra.mxu0 0.0
        %2425 = vmatprep.subr.mxu0 0.0
        %2426 = vmatpush1.msra.mxu0 0.0
        %2427 = vmatprep.subr.mxu0 0.0
        %2428 = vmatpush1.msra.mxu0 0.0
        %2429 = vmatprep.subr.mxu0 0.0
        %2430 = vmatpush1.msra.mxu0 0.0
        %2431 = vmatprep.subr.mxu0 0.0
        %2432 = vmatpush1.msra.mxu0 0.0
        %2433 = vmatprep.subr.mxu0 0.0
        %2434 = vmatpush1.msra.mxu0 0.0
        %2435 = vmatprep.subr.mxu0 0.0
        %2436 = vmatpush1.msra.mxu0 0.0
        %2437 = vmatprep.subr.mxu0 0.0
        %2438 = vmatpush1.msra.mxu0 0.0
        %2439 = vmatprep.subr.mxu0 0.0
        %2440 = vmatpush1.msra.mxu0 0.0
        %2441 = vmatprep.subr.mxu0 0.0
        %2442 = vmatpush1.msra.mxu0 0.0
        %2443 = vmatprep.mubr.f32.mxu0 0.0
        %2444 = vmatmul.mubr.f32.gmra.mrb[0].mxu0 %v2062
        %v2445 = vpop.f32.mrb[0].mxu0
        %v2446 = vadd.f32 %v2341, %v2445
        %v2447 = vpop.f32.mrb[0].mxu0
        %2448 = vmatprep.mubr.f32.mxu0 0.0
        %2449 = vmatmul.mubr.f32.gmra.mrb[0].mxu0 %v2064
        %v2450 = vpop.f32.mrb[0].mxu0
        %v2451 = vadd.f32 %v2346, %v2450
        %v2452 = vpop.f32.mrb[0].mxu0
        %2453 = vmatprep.mubr.f32.mxu0 0.0
        %2454 = vmatmul.mubr.f32.gmra.mrb[0].mxu0 %v2067
        %v2455 = vpop.f32.mrb[0].mxu0
        %v2456 = vadd.f32 %v2351, %v2455
        %v2457 = vpop.f32.mrb[0].mxu0
        %2458 = vmatprep.mubr.f32.mxu0 0.0
        %2459 = vmatmul.mubr.f32.gmra.mrb[0].mxu0 %v2069
        %v2460 = vpop.f32.mrb[0].mxu0
        %v2461 = vadd.f32 %v2356, %v2460
        %v2462 = vpop.f32.mrb[0].mxu0
        %2463 = vmatprep.mubr.f32.mxu0 0.0
        %2464 = vmatmul.mubr.f32.gmra.mrb[0].mxu0 %v2072
        %v2465 = vpop.f32.mrb[0].mxu0
        %v2466 = vadd.f32 %v2361, %v2465
        %v2467 = vpop.f32.mrb[0].mxu0
        %2468 = vmatprep.mubr.f32.mxu0 0.0
        %2469 = vmatmul.mubr.f32.gmra.mrb[0].mxu0 %v2074
        %v2470 = vpop.f32.mrb[0].mxu0
        %v2471 = vadd.f32 %v2366, %v2470
        %v2472 = vpop.f32.mrb[0].mxu0
        %2473 = vmatprep.mubr.f32.mxu0 0.0
        %2474 = vmatmul.mubr.f32.gmra.mrb[0].mxu0 %v2077
        %v2475 = vpop.f32.mrb[0].mxu0
        %v2476 = vadd.f32 %v2371, %v2475
        %v2477 = vpop.f32.mrb[0].mxu0
        %2478 = vmatprep.mubr.f32.mxu0 0.0
        %2479 = vmatmul.mubr.f32.gmra.mrb[0].mxu0 %v2079
        %v2480 = vpop.f32.mrb[0].mxu0
        %v2481 = vadd.f32 %v2376, %v2480
        %v2482 = vpop.f32.mrb[0].mxu0
        %2483 = vdwg.mxu0
        %v2484 = vld [vmem:[#allocation4] sm:$0xff]
        %v2485 = vld [vmem:[#allocation4 + $0x8] sm:$0xff]
        %v2486 = vld [vmem:[#allocation4 + $0x10] sm:$0xff]
        %v2487 = vld [vmem:[#allocation4 + $0x18] sm:$0xff]
        %v2488 = vld [vmem:[#allocation4 + $0x20] sm:$0xff]
        %v2489 = vld [vmem:[#allocation4 + $0x28] sm:$0xff]
        %v2490 = vld [vmem:[#allocation4 + $0x30] sm:$0xff]
        %v2491 = vld [vmem:[#allocation4 + $0x38] sm:$0xff]
        %v2492 = vadd.f32 %v2484, %v2446
        %v2493 = vadd.f32 %v2485, %v2451
        %v2494 = vadd.f32 %v2486, %v2456
        %v2495 = vadd.f32 %v2487, %v2461
        %v2496 = vadd.f32 %v2488, %v2466
        %v2497 = vadd.f32 %v2489, %v2471
        %v2498 = vadd.f32 %v2490, %v2476
        %v2499 = vadd.f32 %v2491, %v2481
        %2500 = vst [vmem:[#allocation4] sm:$0xff] %v2492
        %2501 = vst [vmem:[#allocation4 + $0x8] sm:$0xff] %v2493
        %2502 = vst [vmem:[#allocation4 + $0x10] sm:$0xff] %v2494
        %2503 = vst [vmem:[#allocation4 + $0x18] sm:$0xff] %v2495
        %2504 = vst [vmem:[#allocation4 + $0x20] sm:$0xff] %v2496
        %2505 = vst [vmem:[#allocation4 + $0x28] sm:$0xff] %v2497
        %2506 = vst [vmem:[#allocation4 + $0x30] sm:$0xff] %v2498
        %2507 = vst [vmem:[#allocation4 + $0x38] sm:$0xff] %v2499
        %s2508 = scalar_lea.vmem [#allocation2], 96
        %v2509 = vld [vmem:[%s2508] sm:$0xff]
        %v2510 = vld [vmem:[%s2508 + $0x8] sm:$0xff]
        %v2511 = vld [vmem:[%s2508 + $0x10] sm:$0xf]
        %v2512 = vld [vmem:[%s2508 + $0x18] sm:$0xff]
        %v2513 = vld [vmem:[%s2508 + $0x20] sm:$0xff]
        %v2514 = vld [vmem:[%s2508 + $0x28] sm:$0xf]
        %v2515 = vld [vmem:[%s2508 + $0x30] sm:$0xff]
        %v2516 = vld [vmem:[%s2508 + $0x38] sm:$0xff]
        %v2517 = vld [vmem:[%s2508 + $0x40] sm:$0xf]
        %v2518 = vld [vmem:[%s2508 + $0x48] sm:$0xff]
        %v2519 = vld [vmem:[%s2508 + $0x50] sm:$0xff]
        %v2520 = vld [vmem:[%s2508 + $0x58] sm:$0xf]
        %v2533 = vrot.slane %v2509, 1
        %v2534 = vrot.slane %v2510, 1
        %v2535 = vsel %vm311, %v2533, %v2534
        %v2536 = vrot.slane %v2511, 1
        %v2537 = vsel %vm311, %v2534, %v2536
        %v2538 = vrot.slane %v2512, 1
        %v2539 = vrot.slane %v2513, 1
        %v2540 = vsel %vm311, %v2538, %v2539
        %v2541 = vrot.slane %v2514, 1
        %v2542 = vsel %vm311, %v2539, %v2541
        %v2543 = vrot.slane %v2515, 1
        %v2544 = vrot.slane %v2516, 1
        %v2545 = vsel %vm311, %v2543, %v2544
        %v2546 = vrot.slane %v2517, 1
        %v2547 = vsel %vm311, %v2544, %v2546
        %v2548 = vrot.slane %v2518, 1
        %v2549 = vrot.slane %v2519, 1
        %v2550 = vsel %vm311, %v2548, %v2549
        %v2551 = vrot.slane %v2520, 1
        %v2552 = vsel %vm311, %v2549, %v2551
        %v2561 = vrot.slane %v2509, 2
        %v2562 = vrot.slane %v2510, 2
        %v2563 = vsel %vm340, %v2561, %v2562
        %v2564 = vrot.slane %v2511, 2
        %v2565 = vsel %vm340, %v2562, %v2564
        %v2566 = vrot.slane %v2512, 2
        %v2567 = vrot.slane %v2513, 2
        %v2568 = vsel %vm340, %v2566, %v2567
        %v2569 = vrot.slane %v2514, 2
        %v2570 = vsel %vm340, %v2567, %v2569
        %v2571 = vrot.slane %v2515, 2
        %v2572 = vrot.slane %v2516, 2
        %v2573 = vsel %vm340, %v2571, %v2572
        %v2574 = vrot.slane %v2517, 2
        %v2575 = vsel %vm340, %v2572, %v2574
        %v2576 = vrot.slane %v2518, 2
        %v2577 = vrot.slane %v2519, 2
        %v2578 = vsel %vm340, %v2576, %v2577
        %v2579 = vrot.slane %v2520, 2
        %v2580 = vsel %vm340, %v2577, %v2579
        %v2589 = vrot.slane %v2509, 3
        %v2590 = vrot.slane %v2510, 3
        %v2591 = vsel %vm369, %v2589, %v2590
        %v2592 = vrot.slane %v2511, 3
        %v2593 = vsel %vm369, %v2590, %v2592
        %v2594 = vrot.slane %v2512, 3
        %v2595 = vrot.slane %v2513, 3
        %v2596 = vsel %vm369, %v2594, %v2595
        %v2597 = vrot.slane %v2514, 3
        %v2598 = vsel %vm369, %v2595, %v2597
        %v2599 = vrot.slane %v2515, 3
        %v2600 = vrot.slane %v2516, 3
        %v2601 = vsel %vm369, %v2599, %v2600
        %v2602 = vrot.slane %v2517, 3
        %v2603 = vsel %vm369, %v2600, %v2602
        %v2604 = vrot.slane %v2518, 3
        %v2605 = vrot.slane %v2519, 3
        %v2606 = vsel %vm369, %v2604, %v2605
        %v2607 = vrot.slane %v2520, 3
        %v2608 = vsel %vm369, %v2605, %v2607
        %v2617 = vrot.slane %v2509, 4
        %v2618 = vrot.slane %v2510, 4
        %v2619 = vsel %vm398, %v2617, %v2618
        %v2620 = vrot.slane %v2511, 4
        %v2621 = vsel %vm398, %v2618, %v2620
        %v2622 = vrot.slane %v2512, 4
        %v2623 = vrot.slane %v2513, 4
        %v2624 = vsel %vm398, %v2622, %v2623
        %v2625 = vrot.slane %v2514, 4
        %v2626 = vsel %vm398, %v2623, %v2625
        %v2627 = vrot.slane %v2515, 4
        %v2628 = vrot.slane %v2516, 4
        %v2629 = vsel %vm398, %v2627, %v2628
        %v2630 = vrot.slane %v2517, 4
        %v2631 = vsel %vm398, %v2628, %v2630
        %v2632 = vrot.slane %v2518, 4
        %v2633 = vrot.slane %v2519, 4
        %v2634 = vsel %vm398, %v2632, %v2633
        %v2635 = vrot.slane %v2520, 4
        %v2636 = vsel %vm398, %v2633, %v2635
        %s2645 = scalar_lea.vmem [#allocation5], 2560
        %v2646 = vld [vmem:[%s2645] sm:$0xff]
        %v2647 = vld [vmem:[%s2645 + $0x8] sm:$0xff]
        %v2648 = vld [vmem:[%s2645 + $0x10] sm:$0xff]
        %v2649 = vld [vmem:[%s2645 + $0x18] sm:$0xff]
        %v2650 = vld [vmem:[%s2645 + $0x20] sm:$0xff]
        %v2651 = vld [vmem:[%s2645 + $0x28] sm:$0xff]
        %v2652 = vld [vmem:[%s2645 + $0x30] sm:$0xff]
        %v2653 = vld [vmem:[%s2645 + $0x38] sm:$0xff]
        %v2654 = vld [vmem:[%s2645 + $0x40] sm:$0xff]
        %v2655 = vld [vmem:[%s2645 + $0x48] sm:$0xff]
        %v2656 = vld [vmem:[%s2645 + $0x50] sm:$0xff]
        %v2657 = vld [vmem:[%s2645 + $0x58] sm:$0xff]
        %v2658 = vld [vmem:[%s2645 + $0x60] sm:$0xff]
        %v2659 = vld [vmem:[%s2645 + $0x68] sm:$0xff]
        %v2660 = vld [vmem:[%s2645 + $0x70] sm:$0xff]
        %v2661 = vld [vmem:[%s2645 + $0x78] sm:$0xff]
        %v2662 = vld [vmem:[%s2645 + $0x80] sm:$0xff]
        %v2663 = vld [vmem:[%s2645 + $0x88] sm:$0xff]
        %v2664 = vld [vmem:[%s2645 + $0x90] sm:$0xff]
        %v2665 = vld [vmem:[%s2645 + $0x98] sm:$0xff]
        %v2666 = vld [vmem:[%s2645 + $0xa0] sm:$0xff]
        %v2667 = vld [vmem:[%s2645 + $0xa8] sm:$0xff]
        %v2668 = vld [vmem:[%s2645 + $0xb0] sm:$0xff]
        %v2669 = vld [vmem:[%s2645 + $0xb8] sm:$0xff]
        %v2670 = vld [vmem:[%s2645 + $0xc0] sm:$0xff]
        %v2671 = vld [vmem:[%s2645 + $0xc8] sm:$0xff]
        %v2672 = vld [vmem:[%s2645 + $0xd0] sm:$0xff]
        %v2673 = vld [vmem:[%s2645 + $0xd8] sm:$0xff]
        %v2674 = vld [vmem:[%s2645 + $0xe0] sm:$0xff]
        %v2675 = vld [vmem:[%s2645 + $0xe8] sm:$0xff]
        %v2676 = vld [vmem:[%s2645 + $0xf0] sm:$0xff]
        %v2677 = vld [vmem:[%s2645 + $0xf8] sm:$0xff]
        %v2678 = vld [vmem:[%s2645 + $0x100] sm:$0xff]
        %v2679 = vld [vmem:[%s2645 + $0x108] sm:$0xff]
        %v2680 = vld [vmem:[%s2645 + $0x110] sm:$0xff]
        %v2681 = vld [vmem:[%s2645 + $0x118] sm:$0xff]
        %v2682 = vld [vmem:[%s2645 + $0x120] sm:$0xff]
        %v2683 = vld [vmem:[%s2645 + $0x128] sm:$0xff]
        %v2684 = vld [vmem:[%s2645 + $0x130] sm:$0xff]
        %v2685 = vld [vmem:[%s2645 + $0x138] sm:$0xff]
        %v2686 = vld [vmem:[%s2645 + $0x140] sm:$0xff]
        %v2687 = vld [vmem:[%s2645 + $0x148] sm:$0xff]
        %v2688 = vld [vmem:[%s2645 + $0x150] sm:$0xff]
        %v2689 = vld [vmem:[%s2645 + $0x158] sm:$0xff]
        %v2690 = vld [vmem:[%s2645 + $0x160] sm:$0xff]
        %v2691 = vld [vmem:[%s2645 + $0x168] sm:$0xff]
        %v2692 = vld [vmem:[%s2645 + $0x170] sm:$0xff]
        %v2693 = vld [vmem:[%s2645 + $0x178] sm:$0xff]
        %v2694 = vld [vmem:[%s2645 + $0x180] sm:$0xff]
        %v2695 = vld [vmem:[%s2645 + $0x188] sm:$0xff]
        %v2696 = vld [vmem:[%s2645 + $0x190] sm:$0xff]
        %v2697 = vld [vmem:[%s2645 + $0x198] sm:$0xff]
        %v2698 = vld [vmem:[%s2645 + $0x1a0] sm:$0xff]
        %v2699 = vld [vmem:[%s2645 + $0x1a8] sm:$0xff]
        %v2700 = vld [vmem:[%s2645 + $0x1b0] sm:$0xff]
        %v2701 = vld [vmem:[%s2645 + $0x1b8] sm:$0xff]
        %v2702 = vld [vmem:[%s2645 + $0x1c0] sm:$0xff]
        %v2703 = vld [vmem:[%s2645 + $0x1c8] sm:$0xff]
        %v2704 = vld [vmem:[%s2645 + $0x1d0] sm:$0xff]
        %v2705 = vld [vmem:[%s2645 + $0x1d8] sm:$0xff]
        %v2706 = vld [vmem:[%s2645 + $0x1e0] sm:$0xff]
        %v2707 = vld [vmem:[%s2645 + $0x1e8] sm:$0xff]
        %v2708 = vld [vmem:[%s2645 + $0x1f0] sm:$0xff]
        %v2709 = vld [vmem:[%s2645 + $0x1f8] sm:$0xff]
        %v2710 = vld [vmem:[%s2645 + $0x200] sm:$0xff]
        %v2711 = vld [vmem:[%s2645 + $0x208] sm:$0xff]
        %v2712 = vld [vmem:[%s2645 + $0x210] sm:$0xff]
        %v2713 = vld [vmem:[%s2645 + $0x218] sm:$0xff]
        %v2714 = vld [vmem:[%s2645 + $0x220] sm:$0xff]
        %v2715 = vld [vmem:[%s2645 + $0x228] sm:$0xff]
        %v2716 = vld [vmem:[%s2645 + $0x230] sm:$0xff]
        %v2717 = vld [vmem:[%s2645 + $0x238] sm:$0xff]
        %v2718 = vld [vmem:[%s2645 + $0x240] sm:$0xff]
        %v2719 = vld [vmem:[%s2645 + $0x248] sm:$0xff]
        %v2720 = vld [vmem:[%s2645 + $0x250] sm:$0xff]
        %v2721 = vld [vmem:[%s2645 + $0x258] sm:$0xff]
        %v2722 = vld [vmem:[%s2645 + $0x260] sm:$0xff]
        %v2723 = vld [vmem:[%s2645 + $0x268] sm:$0xff]
        %v2724 = vld [vmem:[%s2645 + $0x270] sm:$0xff]
        %v2725 = vld [vmem:[%s2645 + $0x278] sm:$0xff]
        %2726 = vmatprep.subr.mxu0 0.0
        %2727 = vmatpush1.msra.mxu0 %v2646
        %2728 = vmatprep.subr.mxu0 0.0
        %2729 = vmatpush1.msra.mxu0 %v2647
        %2730 = vmatprep.subr.mxu0 0.0
        %2731 = vmatpush1.msra.mxu0 %v2648
        %2732 = vmatprep.subr.mxu0 0.0
        %2733 = vmatpush1.msra.mxu0 %v2649
        %2734 = vmatprep.subr.mxu0 0.0
        %2735 = vmatpush1.msra.mxu0 %v2650
        %2736 = vmatprep.subr.mxu0 0.0
        %2737 = vmatpush1.msra.mxu0 %v2651
        %2738 = vmatprep.subr.mxu0 0.0
        %2739 = vmatpush1.msra.mxu0 %v2652
        %2740 = vmatprep.subr.mxu0 0.0
        %2741 = vmatpush1.msra.mxu0 %v2653
        %2742 = vmatprep.subr.mxu0 0.0
        %2743 = vmatpush1.msra.mxu0 %v2654
        %2744 = vmatprep.subr.mxu0 0.0
        %2745 = vmatpush1.msra.mxu0 %v2655
        %2746 = vmatprep.subr.mxu0 0.0
        %2747 = vmatpush1.msra.mxu0 %v2656
        %2748 = vmatprep.subr.mxu0 0.0
        %2749 = vmatpush1.msra.mxu0 %v2657
        %2750 = vmatprep.subr.mxu0 0.0
        %2751 = vmatpush1.msra.mxu0 %v2658
        %2752 = vmatprep.subr.mxu0 0.0
        %2753 = vmatpush1.msra.mxu0 %v2659
        %2754 = vmatprep.subr.mxu0 0.0
        %2755 = vmatpush1.msra.mxu0 %v2660
        %2756 = vmatprep.subr.mxu0 0.0
        %2757 = vmatpush1.msra.mxu0 %v2661
        %2758 = vmatprep.subr.mxu0 0.0
        %2759 = vmatpush1.msra.mxu0 %v2662
        %2760 = vmatprep.subr.mxu0 0.0
        %2761 = vmatpush1.msra.mxu0 %v2663
        %2762 = vmatprep.subr.mxu0 0.0
        %2763 = vmatpush1.msra.mxu0 %v2664
        %2764 = vmatprep.subr.mxu0 0.0
        %2765 = vmatpush1.msra.mxu0 %v2665
        %2766 = vmatprep.subr.mxu0 0.0
        %2767 = vmatpush1.msra.mxu0 %v2666
        %2768 = vmatprep.subr.mxu0 0.0
        %2769 = vmatpush1.msra.mxu0 %v2667
        %2770 = vmatprep.subr.mxu0 0.0
        %2771 = vmatpush1.msra.mxu0 %v2668
        %2772 = vmatprep.subr.mxu0 0.0
        %2773 = vmatpush1.msra.mxu0 %v2669
        %2774 = vmatprep.subr.mxu0 0.0
        %2775 = vmatpush1.msra.mxu0 %v2670
        %2776 = vmatprep.subr.mxu0 0.0
        %2777 = vmatpush1.msra.mxu0 %v2671
        %2778 = vmatprep.subr.mxu0 0.0
        %2779 = vmatpush1.msra.mxu0 %v2672
        %2780 = vmatprep.subr.mxu0 0.0
        %2781 = vmatpush1.msra.mxu0 %v2673
        %2782 = vmatprep.subr.mxu0 0.0
        %2783 = vmatpush1.msra.mxu0 %v2674
        %2784 = vmatprep.subr.mxu0 0.0
        %2785 = vmatpush1.msra.mxu0 %v2675
        %2786 = vmatprep.subr.mxu0 0.0
        %2787 = vmatpush1.msra.mxu0 %v2676
        %2788 = vmatprep.subr.mxu0 0.0
        %2789 = vmatpush1.msra.mxu0 %v2677
        %2790 = vmatprep.mubr.f32.mxu0 %v2535
        %2791 = vmatmul.mubr.f32.gmra.mrb[0].mxu0 %v2509
        %v2792 = vpop.f32.mrb[0].mxu0
        %v2793 = vadd.f32 0.0, %v2792
        %v2794 = vpop.f32.mrb[0].mxu0
        %2795 = vmatprep.mubr.f32.mxu0 %v2537
        %2796 = vmatmul.mubr.f32.gmra.mrb[0].mxu0 %v2510
        %v2797 = vpop.f32.mrb[0].mxu0
        %v2798 = vadd.f32 0.0, %v2797
        %v2799 = vpop.f32.mrb[0].mxu0
        %2800 = vmatprep.mubr.f32.mxu0 %v2540
        %2801 = vmatmul.mubr.f32.gmra.mrb[0].mxu0 %v2512
        %v2802 = vpop.f32.mrb[0].mxu0
        %v2803 = vadd.f32 0.0, %v2802
        %v2804 = vpop.f32.mrb[0].mxu0
        %2805 = vmatprep.mubr.f32.mxu0 %v2542
        %2806 = vmatmul.mubr.f32.gmra.mrb[0].mxu0 %v2513
        %v2807 = vpop.f32.mrb[0].mxu0
        %v2808 = vadd.f32 0.0, %v2807
        %v2809 = vpop.f32.mrb[0].mxu0
        %2810 = vmatprep.mubr.f32.mxu0 %v2545
        %2811 = vmatmul.mubr.f32.gmra.mrb[0].mxu0 %v2515
        %v2812 = vpop.f32.mrb[0].mxu0
        %v2813 = vadd.f32 0.0, %v2812
        %v2814 = vpop.f32.mrb[0].mxu0
        %2815 = vmatprep.mubr.f32.mxu0 %v2547
        %2816 = vmatmul.mubr.f32.gmra.mrb[0].mxu0 %v2516
        %v2817 = vpop.f32.mrb[0].mxu0
        %v2818 = vadd.f32 0.0, %v2817
        %v2819 = vpop.f32.mrb[0].mxu0
        %2820 = vmatprep.mubr.f32.mxu0 %v2550
        %2821 = vmatmul.mubr.f32.gmra.mrb[0].mxu0 %v2518
        %v2822 = vpop.f32.mrb[0].mxu0
        %v2823 = vadd.f32 0.0, %v2822
        %v2824 = vpop.f32.mrb[0].mxu0
        %2825 = vmatprep.mubr.f32.mxu0 %v2552
        %2826 = vmatmul.mubr.f32.gmra.mrb[0].mxu0 %v2519
        %v2827 = vpop.f32.mrb[0].mxu0
        %v2828 = vadd.f32 0.0, %v2827
        %v2829 = vpop.f32.mrb[0].mxu0
        %2830 = vdwg.mxu0
        %2831 = vmatprep.subr.mxu0 0.0
        %2832 = vmatpush1.msra.mxu0 %v2678
        %2833 = vmatprep.subr.mxu0 0.0
        %2834 = vmatpush1.msra.mxu0 %v2679
        %2835 = vmatprep.subr.mxu0 0.0
        %2836 = vmatpush1.msra.mxu0 %v2680
        %2837 = vmatprep.subr.mxu0 0.0
        %2838 = vmatpush1.msra.mxu0 %v2681
        %2839 = vmatprep.subr.mxu0 0.0
        %2840 = vmatpush1.msra.mxu0 %v2682
        %2841 = vmatprep.subr.mxu0 0.0
        %2842 = vmatpush1.msra.mxu0 %v2683
        %2843 = vmatprep.subr.mxu0 0.0
        %2844 = vmatpush1.msra.mxu0 %v2684
        %2845 = vmatprep.subr.mxu0 0.0
        %2846 = vmatpush1.msra.mxu0 %v2685
        %2847 = vmatprep.subr.mxu0 0.0
        %2848 = vmatpush1.msra.mxu0 %v2686
        %2849 = vmatprep.subr.mxu0 0.0
        %2850 = vmatpush1.msra.mxu0 %v2687
        %2851 = vmatprep.subr.mxu0 0.0
        %2852 = vmatpush1.msra.mxu0 %v2688
        %2853 = vmatprep.subr.mxu0 0.0
        %2854 = vmatpush1.msra.mxu0 %v2689
        %2855 = vmatprep.subr.mxu0 0.0
        %2856 = vmatpush1.msra.mxu0 %v2690
        %2857 = vmatprep.subr.mxu0 0.0
        %2858 = vmatpush1.msra.mxu0 %v2691
        %2859 = vmatprep.subr.mxu0 0.0
        %2860 = vmatpush1.msra.mxu0 %v2692
        %2861 = vmatprep.subr.mxu0 0.0
        %2862 = vmatpush1.msra.mxu0 %v2693
        %2863 = vmatprep.subr.mxu0 0.0
        %2864 = vmatpush1.msra.mxu0 %v2694
        %2865 = vmatprep.subr.mxu0 0.0
        %2866 = vmatpush1.msra.mxu0 %v2695
        %2867 = vmatprep.subr.mxu0 0.0
        %2868 = vmatpush1.msra.mxu0 %v2696
        %2869 = vmatprep.subr.mxu0 0.0
        %2870 = vmatpush1.msra.mxu0 %v2697
        %2871 = vmatprep.subr.mxu0 0.0
        %2872 = vmatpush1.msra.mxu0 %v2698
        %2873 = vmatprep.subr.mxu0 0.0
        %2874 = vmatpush1.msra.mxu0 %v2699
        %2875 = vmatprep.subr.mxu0 0.0
        %2876 = vmatpush1.msra.mxu0 %v2700
        %2877 = vmatprep.subr.mxu0 0.0
        %2878 = vmatpush1.msra.mxu0 %v2701
        %2879 = vmatprep.subr.mxu0 0.0
        %2880 = vmatpush1.msra.mxu0 %v2702
        %2881 = vmatprep.subr.mxu0 0.0
        %2882 = vmatpush1.msra.mxu0 %v2703
        %2883 = vmatprep.subr.mxu0 0.0
        %2884 = vmatpush1.msra.mxu0 %v2704
        %2885 = vmatprep.subr.mxu0 0.0
        %2886 = vmatpush1.msra.mxu0 %v2705
        %2887 = vmatprep.subr.mxu0 0.0
        %2888 = vmatpush1.msra.mxu0 %v2706
        %2889 = vmatprep.subr.mxu0 0.0
        %2890 = vmatpush1.msra.mxu0 %v2707
        %2891 = vmatprep.subr.mxu0 0.0
        %2892 = vmatpush1.msra.mxu0 %v2708
        %2893 = vmatprep.subr.mxu0 0.0
        %2894 = vmatpush1.msra.mxu0 %v2709
        %2895 = vmatprep.mubr.f32.mxu0 %v2591
        %2896 = vmatmul.mubr.f32.gmra.mrb[0].mxu0 %v2563
        %v2897 = vpop.f32.mrb[0].mxu0
        %v2898 = vadd.f32 %v2793, %v2897
        %v2899 = vpop.f32.mrb[0].mxu0
        %2900 = vmatprep.mubr.f32.mxu0 %v2593
        %2901 = vmatmul.mubr.f32.gmra.mrb[0].mxu0 %v2565
        %v2902 = vpop.f32.mrb[0].mxu0
        %v2903 = vadd.f32 %v2798, %v2902
        %v2904 = vpop.f32.mrb[0].mxu0
        %2905 = vmatprep.mubr.f32.mxu0 %v2596
        %2906 = vmatmul.mubr.f32.gmra.mrb[0].mxu0 %v2568
        %v2907 = vpop.f32.mrb[0].mxu0
        %v2908 = vadd.f32 %v2803, %v2907
        %v2909 = vpop.f32.mrb[0].mxu0
        %2910 = vmatprep.mubr.f32.mxu0 %v2598
        %2911 = vmatmul.mubr.f32.gmra.mrb[0].mxu0 %v2570
        %v2912 = vpop.f32.mrb[0].mxu0
        %v2913 = vadd.f32 %v2808, %v2912
        %v2914 = vpop.f32.mrb[0].mxu0
        %2915 = vmatprep.mubr.f32.mxu0 %v2601
        %2916 = vmatmul.mubr.f32.gmra.mrb[0].mxu0 %v2573
        %v2917 = vpop.f32.mrb[0].mxu0
        %v2918 = vadd.f32 %v2813, %v2917
        %v2919 = vpop.f32.mrb[0].mxu0
        %2920 = vmatprep.mubr.f32.mxu0 %v2603
        %2921 = vmatmul.mubr.f32.gmra.mrb[0].mxu0 %v2575
        %v2922 = vpop.f32.mrb[0].mxu0
        %v2923 = vadd.f32 %v2818, %v2922
        %v2924 = vpop.f32.mrb[0].mxu0
        %2925 = vmatprep.mubr.f32.mxu0 %v2606
        %2926 = vmatmul.mubr.f32.gmra.mrb[0].mxu0 %v2578
        %v2927 = vpop.f32.mrb[0].mxu0
        %v2928 = vadd.f32 %v2823, %v2927
        %v2929 = vpop.f32.mrb[0].mxu0
        %2930 = vmatprep.mubr.f32.mxu0 %v2608
        %2931 = vmatmul.mubr.f32.gmra.mrb[0].mxu0 %v2580
        %v2932 = vpop.f32.mrb[0].mxu0
        %v2933 = vadd.f32 %v2828, %v2932
        %v2934 = vpop.f32.mrb[0].mxu0
        %2935 = vdwg.mxu0
        %2936 = vmatprep.subr.mxu0 0.0
        %2937 = vmatpush1.msra.mxu0 %v2710
        %2938 = vmatprep.subr.mxu0 0.0
        %2939 = vmatpush1.msra.mxu0 %v2711
        %2940 = vmatprep.subr.mxu0 0.0
        %2941 = vmatpush1.msra.mxu0 %v2712
        %2942 = vmatprep.subr.mxu0 0.0
        %2943 = vmatpush1.msra.mxu0 %v2713
        %2944 = vmatprep.subr.mxu0 0.0
        %2945 = vmatpush1.msra.mxu0 %v2714
        %2946 = vmatprep.subr.mxu0 0.0
        %2947 = vmatpush1.msra.mxu0 %v2715
        %2948 = vmatprep.subr.mxu0 0.0
        %2949 = vmatpush1.msra.mxu0 %v2716
        %2950 = vmatprep.subr.mxu0 0.0
        %2951 = vmatpush1.msra.mxu0 %v2717
        %2952 = vmatprep.subr.mxu0 0.0
        %2953 = vmatpush1.msra.mxu0 %v2718
        %2954 = vmatprep.subr.mxu0 0.0
        %2955 = vmatpush1.msra.mxu0 %v2719
        %2956 = vmatprep.subr.mxu0 0.0
        %2957 = vmatpush1.msra.mxu0 %v2720
        %2958 = vmatprep.subr.mxu0 0.0
        %2959 = vmatpush1.msra.mxu0 %v2721
        %2960 = vmatprep.subr.mxu0 0.0
        %2961 = vmatpush1.msra.mxu0 %v2722
        %2962 = vmatprep.subr.mxu0 0.0
        %2963 = vmatpush1.msra.mxu0 %v2723
        %2964 = vmatprep.subr.mxu0 0.0
        %2965 = vmatpush1.msra.mxu0 %v2724
        %2966 = vmatprep.subr.mxu0 0.0
        %2967 = vmatpush1.msra.mxu0 %v2725
        %2968 = vmatprep.subr.mxu0 0.0
        %2969 = vmatpush1.msra.mxu0 0.0
        %2970 = vmatprep.subr.mxu0 0.0
        %2971 = vmatpush1.msra.mxu0 0.0
        %2972 = vmatprep.subr.mxu0 0.0
        %2973 = vmatpush1.msra.mxu0 0.0
        %2974 = vmatprep.subr.mxu0 0.0
        %2975 = vmatpush1.msra.mxu0 0.0
        %2976 = vmatprep.subr.mxu0 0.0
        %2977 = vmatpush1.msra.mxu0 0.0
        %2978 = vmatprep.subr.mxu0 0.0
        %2979 = vmatpush1.msra.mxu0 0.0
        %2980 = vmatprep.subr.mxu0 0.0
        %2981 = vmatpush1.msra.mxu0 0.0
        %2982 = vmatprep.subr.mxu0 0.0
        %2983 = vmatpush1.msra.mxu0 0.0
        %2984 = vmatprep.subr.mxu0 0.0
        %2985 = vmatpush1.msra.mxu0 0.0
        %2986 = vmatprep.subr.mxu0 0.0
        %2987 = vmatpush1.msra.mxu0 0.0
        %2988 = vmatprep.subr.mxu0 0.0
        %2989 = vmatpush1.msra.mxu0 0.0
        %2990 = vmatprep.subr.mxu0 0.0
        %2991 = vmatpush1.msra.mxu0 0.0
        %2992 = vmatprep.subr.mxu0 0.0
        %2993 = vmatpush1.msra.mxu0 0.0
        %2994 = vmatprep.subr.mxu0 0.0
        %2995 = vmatpush1.msra.mxu0 0.0
        %2996 = vmatprep.subr.mxu0 0.0
        %2997 = vmatpush1.msra.mxu0 0.0
        %2998 = vmatprep.subr.mxu0 0.0
        %2999 = vmatpush1.msra.mxu0 0.0
        %3000 = vmatprep.mubr.f32.mxu0 0.0
        %3001 = vmatmul.mubr.f32.gmra.mrb[0].mxu0 %v2619
        %v3002 = vpop.f32.mrb[0].mxu0
        %v3003 = vadd.f32 %v2898, %v3002
        %v3004 = vpop.f32.mrb[0].mxu0
        %3005 = vmatprep.mubr.f32.mxu0 0.0
        %3006 = vmatmul.mubr.f32.gmra.mrb[0].mxu0 %v2621
        %v3007 = vpop.f32.mrb[0].mxu0
        %v3008 = vadd.f32 %v2903, %v3007
        %v3009 = vpop.f32.mrb[0].mxu0
        %3010 = vmatprep.mubr.f32.mxu0 0.0
        %3011 = vmatmul.mubr.f32.gmra.mrb[0].mxu0 %v2624
        %v3012 = vpop.f32.mrb[0].mxu0
        %v3013 = vadd.f32 %v2908, %v3012
        %v3014 = vpop.f32.mrb[0].mxu0
        %3015 = vmatprep.mubr.f32.mxu0 0.0
        %3016 = vmatmul.mubr.f32.gmra.mrb[0].mxu0 %v2626
        %v3017 = vpop.f32.mrb[0].mxu0
        %v3018 = vadd.f32 %v2913, %v3017
        %v3019 = vpop.f32.mrb[0].mxu0
        %3020 = vmatprep.mubr.f32.mxu0 0.0
        %3021 = vmatmul.mubr.f32.gmra.mrb[0].mxu0 %v2629
        %v3022 = vpop.f32.mrb[0].mxu0
        %v3023 = vadd.f32 %v2918, %v3022
        %v3024 = vpop.f32.mrb[0].mxu0
        %3025 = vmatprep.mubr.f32.mxu0 0.0
        %3026 = vmatmul.mubr.f32.gmra.mrb[0].mxu0 %v2631
        %v3027 = vpop.f32.mrb[0].mxu0
        %v3028 = vadd.f32 %v2923, %v3027
        %v3029 = vpop.f32.mrb[0].mxu0
        %3030 = vmatprep.mubr.f32.mxu0 0.0
        %3031 = vmatmul.mubr.f32.gmra.mrb[0].mxu0 %v2634
        %v3032 = vpop.f32.mrb[0].mxu0
        %v3033 = vadd.f32 %v2928, %v3032
        %v3034 = vpop.f32.mrb[0].mxu0
        %3035 = vmatprep.mubr.f32.mxu0 0.0
        %3036 = vmatmul.mubr.f32.gmra.mrb[0].mxu0 %v2636
        %v3037 = vpop.f32.mrb[0].mxu0
        %v3038 = vadd.f32 %v2933, %v3037
        %v3039 = vpop.f32.mrb[0].mxu0
        %3040 = vdwg.mxu0
        %v3041 = vld [vmem:[#allocation4] sm:$0xff]
        %v3042 = vld [vmem:[#allocation4 + $0x8] sm:$0xff]
        %v3043 = vld [vmem:[#allocation4 + $0x10] sm:$0xff]
        %v3044 = vld [vmem:[#allocation4 + $0x18] sm:$0xff]
        %v3045 = vld [vmem:[#allocation4 + $0x20] sm:$0xff]
        %v3046 = vld [vmem:[#allocation4 + $0x28] sm:$0xff]
        %v3047 = vld [vmem:[#allocation4 + $0x30] sm:$0xff]
        %v3048 = vld [vmem:[#allocation4 + $0x38] sm:$0xff]
        %v3049 = vadd.f32 %v3041, %v3003
        %v3050 = vadd.f32 %v3042, %v3008
        %v3051 = vadd.f32 %v3043, %v3013
        %v3052 = vadd.f32 %v3044, %v3018
        %v3053 = vadd.f32 %v3045, %v3023
        %v3054 = vadd.f32 %v3046, %v3028
        %v3055 = vadd.f32 %v3047, %v3033
        %v3056 = vadd.f32 %v3048, %v3038
        %3057 = vst [vmem:[#allocation4] sm:$0xff] %v3049
        %3058 = vst [vmem:[#allocation4 + $0x8] sm:$0xff] %v3050
        %3059 = vst [vmem:[#allocation4 + $0x10] sm:$0xff] %v3051
        %3060 = vst [vmem:[#allocation4 + $0x18] sm:$0xff] %v3052
        %3061 = vst [vmem:[#allocation4 + $0x20] sm:$0xff] %v3053
        %3062 = vst [vmem:[#allocation4 + $0x28] sm:$0xff] %v3054
        %3063 = vst [vmem:[#allocation4 + $0x30] sm:$0xff] %v3055
        %3064 = vst [vmem:[#allocation4 + $0x38] sm:$0xff] %v3056
        %v3065 = vld [vmem:[#allocation4] sm:$0xff]
        %v3066 = vld [vmem:[#allocation4 + $0x8] sm:$0xff]
        %v3067 = vld [vmem:[#allocation4 + $0x10] sm:$0xff]
        %v3068 = vld [vmem:[#allocation4 + $0x18] sm:$0xff]
        %v3069 = vld [vmem:[#allocation4 + $0x20] sm:$0xff]
        %v3070 = vld [vmem:[#allocation4 + $0x28] sm:$0xff]
        %v3071 = vld [vmem:[#allocation4 + $0x30] sm:$0xff]
        %v3072 = vld [vmem:[#allocation4 + $0x38] sm:$0xff]
        %3073 = vst [vmem:[%s164] sm:$0xff] %v3065
        %3074 = vst [vmem:[%s164 + $0x8] sm:$0xff] %v3066
        %3075 = vst [vmem:[%s164 + $0x10] sm:$0xff] %v3067
        %3076 = vst [vmem:[%s164 + $0x18] sm:$0xff] %v3068
        %3077 = vst [vmem:[%s164 + $0x20] sm:$0xff] %v3069
        %3078 = vst [vmem:[%s164 + $0x28] sm:$0xff] %v3070
        %3079 = vst [vmem:[%s164 + $0x30] sm:$0xff] %v3071
        %3080 = vst [vmem:[%s164 + $0x38] sm:$0xff] %v3072
        %s3081 = sand.u32 %s83, 1
        %s3082 = scalar_lea.sflag [#allocation7], %s3081
        %s3083 = sand.u32 %s83, 1
        %s3084 = smul.addr %s3083, 64
        %s3085 = scalar_lea.vmem [#allocation10], %s3084
        // Predicated region
        $region74: #{tpu_custom_call.1} parent=27 // pred_check
          %p3086 = pneg %p93
        $region75: #{tpu_custom_call.1} parent=27 // pred_check_branch
          %3088 = sbr.rel (%p3086) target = $region77
        $region76: #{tpu_custom_call.1} parent=27 // pred_region
          %s3089 = smul.u32 8, %s24
          %s3091 = ssub.s32 1024, 1024
          %3092 = vsyncadd %s3082, %s3091
          %s3093 = smul.addr %s23, 32
          %s3094 = sadd.s32 %s3089, %s3093
          %s3095 = smul.addr %s3094, 128
          %s3096 = scalar_lea.hbm %s3, %s3095
          %s3097 = sshll.u32 %s3085, 4
          %s3098 = int_to_ptr.vmem [resolvable:$true] %s3097
          %3103 = dma.vmem_to_hbm [thread:$0]  %s3098, 1024, %s3096, %s3082, 128, 128, 8
        $region77: #{tpu_custom_call.1} parent=27 // pred_fallthru
          _
      $region28: #{tpu_custom_call.1} parent=5 // pred_fallthru
        _
      %p3104 = scmp.le.s32.totalorder 2, %s14
      // Predicated region
      $region78: #{tpu_custom_call.1} parent=5 // pred_check
        %p3105 = pneg %p3104
      $region79: #{tpu_custom_call.1} parent=5 // pred_check_branch
        %3107 = sbr.rel (%p3105) target = $region81
      $region80: #{tpu_custom_call.1} parent=5 // pred_region
        %s3108 = ssub.s32 %s14, 2
        // Predicated region
        $region82: #{tpu_custom_call.1} parent=80 // pred_check
          %p3109 = pneg %p99
        $region83: #{tpu_custom_call.1} parent=80 // pred_check_branch
          %3111 = sbr.rel (%p3109) target = $region85
        $region84: #{tpu_custom_call.1} parent=80 // pred_region
          %s3112 = sand.u32 %s84, 1
          %s3113 = scalar_lea.sflag [#allocation7], %s3112
          %s3114 = sand.u32 %s84, 1
          %s3115 = smul.addr %s3114, 64
          %s3116 = scalar_lea.vmem [#allocation10], %s3115
          %3117 = dma.done %s3113, 1024
        $region85: #{tpu_custom_call.1} parent=80 // pred_fallthru
          _
      $region81: #{tpu_custom_call.1} parent=5 // pred_fallthru
        _
    $region6: #{tpu_custom_call.1} parent=1 // loop_footer
      %s18 = sadd.s32 1, %s14
    $region7: #{tpu_custom_call.1} parent=1 // loop_footer_branch
      %13 = sbr.rel target = $region3
    $region8: #{tpu_custom_call.1} parent=1 // loop_exit
      _
    %3118 = vsyncpa [#allocation6], 1
    %s3119 = scalar_lea.sflag [#allocation6], 1
    %3120 = vsyncpa %s3119, 1
    %3121 = vsyncpa [#allocation9], 1
    %3122 = vsyncpa [#allocation7], 1
    %s3123 = scalar_lea.sflag [#allocation7], 1
    %3124 = vsyncpa %s3123, 1
  %3125 = vsyncmov [#allocation3]
  %s3126 = vpop.sfrf %3125
  %p3127 = scmp.eq.s32.totalorder %s3126, 0
  %p3128 = pneg %p3127
  %3130 = shalt.err (%p3128)

</llo_original>
